<compile_context>
chip_gen: v7x
topology: tpu7x:2x2x1
jax: 0.10.0
libtpu: 0.0.40
codegen_flags: <defaults>
</compile_context>

<pallas_src>
import numpy as np
import jax
import jax.numpy as jnp
from jax.experimental import pallas as pl
from jax.experimental.pallas import tpu as pltpu


# ------------------------------ Pallas kernel --------------------------------

def sed_fused_kernel(x_ref, wbd_ref, bw_ref, ashift_ref, wcat_ref, brow_ref,
                     tsc_ref, shrow_ref, selh_ref, ppool_ref, bpool_ref,
                     o_ref):
    f32, bf16 = jnp.float32, jnp.bfloat16

    # conv_init (1x1, block-diagonal over packed width) + ReLU.
    xa = jnp.maximum(
        jnp.dot(x_ref[...].astype(bf16), wbd_ref[...],
                preferred_element_type=f32), 0.0)              # (NB*H, W*Cin)

    # bilinear 2x upsample along width (channels folded into lanes).
    xw = jnp.dot(xa.astype(bf16), bw_ref[...],
                 preferred_element_type=f32).astype(bf16)      # (NB*H, 2W*Cin)

    # Height 2x upsample + the 7 vertical conv taps (zero halo baked into the
    # shifted upsample matrices); lane-concat (128-aligned pieces) turns the
    # three 7x7 convs into ONE K = 7*2W*Cin matmul.
    taps = [jnp.dot(ashift_ref[kh], xw, preferred_element_type=f32)
            for kh in range(7)]                                # 7 x (NB*2H, 2W*Cin)
    xcat = jnp.concatenate(taps, axis=1).astype(bf16)          # (NB*2H, 7*2W*Cin)

    conv = jnp.dot(xcat, wcat_ref[...], preferred_element_type=f32)
    r = jnp.maximum(conv + brow_ref[...], 0.0).astype(bf16)    # (NB*2H, 2W*3C)

    # Branch sum (+BN shift; BN scale already folded into wcat/brow) with a
    # width-parity-major output column layout, then ReLU.
    total = (jnp.dot(r, tsc_ref[...], preferred_element_type=f32)
             + shrow_ref[...])
    out_pre = jnp.maximum(total, 0.0).astype(bf16)             # (NB*2H, 2W*C)

    # MaxPool 2x2: rows via two 0/1 row-selection matmuls (even/odd rows),
    # width via an aligned half-lane max (parity-major layout). The post-pool
    # ReLU of the original module is redundant (inputs are already >= 0).
    he = jnp.dot(selh_ref[0], out_pre, preferred_element_type=f32)
    ho = jnp.dot(selh_ref[1], out_pre, preferred_element_type=f32)
    hp = jnp.maximum(he, ho)                                   # (NB*H, 2W*C)
    half = hp.shape[1] // 2
    wp = jnp.maximum(hp[:, :half], hp[:, half:])               # (NB*H, W*C)

    # pool tail: 1x1 conv (block-diagonal) + bias, lane-dense (W*Cout) output.
    o_ref[...] = (jnp.dot(wp.astype(bf16), ppool_ref[...],
                          preferred_element_type=f32) + bpool_ref[...])


@jax.jit
def sed_forward(x_nchw, packed):
    N, Cin, H, W = x_nchw.shape
    NB = packed["sel_h"].shape[1] // H            # images folded per grid step
    G = N // NB
    assert G * NB == N, (N, NB)

    w_cin = W * Cin
    lu = packed["bw"].shape[1]                    # 2W*Cin
    l3 = packed["wcat"].shape[1]                  # 2W*3Cout
    lp = packed["tsc"].shape[1]                   # 2W*Cout (parity-major)
    lo = packed["ppool"].shape[1]                 # W*Cout
    m, mu = NB * H, NB * 2 * H

    xrow = jnp.transpose(x_nchw, (0, 2, 3, 1)).reshape(N * H, w_cin)

    macs_per_step = (m * w_cin * w_cin + m * w_cin * lu + 7 * mu * m * lu
                     + mu * 7 * lu * l3 + mu * l3 * lp + 2 * m * mu * lp
                     + m * lo * lo)
    in_bytes = int(xrow.size) * xrow.dtype.itemsize + sum(
        int(v.size) * v.dtype.itemsize for v in packed.values())
    cost = pl.CostEstimate(flops=int(2 * macs_per_step * G),
                           transcendentals=0,
                           bytes_accessed=int(in_bytes + N * H * lo * 4))

    out2d = pl.pallas_call(
        sed_fused_kernel,
        out_shape=jax.ShapeDtypeStruct((N * H, lo), jnp.float32),
        grid=(G,),
        in_specs=[
            pl.BlockSpec((m, w_cin), lambda g: (g, 0)),
            pl.BlockSpec(packed["wbd_init"].shape, lambda g: (0, 0)),
            pl.BlockSpec(packed["bw"].shape, lambda g: (0, 0)),
            pl.BlockSpec(packed["a_shift"].shape, lambda g: (0, 0, 0)),
            pl.BlockSpec(packed["wcat"].shape, lambda g: (0, 0)),
            pl.BlockSpec(packed["brow"].shape, lambda g: (0, 0)),
            pl.BlockSpec(packed["tsc"].shape, lambda g: (0, 0)),
            pl.BlockSpec(packed["shrow"].shape, lambda g: (0, 0)),
            pl.BlockSpec(packed["sel_h"].shape, lambda g: (0, 0, 0)),
            pl.BlockSpec(packed["ppool"].shape, lambda g: (0, 0)),
            pl.BlockSpec(packed["bpool_row"].shape, lambda g: (0, 0)),
        ],
        out_specs=pl.BlockSpec((m, lo), lambda g: (g, 0)),
        compiler_params=pltpu.CompilerParams(
            dimension_semantics=("parallel",),
            vmem_limit_bytes=32 * 1024 * 1024),
        cost_estimate=cost,
    )(xrow, packed["wbd_init"], packed["bw"], packed["a_shift"],
      packed["wcat"], packed["brow"], packed["tsc"], packed["shrow"],
      packed["sel_h"], packed["ppool"], packed["bpool_row"])

    cout = lo // W
    return jnp.transpose(out2d.reshape(N, H, W, cout), (0, 3, 1, 2))   # NCHW


# --------------------------- offline weight packing ---------------------------

def bilinear_2x_matrix(size):
    # nn.Upsample(scale_factor=2, mode='bilinear', align_corners=False)
    out = 2 * size
    a = np.zeros((out, size), np.float32)
    for j in range(out):
        src = max((j + 0.5) * 0.5 - 0.5, 0.0)
        j0 = min(int(np.floor(src)), size - 1)
        j1 = min(j0 + 1, size - 1)
        lam = min(max(src - j0, 0.0), 1.0)
        a[j, j0] += 1.0 - lam
        a[j, j1] += lam
    return a


def pack_params(params, H, W, images_per_block=1):
    w_init = np.asarray(params["w_init"], np.float32)      # (Cin, Cin)  (in,out)
    w_dil = np.asarray(params["w_dil"], np.float32)        # (7, 7, Cin, 3*Cout)
    b_dil = np.asarray(params["b_dil"], np.float32)        # (3, Cout)
    bn_sc = np.asarray(params["bn_scale"], np.float32)     # (3, Cout)
    bn_sh = np.asarray(params["bn_shift"], np.float32)     # (3, Cout)
    w_pool = np.asarray(params["w_pool"], np.float32)      # (Cout, Cout) (in,out)
    b_pool = np.asarray(params["b_pool"], np.float32)      # (1, Cout)

    Cin, Cout = w_init.shape[0], w_pool.shape[0]
    NB = images_per_block
    C3, WU, HU = 3 * Cout, 2 * W, 2 * H
    LU, L3 = WU * Cin, WU * C3
    LP, LO = WU * Cout, W * Cout

    # Fold BN scale into the conv weights/bias (ReLU(x)*s == ReLU(x*s) iff s>0).
    if np.all(bn_sc > 0):
        w_eff = w_dil * bn_sc.reshape(-1)
        b_eff = b_dil * bn_sc
        diag_val = np.ones_like(bn_sc)
    else:
        w_eff, b_eff, diag_val = w_dil, b_dil, bn_sc

    # conv_init as a block-diagonal matmul over the W packed pixels.
    wbd_init = np.kron(np.eye(W, dtype=np.float32), w_init)        # (W*Cin, W*Cin)

    # Bilinear 2x upsample: width folded with channels (right matmul).
    aw = bilinear_2x_matrix(W)                                      # (2W, W)
    ah = bilinear_2x_matrix(H)                                      # (2H, H)
    bw = np.kron(aw.T, np.eye(Cin, dtype=np.float32))               # (W*Cin, 2W*Cin)

    # Height upsample + per-tap vertical shift with zero halo, block-diagonal
    # over the NB images folded into the M axis.
    a_shift = np.zeros((7, NB * HU, NB * H), np.float32)
    for kh in range(7):
        a_kh = np.zeros((HU, H), np.float32)
        lo_r, hi_r = max(0, 3 - kh), min(HU, HU + 3 - kh)
        a_kh[lo_r:hi_r] = ah[lo_r + kh - 3:hi_r + kh - 3]
        a_shift[kh] = np.kron(np.eye(NB, dtype=np.float32), a_kh)

    # Three 7x7 convs (branches stacked on out-channels): horizontal taps and
    # width zero-padding baked into banded matrices, 7 vertical taps stacked
    # along K -> one (7*2W*Cin, 2W*3Cout) matmul weight.
    wcat = np.zeros((7, LU, L3), np.float32)
    for ow in range(WU):
        for kw in range(7):
            jw = ow + kw - 3
            if 0 <= jw < WU:
                wcat[:, jw * Cin:(jw + 1) * Cin,
                     ow * C3:(ow + 1) * C3] = w_eff[:, kw]
    wcat = wcat.reshape(7 * LU, L3)

    brow = np.tile(b_eff.reshape(-1), WU)[None, :]                  # (1, 2W*3C)
    shrow = np.tile(bn_sh.sum(axis=0), WU)[None, :]                 # (1, 2W*C)

    # Branch sum with width-parity-major output columns (even pixels in lanes
    # [0, W*C), odd pixels in [W*C, 2W*C)) so the width maxpool is an aligned
    # half-lane max inside the kernel.
    tsc = np.zeros((L3, LP), np.float32)
    for wu in range(WU):
        ow, par = wu // 2, wu % 2
        for br in range(3):
            tsc[wu * C3 + br * Cout:wu * C3 + (br + 1) * Cout,
                par * LO + ow * Cout:par * LO + (ow + 1) * Cout] = \
                np.diag(diag_val[br])

    # Height maxpool as two 0/1 row-selection matmuls (even rows / odd rows).
    sel_h = np.zeros((2, NB * H, NB * HU), np.float32)
    for r in range(NB * H):
        sel_h[0, r, 2 * r] = 1.0
        sel_h[1, r, 2 * r + 1] = 1.0

    # Final 1x1 conv as a block-diagonal matmul + tiled bias row.
    ppool = np.kron(np.eye(W, dtype=np.float32), w_pool)            # (W*C, W*C)
    bpool_row = np.tile(b_pool.reshape(-1), W)[None, :]             # (1, W*C)

    bf = lambda a: jnp.asarray(a, jnp.bfloat16)
    fp = lambda a: jnp.asarray(a, jnp.float32)
    return dict(wbd_init=bf(wbd_init), bw=bf(bw), a_shift=bf(a_shift),
                wcat=bf(wcat), brow=fp(brow), tsc=bf(tsc), shrow=fp(shrow),
                sel_h=bf(sel_h), ppool=bf(ppool), bpool_row=fp(bpool_row))


# -------------------------- pure-JAX (XLA) reference --------------------------

def upsample_bilinear_2x(x):
    N, H, W, C = x.shape

    def idx(size):
        out = 2 * size
        src = (jnp.arange(out, dtype=jnp.float32) + 0.5) * 0.5 - 0.5
        src = jnp.maximum(src, 0.0)
        i0 = jnp.minimum(jnp.floor(src).astype(jnp.int32), size - 1)
        i1 = jnp.minimum(i0 + 1, size - 1)
        lam = jnp.clip(src - i0.astype(jnp.float32), 0.0, 1.0)
        return i0, i1, lam

    h0, h1, lh = idx(H)
    w0, w1, lw = idx(W)
    rows = (x[:, h0] * (1.0 - lh)[None, :, None, None]
            + x[:, h1] * lh[None, :, None, None])
    return (rows[:, :, w0] * (1.0 - lw)[None, None, :, None]
            + rows[:, :, w1] * lw[None, None, :, None])


def maxpool_2x2(x):
    N, H, W, C = x.shape
    return x.reshape(N, H // 2, 2, W // 2, 2, C).max(axis=(2, 4))


@jax.jit
def ref_forward(x_nchw, params):
    REF = jax.lax.Precision.HIGHEST
    xh = jnp.transpose(x_nchw, (0, 2, 3, 1))
    xh = jnp.maximum(
        jnp.einsum("nhwc,cd->nhwd", xh, params["w_init"], precision=REF), 0.0)
    xu = upsample_bilinear_2x(xh)
    Cout = params["w_dil"].shape[-1] // 3
    conv = jax.lax.conv_general_dilated(
        xu, params["w_dil"], window_strides=(1, 1), padding=((3, 3), (3, 3)),
        dimension_numbers=("NHWC", "HWIO", "NHWC"), precision=REF)
    total = jnp.zeros(conv.shape[:-1] + (Cout,), jnp.float32)
    for br in range(3):
        r = conv[..., br * Cout:(br + 1) * Cout] + params["b_dil"][br]
        r = jnp.maximum(r, 0.0)
        r = r * params["bn_scale"][br] + params["bn_shift"][br]
        total = total + r
    out = jnp.maximum(total, 0.0)
    pm = jnp.maximum(maxpool_2x2(out), 0.0)
    y = (jnp.einsum("nhwc,cd->nhwd", pm, params["w_pool"], precision=REF)
         + params["b_pool"][0])
    return jnp.transpose(y, (0, 3, 1, 2))


# ------------------------------------ main ------------------------------------

if __name__ == "__main__":
    key = jax.random.PRNGKey(0)
    ks = jax.random.split(key, 10)
    N, Cin, Cout, H, W = 2, 4, 8, 16, 16
    eps = 1e-5

    gamma = 1.0 + 0.1 * jax.random.normal(ks[3], (3, Cout), jnp.float32)
    beta = 0.1 * jax.random.normal(ks[4], (3, Cout), jnp.float32)
    run_mean = 0.1 * jax.random.normal(ks[5], (3, Cout), jnp.float32)
    run_var = 1.0 + 0.5 * jax.nn.sigmoid(
        jax.random.normal(ks[6], (3, Cout), jnp.float32))
    bn_scale = gamma / jnp.sqrt(run_var + eps)
    bn_shift = beta - run_mean * bn_scale

    params = {
        # conv_init: Conv2d(Cin, Cin, 1, bias=False), stored (Cin_in, Cin_out)
        "w_init": 0.3 * jax.random.normal(ks[0], (Cin, Cin), jnp.float32),
        # conv_dil5/7/9: three Conv2d(Cin, Cout, 7, pad=3, bias=True); HWIO,
        # with the three branches stacked on the output-channel axis.
        "w_dil": 0.05 * jax.random.normal(ks[1], (7, 7, Cin, 3 * Cout),
                                          jnp.float32),
        "b_dil": 0.1 * jax.random.normal(ks[2], (3, Cout), jnp.float32),
        "bn_scale": bn_scale,
        "bn_shift": bn_shift,
        # pool tail: Conv2d(Cout, Cout, 1, bias=True)
        "w_pool": 0.3 * jax.random.normal(ks[7], (Cout, Cout), jnp.float32),
        "b_pool": 0.1 * jax.random.normal(ks[8], (1, Cout), jnp.float32),
    }

    # Two grid steps (one per v7x TensorCore) when N is even; fold the rest of
    # the batch into the matmul M axis.
    G = 2 if N % 2 == 0 else 1
    packed = pack_params(params, H, W, images_per_block=N // G)

    x = jax.random.normal(ks[9], (N, Cin, H, W), jnp.float32)   # NCHW input

    out = jax.block_until_ready(sed_forward(x, packed))
    ref = jax.block_until_ready(ref_forward(x, params))

    assert out.shape == (N, Cout, H, W), out.shape
    max_err = float(jnp.max(jnp.abs(out - ref)))
    # Tolerance covers the bf16 weight packing + bf16 MXU operands vs the f32
    # HIGHEST-precision XLA reference.
    assert jnp.allclose(out, ref, rtol=5e-2, atol=5e-2), \
        f"max abs err = {max_err}"
    print("KERNEL_OK")
</pallas_src>

<mosaic_0001>
module attributes {stable_mosaic.version = 11 : i64} {
  func.func @sed_fused_kernel(%arg0: i32, %arg1: memref<16x64xf32, #tpu.memory_space<vmem>>, %arg2: memref<64x64xbf16, #tpu.memory_space<vmem>>, %arg3: memref<64x128xbf16, #tpu.memory_space<vmem>>, %arg4: memref<7x32x16xbf16, #tpu.memory_space<vmem>>, %arg5: memref<896x768xbf16, #tpu.memory_space<vmem>>, %arg6: memref<1x768xf32, #tpu.memory_space<vmem>>, %arg7: memref<768x256xbf16, #tpu.memory_space<vmem>>, %arg8: memref<1x256xf32, #tpu.memory_space<vmem>>, %arg9: memref<2x16x32xbf16, #tpu.memory_space<vmem>>, %arg10: memref<128x128xbf16, #tpu.memory_space<vmem>>, %arg11: memref<1x128xf32, #tpu.memory_space<vmem>>, %arg12: memref<16x128xf32, #tpu.memory_space<vmem>>) attributes {dimension_semantics = [#tpu.dimension_semantics<parallel>], iteration_bounds = array<i64: 2>, scalar_prefetch = 0 : i64, scratch_operands = 0 : i64, tpu.core_type = #tpu.core_type<tc>, window_params = [{transform_indices = @transform_0, window_bounds = array<i64: 16, 64>}, {pipeline_mode = #tpu.pipeline_mode<synchronous>, transform_indices = @transform_1, window_bounds = array<i64: 64, 64>}, {pipeline_mode = #tpu.pipeline_mode<synchronous>, transform_indices = @transform_2, window_bounds = array<i64: 64, 128>}, {pipeline_mode = #tpu.pipeline_mode<synchronous>, transform_indices = @transform_3, window_bounds = array<i64: 7, 32, 16>}, {pipeline_mode = #tpu.pipeline_mode<synchronous>, transform_indices = @transform_4, window_bounds = array<i64: 896, 768>}, {pipeline_mode = #tpu.pipeline_mode<synchronous>, transform_indices = @transform_5, window_bounds = array<i64: 1, 768>}, {pipeline_mode = #tpu.pipeline_mode<synchronous>, transform_indices = @transform_6, window_bounds = array<i64: 768, 256>}, {pipeline_mode = #tpu.pipeline_mode<synchronous>, transform_indices = @transform_7, window_bounds = array<i64: 1, 256>}, {pipeline_mode = #tpu.pipeline_mode<synchronous>, transform_indices = @transform_8, window_bounds = array<i64: 2, 16, 32>}, {pipeline_mode = #tpu.pipeline_mode<synchronous>, transform_indices = @transform_9, window_bounds = array<i64: 128, 128>}, {pipeline_mode = #tpu.pipeline_mode<synchronous>, transform_indices = @transform_10, window_bounds = array<i64: 1, 128>}, {transform_indices = @transform_11, window_bounds = array<i64: 16, 128>}]} {
    %c0 = arith.constant 0 : index
    %c0_0 = arith.constant 0 : index
    %0 = vector.load %arg1[%c0, %c0_0] : memref<16x64xf32, #tpu.memory_space<vmem>>, vector<16x64xf32>
    %1 = arith.truncf %0 : vector<16x64xf32> to vector<16x64xbf16>
    %c0_1 = arith.constant 0 : index
    %c0_2 = arith.constant 0 : index
    %2 = vector.load %arg2[%c0_1, %c0_2] : memref<64x64xbf16, #tpu.memory_space<vmem>>, vector<64x64xbf16>
    %cst = arith.constant dense<0.000000e+00> : vector<16x64xf32>
    %3 = tpu.matmul %1, %2, %cst {dimension_numbers = #tpu.dot_dimension_numbers<[1], [0], [0], [1], [0, 0, 1, 1], [], []>} : vector<16x64xbf16>, vector<64x64xbf16>, vector<16x64xf32> -> vector<16x64xf32>
    %cst_3 = arith.constant 0.000000e+00 : f32
    %4 = vector.broadcast %cst_3 : f32 to vector<16x64xf32>
    %5 = arith.maximumf %3, %4 : vector<16x64xf32>
    %6 = arith.truncf %5 : vector<16x64xf32> to vector<16x64xbf16>
    %c0_4 = arith.constant 0 : index
    %c0_5 = arith.constant 0 : index
    %7 = vector.load %arg3[%c0_4, %c0_5] : memref<64x128xbf16, #tpu.memory_space<vmem>>, vector<64x128xbf16>
    %cst_6 = arith.constant dense<0.000000e+00> : vector<16x128xf32>
    %8 = tpu.matmul %6, %7, %cst_6 {dimension_numbers = #tpu.dot_dimension_numbers<[1], [0], [0], [1], [0, 0, 1, 1], [], []>} : vector<16x64xbf16>, vector<64x128xbf16>, vector<16x128xf32> -> vector<16x128xf32>
    %9 = arith.truncf %8 : vector<16x128xf32> to vector<16x128xbf16>
    %c0_7 = arith.constant 0 : index
    %c0_8 = arith.constant 0 : index
    %c0_9 = arith.constant 0 : index
    %10 = vector.load %arg4[%c0_7, %c0_8, %c0_9] : memref<7x32x16xbf16, #tpu.memory_space<vmem>>, vector<1x32x16xbf16>
    %11 = vector.shape_cast %10 : vector<1x32x16xbf16> to vector<32x16xbf16>
    %cst_10 = arith.constant dense<0.000000e+00> : vector<32x128xf32>
    %12 = tpu.matmul %11, %9, %cst_10 {dimension_numbers = #tpu.dot_dimension_numbers<[1], [0], [0], [1], [0, 0, 1, 1], [], []>} : vector<32x16xbf16>, vector<16x128xbf16>, vector<32x128xf32> -> vector<32x128xf32>
    %c1 = arith.constant 1 : index
    %c0_11 = arith.constant 0 : index
    %c0_12 = arith.constant 0 : index
    %13 = vector.load %arg4[%c1, %c0_11, %c0_12] : memref<7x32x16xbf16, #tpu.memory_space<vmem>>, vector<1x32x16xbf16>
    %14 = vector.shape_cast %13 : vector<1x32x16xbf16> to vector<32x16xbf16>
    %cst_13 = arith.constant dense<0.000000e+00> : vector<32x128xf32>
    %15 = tpu.matmul %14, %9, %cst_13 {dimension_numbers = #tpu.dot_dimension_numbers<[1], [0], [0], [1], [0, 0, 1, 1], [], []>} : vector<32x16xbf16>, vector<16x128xbf16>, vector<32x128xf32> -> vector<32x128xf32>
    %c2 = arith.constant 2 : index
    %c0_14 = arith.constant 0 : index
    %c0_15 = arith.constant 0 : index
    %16 = vector.load %arg4[%c2, %c0_14, %c0_15] : memref<7x32x16xbf16, #tpu.memory_space<vmem>>, vector<1x32x16xbf16>
    %17 = vector.shape_cast %16 : vector<1x32x16xbf16> to vector<32x16xbf16>
    %cst_16 = arith.constant dense<0.000000e+00> : vector<32x128xf32>
    %18 = tpu.matmul %17, %9, %cst_16 {dimension_numbers = #tpu.dot_dimension_numbers<[1], [0], [0], [1], [0, 0, 1, 1], [], []>} : vector<32x16xbf16>, vector<16x128xbf16>, vector<32x128xf32> -> vector<32x128xf32>
    %c3 = arith.constant 3 : index
    %c0_17 = arith.constant 0 : index
    %c0_18 = arith.constant 0 : index
    %19 = vector.load %arg4[%c3, %c0_17, %c0_18] : memref<7x32x16xbf16, #tpu.memory_space<vmem>>, vector<1x32x16xbf16>
    %20 = vector.shape_cast %19 : vector<1x32x16xbf16> to vector<32x16xbf16>
    %cst_19 = arith.constant dense<0.000000e+00> : vector<32x128xf32>
    %21 = tpu.matmul %20, %9, %cst_19 {dimension_numbers = #tpu.dot_dimension_numbers<[1], [0], [0], [1], [0, 0, 1, 1], [], []>} : vector<32x16xbf16>, vector<16x128xbf16>, vector<32x128xf32> -> vector<32x128xf32>
    %c4 = arith.constant 4 : index
    %c0_20 = arith.constant 0 : index
    %c0_21 = arith.constant 0 : index
    %22 = vector.load %arg4[%c4, %c0_20, %c0_21] : memref<7x32x16xbf16, #tpu.memory_space<vmem>>, vector<1x32x16xbf16>
    %23 = vector.shape_cast %22 : vector<1x32x16xbf16> to vector<32x16xbf16>
    %cst_22 = arith.constant dense<0.000000e+00> : vector<32x128xf32>
    %24 = tpu.matmul %23, %9, %cst_22 {dimension_numbers = #tpu.dot_dimension_numbers<[1], [0], [0], [1], [0, 0, 1, 1], [], []>} : vector<32x16xbf16>, vector<16x128xbf16>, vector<32x128xf32> -> vector<32x128xf32>
    %c5 = arith.constant 5 : index
    %c0_23 = arith.constant 0 : index
    %c0_24 = arith.constant 0 : index
    %25 = vector.load %arg4[%c5, %c0_23, %c0_24] : memref<7x32x16xbf16, #tpu.memory_space<vmem>>, vector<1x32x16xbf16>
    %26 = vector.shape_cast %25 : vector<1x32x16xbf16> to vector<32x16xbf16>
    %cst_25 = arith.constant dense<0.000000e+00> : vector<32x128xf32>
    %27 = tpu.matmul %26, %9, %cst_25 {dimension_numbers = #tpu.dot_dimension_numbers<[1], [0], [0], [1], [0, 0, 1, 1], [], []>} : vector<32x16xbf16>, vector<16x128xbf16>, vector<32x128xf32> -> vector<32x128xf32>
    %c6 = arith.constant 6 : index
    %c0_26 = arith.constant 0 : index
    %c0_27 = arith.constant 0 : index
    %28 = vector.load %arg4[%c6, %c0_26, %c0_27] : memref<7x32x16xbf16, #tpu.memory_space<vmem>>, vector<1x32x16xbf16>
    %29 = vector.shape_cast %28 : vector<1x32x16xbf16> to vector<32x16xbf16>
    %cst_28 = arith.constant dense<0.000000e+00> : vector<32x128xf32>
    %30 = tpu.matmul %29, %9, %cst_28 {dimension_numbers = #tpu.dot_dimension_numbers<[1], [0], [0], [1], [0, 0, 1, 1], [], []>} : vector<32x16xbf16>, vector<16x128xbf16>, vector<32x128xf32> -> vector<32x128xf32>
    %31 = tpu.concatenate %12, %15, %18, %21, %24, %27, %30 in 1 : vector<32x128xf32>, vector<32x128xf32>, vector<32x128xf32>, vector<32x128xf32>, vector<32x128xf32>, vector<32x128xf32>, vector<32x128xf32> -> vector<32x896xf32>
    %32 = arith.truncf %31 : vector<32x896xf32> to vector<32x896xbf16>
    %c0_29 = arith.constant 0 : index
    %c0_30 = arith.constant 0 : index
    %33 = vector.load %arg5[%c0_29, %c0_30] : memref<896x768xbf16, #tpu.memory_space<vmem>>, vector<896x768xbf16>
    %cst_31 = arith.constant dense<0.000000e+00> : vector<32x768xf32>
    %34 = tpu.matmul %32, %33, %cst_31 {dimension_numbers = #tpu.dot_dimension_numbers<[1], [0], [0], [1], [0, 0, 1, 1], [], []>} : vector<32x896xbf16>, vector<896x768xbf16>, vector<32x768xf32> -> vector<32x768xf32>
    %c0_32 = arith.constant 0 : index
    %c0_33 = arith.constant 0 : index
    %35 = vector.load %arg6[%c0_32, %c0_33] : memref<1x768xf32, #tpu.memory_space<vmem>>, vector<1x768xf32>
    %36 = vector.broadcast %35 : vector<1x768xf32> to vector<32x768xf32>
    %37 = arith.addf %34, %36 : vector<32x768xf32>
    %cst_34 = arith.constant 0.000000e+00 : f32
    %38 = vector.broadcast %cst_34 : f32 to vector<32x768xf32>
    %39 = arith.maximumf %37, %38 : vector<32x768xf32>
    %40 = arith.truncf %39 : vector<32x768xf32> to vector<32x768xbf16>
    %c0_35 = arith.constant 0 : index
    %c0_36 = arith.constant 0 : index
    %41 = vector.load %arg7[%c0_35, %c0_36] : memref<768x256xbf16, #tpu.memory_space<vmem>>, vector<768x256xbf16>
    %cst_37 = arith.constant dense<0.000000e+00> : vector<32x256xf32>
    %42 = tpu.matmul %40, %41, %cst_37 {dimension_numbers = #tpu.dot_dimension_numbers<[1], [0], [0], [1], [0, 0, 1, 1], [], []>} : vector<32x768xbf16>, vector<768x256xbf16>, vector<32x256xf32> -> vector<32x256xf32>
    %c0_38 = arith.constant 0 : index
    %c0_39 = arith.constant 0 : index
    %43 = vector.load %arg8[%c0_38, %c0_39] : memref<1x256xf32, #tpu.memory_space<vmem>>, vector<1x256xf32>
    %44 = vector.broadcast %43 : vector<1x256xf32> to vector<32x256xf32>
    %45 = arith.addf %42, %44 : vector<32x256xf32>
    %cst_40 = arith.constant 0.000000e+00 : f32
    %46 = vector.broadcast %cst_40 : f32 to vector<32x256xf32>
    %47 = arith.maximumf %45, %46 : vector<32x256xf32>
    %48 = arith.truncf %47 : vector<32x256xf32> to vector<32x256xbf16>
    %c0_41 = arith.constant 0 : index
    %c0_42 = arith.constant 0 : index
    %c0_43 = arith.constant 0 : index
    %49 = vector.load %arg9[%c0_41, %c0_42, %c0_43] : memref<2x16x32xbf16, #tpu.memory_space<vmem>>, vector<1x16x32xbf16>
    %50 = vector.shape_cast %49 : vector<1x16x32xbf16> to vector<16x32xbf16>
    %cst_44 = arith.constant dense<0.000000e+00> : vector<16x256xf32>
    %51 = tpu.matmul %50, %48, %cst_44 {dimension_numbers = #tpu.dot_dimension_numbers<[1], [0], [0], [1], [0, 0, 1, 1], [], []>} : vector<16x32xbf16>, vector<32x256xbf16>, vector<16x256xf32> -> vector<16x256xf32>
    %c1_45 = arith.constant 1 : index
    %c0_46 = arith.constant 0 : index
    %c0_47 = arith.constant 0 : index
    %52 = vector.load %arg9[%c1_45, %c0_46, %c0_47] : memref<2x16x32xbf16, #tpu.memory_space<vmem>>, vector<1x16x32xbf16>
    %53 = vector.shape_cast %52 : vector<1x16x32xbf16> to vector<16x32xbf16>
    %cst_48 = arith.constant dense<0.000000e+00> : vector<16x256xf32>
    %54 = tpu.matmul %53, %48, %cst_48 {dimension_numbers = #tpu.dot_dimension_numbers<[1], [0], [0], [1], [0, 0, 1, 1], [], []>} : vector<16x32xbf16>, vector<32x256xbf16>, vector<16x256xf32> -> vector<16x256xf32>
    %55 = arith.maximumf %51, %54 : vector<16x256xf32>
    %56 = vector.extract_strided_slice %55 {offsets = [0, 0], sizes = [16, 128], strides = [1, 1]} : vector<16x256xf32> to vector<16x128xf32>
    %57 = vector.extract_strided_slice %55 {offsets = [0, 128], sizes = [16, 128], strides = [1, 1]} : vector<16x256xf32> to vector<16x128xf32>
    %58 = arith.maximumf %56, %57 : vector<16x128xf32>
    %59 = arith.truncf %58 : vector<16x128xf32> to vector<16x128xbf16>
    %c0_49 = arith.constant 0 : index
    %c0_50 = arith.constant 0 : index
    %60 = vector.load %arg10[%c0_49, %c0_50] : memref<128x128xbf16, #tpu.memory_space<vmem>>, vector<128x128xbf16>
    %cst_51 = arith.constant dense<0.000000e+00> : vector<16x128xf32>
    %61 = tpu.matmul %59, %60, %cst_51 {dimension_numbers = #tpu.dot_dimension_numbers<[1], [0], [0], [1], [0, 0, 1, 1], [], []>} : vector<16x128xbf16>, vector<128x128xbf16>, vector<16x128xf32> -> vector<16x128xf32>
    %c0_52 = arith.constant 0 : index
    %c0_53 = arith.constant 0 : index
    %62 = vector.load %arg11[%c0_52, %c0_53] : memref<1x128xf32, #tpu.memory_space<vmem>>, vector<1x128xf32>
    %63 = vector.broadcast %62 : vector<1x128xf32> to vector<16x128xf32>
    %64 = arith.addf %61, %63 : vector<16x128xf32>
    %c0_54 = arith.constant 0 : index
    %c0_55 = arith.constant 0 : index
    %65 = vector.load %arg12[%c0_54, %c0_55] : memref<16x128xf32, #tpu.memory_space<vmem>>, vector<16x128xf32>
    tpu.vector_store %arg12[%c0_54, %c0_55], %64 {strides = array<i32>} : memref<16x128xf32, #tpu.memory_space<vmem>>, vector<16x128xf32>,
    return
  }
  func.func @transform_0(%arg0: i32) -> (i32, i32) {
    %c0_i32 = arith.constant 0 : i32
    %c0_i32_0 = arith.constant 0 : i32
    return %arg0, %c0_i32 : i32, i32
  }
  func.func @transform_1(%arg0: i32) -> (i32, i32) {
    %c0_i32 = arith.constant 0 : i32
    %c0_i32_0 = arith.constant 0 : i32
    %c0_i32_1 = arith.constant 0 : i32
    return %c0_i32, %c0_i32_0 : i32, i32
  }
  func.func @transform_2(%arg0: i32) -> (i32, i32) {
    %c0_i32 = arith.constant 0 : i32
    %c0_i32_0 = arith.constant 0 : i32
    %c0_i32_1 = arith.constant 0 : i32
    return %c0_i32, %c0_i32_0 : i32, i32
  }
  func.func @transform_3(%arg0: i32) -> (i32, i32, i32) {
    %c0_i32 = arith.constant 0 : i32
    %c0_i32_0 = arith.constant 0 : i32
    %c0_i32_1 = arith.constant 0 : i32
    %c0_i32_2 = arith.constant 0 : i32
    return %c0_i32, %c0_i32_0, %c0_i32_1 : i32, i32, i32
  }
  func.func @transform_4(%arg0: i32) -> (i32, i32) {
    %c0_i32 = arith.constant 0 : i32
    %c0_i32_0 = arith.constant 0 : i32
    %c0_i32_1 = arith.constant 0 : i32
    return %c0_i32, %c0_i32_0 : i32, i32
  }
  func.func @transform_5(%arg0: i32) -> (i32, i32) {
    %c0_i32 = arith.constant 0 : i32
    %c0_i32_0 = arith.constant 0 : i32
    %c0_i32_1 = arith.constant 0 : i32
    return %c0_i32, %c0_i32_0 : i32, i32
  }
  func.func @transform_6(%arg0: i32) -> (i32, i32) {
    %c0_i32 = arith.constant 0 : i32
    %c0_i32_0 = arith.constant 0 : i32
    %c0_i32_1 = arith.constant 0 : i32
    return %c0_i32, %c0_i32_0 : i32, i32
  }
  func.func @transform_7(%arg0: i32) -> (i32, i32) {
    %c0_i32 = arith.constant 0 : i32
    %c0_i32_0 = arith.constant 0 : i32
    %c0_i32_1 = arith.constant 0 : i32
    return %c0_i32, %c0_i32_0 : i32, i32
  }
  func.func @transform_8(%arg0: i32) -> (i32, i32, i32) {
    %c0_i32 = arith.constant 0 : i32
    %c0_i32_0 = arith.constant 0 : i32
    %c0_i32_1 = arith.constant 0 : i32
    %c0_i32_2 = arith.constant 0 : i32
    return %c0_i32, %c0_i32_0, %c0_i32_1 : i32, i32, i32
  }
  func.func @transform_9(%arg0: i32) -> (i32, i32) {
    %c0_i32 = arith.constant 0 : i32
    %c0_i32_0 = arith.constant 0 : i32
    %c0_i32_1 = arith.constant 0 : i32
    return %c0_i32, %c0_i32_0 : i32, i32
  }
  func.func @transform_10(%arg0: i32) -> (i32, i32) {
    %c0_i32 = arith.constant 0 : i32
    %c0_i32_0 = arith.constant 0 : i32
    %c0_i32_1 = arith.constant 0 : i32
    return %c0_i32, %c0_i32_0 : i32, i32
  }
  func.func @transform_11(%arg0: i32) -> (i32, i32) {
    %c0_i32 = arith.constant 0 : i32
    %c0_i32_0 = arith.constant 0 : i32
    return %arg0, %c0_i32 : i32, i32
  }
}

</mosaic_0001>

<llo_original>
// kernel: sed_forward.1
$region0: #{sed_forward.1}
  #allocation0 [shape = 'u32[]', space=smem, size = 0x4, offset = 0x4, fixed_abs, tag = 'smem constant byte address 0x4 - core index']
  #allocation1 [shape = 'u32[144,128]{1,0:T(1,128)}', space=vmem, size = 0x12000, scoped, tag = 'internal scratch']
  %s0 = inlined_call_operand.vmem [shape: f32[32,64], index: 0, kind: input, shape index: {}]
  %s1 = inlined_call_operand.hbm [shape: bf16[64,64], index: 1, kind: input, shape index: {}]
  %s2 = inlined_call_operand.hbm [shape: bf16[64,128], index: 2, kind: input, shape index: {}]
  %s3 = inlined_call_operand.vmem [shape: bf16[7,32,16], index: 3, kind: input, shape index: {}]
  %s4 = inlined_call_operand.hbm [shape: bf16[896,768], index: 4, kind: input, shape index: {}]
  %s5 = inlined_call_operand.hbm [shape: f32[1,768], index: 5, kind: input, shape index: {}]
  %s6 = inlined_call_operand.hbm [shape: bf16[768,256], index: 6, kind: input, shape index: {}]
  %s7 = inlined_call_operand.hbm [shape: f32[1,256], index: 7, kind: input, shape index: {}]
  %s8 = inlined_call_operand.hbm [shape: bf16[2,16,32], index: 8, kind: input, shape index: {}]
  %s9 = inlined_call_operand.hbm [shape: bf16[128,128], index: 9, kind: input, shape index: {}]
  %s10 = inlined_call_operand.hbm [shape: f32[1,128], index: 10, kind: input, shape index: {}]
  %s11 = inlined_call_operand.vmem [shape: f32[32,128], index: 11, kind: output, shape index: {}]
  %s12 = sld [smem:[#allocation0]]
  $region113: #{sed_forward.1} parent=0
    _
  %s14 = ssub.s32 1, %s12
  %s15 = scalar_select 0, %s14, %s12
  $region1: #{sed_forward.1} parent=0
    #allocation2 [shape = 'u8[16384]{0}', space=vmem, size = 0x4000, scoped, tag = 'input window, operand 1, single buffered']
    #allocation3 [shape = 's32[2]{0}', space=sflag, size = 0x8, scoped, tag = 'scoped memory for sed_forward.1']
    #allocation4 [shape = 'u8[16384]{0}', space=vmem, size = 0x4000, scoped, tag = 'input window, operand 2, single buffered']
    #allocation5 [shape = 's32[1]{0}', space=sflag, size = 0x4, scoped, tag = 'scoped memory for sed_forward.1']
    #allocation6 [shape = 'u8[1376256]{0}', space=vmem, size = 0x150000, scoped, tag = 'input window, operand 4, single buffered']
    #allocation7 [shape = 'u8[3072]{0}', space=vmem, size = 0xc00, scoped, tag = 'input window, operand 5, single buffered']
    #allocation8 [shape = 's32[1]{0}', space=sflag, size = 0x4, scoped, tag = 'scoped memory for sed_forward.1']
    #allocation9 [shape = 'u8[393216]{0}', space=vmem, size = 0x60000, scoped, tag = 'input window, operand 6, single buffered']
    #allocation10 [shape = 'u8[1024]{0}', space=vmem, size = 0x400, scoped, tag = 'input window, operand 7, single buffered']
    #allocation11 [shape = 's32[1]{0}', space=sflag, size = 0x4, scoped, tag = 'scoped memory for sed_forward.1']
    #allocation12 [shape = 'u8[8192]{0}', space=vmem, size = 0x2000, scoped, tag = 'input window, operand 8, single buffered']
    #allocation13 [shape = 'u8[32768]{0}', space=vmem, size = 0x8000, scoped, tag = 'input window, operand 9, single buffered']
    #allocation14 [shape = 's32[1]{0}', space=sflag, size = 0x4, scoped, tag = 'scoped memory for sed_forward.1']
    #allocation15 [shape = 'u8[512]{0}', space=vmem, size = 0x400, scoped, tag = 'input window, operand 10, single buffered']
    %16 = vsyncpa [#allocation3], 0
    %17 = vsyncpa [#allocation5], 0
    %18 = vsyncpa [#allocation8], 0
    %19 = vsyncpa [#allocation11], 0
    %20 = vsyncpa [#allocation14], 0
    loop: start=0, step=1, limit=4
    $region2: #{sed_forward.1} parent=1 // loop_pre_header
      _
    $region3: #{sed_forward.1} parent=1 // loop_header
      %s22 = sphi 0, %s26
      %p23 = scmp.ge.s32.totalorder %s22, 4
      %s32 = sphi 0, %s34
      %s35 = sphi 0, %s32
      %s36 = sphi 0, %s35
      %s52 = sphi 0, %s36
      %s56 = sphi 0, %s56
      %s58 = sphi 0, %s56
      %s59 = sphi 0, %s58
      %s73 = sphi 0, %s59
      %s77 = sphi 0, %s77
      %s79 = sphi 0, %s77
      %s80 = sphi 0, %s79
      %s94 = sphi 0, %s80
      %s98 = sphi 0, %s98
      %s100 = sphi 0, %s98
      %s101 = sphi 0, %s100
      %s115 = sphi 0, %s101
      %s119 = sphi 0, %s119
      %s121 = sphi 0, %s119
      %s122 = sphi 0, %s121
      %s136 = sphi 0, %s122
      %s140 = sphi 0, %s140
      %s142 = sphi 0, %s140
      %s143 = sphi 0, %s142
      %s157 = sphi 0, %s143
      %s161 = sphi 0, %s161
      %s163 = sphi 0, %s161
      %s164 = sphi 0, %s163
      %s178 = sphi 0, %s164
      %s182 = sphi 0, %s182
      %s184 = sphi 0, %s182
      %s185 = sphi 0, %s184
      %s199 = sphi 0, %s185
      %s203 = sphi 0, %s203
      %s205 = sphi 0, %s203
      %s206 = sphi 0, %s205
      %s220 = sphi 0, %s206
      %s224 = sphi 0, %s224
      %s226 = sphi 0, %s224
      %s227 = sphi 0, %s226
      %s241 = sphi 0, %s227
      %s245 = sphi 0, %s245
      %s247 = sphi 0, %s245
      %s248 = sphi 0, %s247
      %s262 = sphi 0, %s248
      %s268 = sphi 0, %s270
      %s271 = sphi 0, %s268
      %s272 = sphi 0, %s271
      %s288 = sphi 0, %s272
    $region4: #{sed_forward.1} parent=1 // loop_header_branch
      %25 = sbr.rel (%p23) target = $region8
    $region5: #{sed_forward.1} parent=1 // loop_body
      %s27 = ssub.s32 %s22, 1
      %s28 = ssub.s32 %s22, 2
      %s29 = sadd.s32 %s22, 1
      %s30 = ssub.s32 %s22, %s29
      %p31 = scmp.eq.s32.totalorder %s30, 0
      %s33 = sadd.s32 %s32, 1
      %s34 = scalar_select %p31, %s32, %s33
      %p37 = pneg %p31
      %p38 = scmp.eq.s32.totalorder %s22, 1
      %p39 = por %p37, %p38
      %p40 = scmp.ne.s32.totalorder %s32, %s35
      %p41 = scmp.eq.s32.totalorder %s22, 0
      %p42 = por %p40, %p41
      %p43 = scmp.ne.s32.totalorder %s32, %s35
      %p44 = scmp.eq.s32.totalorder %s27, 1
      %p45 = por %p43, %p44
      %p46 = scmp.ne.s32.totalorder %s35, %s36
      %p47 = scmp.eq.s32.totalorder %s27, 0
      %p48 = por %p46, %p47
      %p49 = scmp.ne.s32.totalorder %s35, %s36
      %p50 = scmp.eq.s32.totalorder %s28, 1
      %p51 = por %p49, %p50
      %p53 = scmp.ne.s32.totalorder %s36, %s52
      %p54 = scmp.eq.s32.totalorder %s28, 0
      %p55 = por %p53, %p54
      %s57 = sadd.s32 %s56, 1
      %p60 = scmp.eq.s32.totalorder %s22, 1
      %p61 = scmp.ne.s32.totalorder %s56, %s58
      %p62 = scmp.eq.s32.totalorder %s22, 0
      %p63 = por %p61, %p62
      %p64 = scmp.ne.s32.totalorder %s56, %s58
      %p65 = scmp.eq.s32.totalorder %s27, 1
      %p66 = por %p64, %p65
      %p67 = scmp.ne.s32.totalorder %s58, %s59
      %p68 = scmp.eq.s32.totalorder %s27, 0
      %p69 = por %p67, %p68
      %p70 = scmp.ne.s32.totalorder %s58, %s59
      %p71 = scmp.eq.s32.totalorder %s28, 1
      %p72 = por %p70, %p71
      %p74 = scmp.ne.s32.totalorder %s59, %s73
      %p75 = scmp.eq.s32.totalorder %s28, 0
      %p76 = por %p74, %p75
      %s78 = sadd.s32 %s77, 1
      %p81 = scmp.eq.s32.totalorder %s22, 1
      %p82 = scmp.ne.s32.totalorder %s77, %s79
      %p83 = scmp.eq.s32.totalorder %s22, 0
      %p84 = por %p82, %p83
      %p85 = scmp.ne.s32.totalorder %s77, %s79
      %p86 = scmp.eq.s32.totalorder %s27, 1
      %p87 = por %p85, %p86
      %p88 = scmp.ne.s32.totalorder %s79, %s80
      %p89 = scmp.eq.s32.totalorder %s27, 0
      %p90 = por %p88, %p89
      %p91 = scmp.ne.s32.totalorder %s79, %s80
      %p92 = scmp.eq.s32.totalorder %s28, 1
      %p93 = por %p91, %p92
      %p95 = scmp.ne.s32.totalorder %s80, %s94
      %p96 = scmp.eq.s32.totalorder %s28, 0
      %p97 = por %p95, %p96
      %s99 = sadd.s32 %s98, 1
      %p102 = scmp.eq.s32.totalorder %s22, 1
      %p103 = scmp.ne.s32.totalorder %s98, %s100
      %p104 = scmp.eq.s32.totalorder %s22, 0
      %p105 = por %p103, %p104
      %p106 = scmp.ne.s32.totalorder %s98, %s100
      %p107 = scmp.eq.s32.totalorder %s27, 1
      %p108 = por %p106, %p107
      %p109 = scmp.ne.s32.totalorder %s100, %s101
      %p110 = scmp.eq.s32.totalorder %s27, 0
      %p111 = por %p109, %p110
      %p112 = scmp.ne.s32.totalorder %s100, %s101
      %p113 = scmp.eq.s32.totalorder %s28, 1
      %p114 = por %p112, %p113
      %p116 = scmp.ne.s32.totalorder %s101, %s115
      %p117 = scmp.eq.s32.totalorder %s28, 0
      %p118 = por %p116, %p117
      %s120 = sadd.s32 %s119, 1
      %p123 = scmp.eq.s32.totalorder %s22, 1
      %p124 = scmp.ne.s32.totalorder %s119, %s121
      %p125 = scmp.eq.s32.totalorder %s22, 0
      %p126 = por %p124, %p125
      %p127 = scmp.ne.s32.totalorder %s119, %s121
      %p128 = scmp.eq.s32.totalorder %s27, 1
      %p129 = por %p127, %p128
      %p130 = scmp.ne.s32.totalorder %s121, %s122
      %p131 = scmp.eq.s32.totalorder %s27, 0
      %p132 = por %p130, %p131
      %p133 = scmp.ne.s32.totalorder %s121, %s122
      %p134 = scmp.eq.s32.totalorder %s28, 1
      %p135 = por %p133, %p134
      %p137 = scmp.ne.s32.totalorder %s122, %s136
      %p138 = scmp.eq.s32.totalorder %s28, 0
      %p139 = por %p137, %p138
      %s141 = sadd.s32 %s140, 1
      %p144 = scmp.eq.s32.totalorder %s22, 1
      %p145 = scmp.ne.s32.totalorder %s140, %s142
      %p146 = scmp.eq.s32.totalorder %s22, 0
      %p147 = por %p145, %p146
      %p148 = scmp.ne.s32.totalorder %s140, %s142
      %p149 = scmp.eq.s32.totalorder %s27, 1
      %p150 = por %p148, %p149
      %p151 = scmp.ne.s32.totalorder %s142, %s143
      %p152 = scmp.eq.s32.totalorder %s27, 0
      %p153 = por %p151, %p152
      %p154 = scmp.ne.s32.totalorder %s142, %s143
      %p155 = scmp.eq.s32.totalorder %s28, 1
      %p156 = por %p154, %p155
      %p158 = scmp.ne.s32.totalorder %s143, %s157
      %p159 = scmp.eq.s32.totalorder %s28, 0
      %p160 = por %p158, %p159
      %s162 = sadd.s32 %s161, 1
      %p165 = scmp.eq.s32.totalorder %s22, 1
      %p166 = scmp.ne.s32.totalorder %s161, %s163
      %p167 = scmp.eq.s32.totalorder %s22, 0
      %p168 = por %p166, %p167
      %p169 = scmp.ne.s32.totalorder %s161, %s163
      %p170 = scmp.eq.s32.totalorder %s27, 1
      %p171 = por %p169, %p170
      %p172 = scmp.ne.s32.totalorder %s163, %s164
      %p173 = scmp.eq.s32.totalorder %s27, 0
      %p174 = por %p172, %p173
      %p175 = scmp.ne.s32.totalorder %s163, %s164
      %p176 = scmp.eq.s32.totalorder %s28, 1
      %p177 = por %p175, %p176
      %p179 = scmp.ne.s32.totalorder %s164, %s178
      %p180 = scmp.eq.s32.totalorder %s28, 0
      %p181 = por %p179, %p180
      %s183 = sadd.s32 %s182, 1
      %p186 = scmp.eq.s32.totalorder %s22, 1
      %p187 = scmp.ne.s32.totalorder %s182, %s184
      %p188 = scmp.eq.s32.totalorder %s22, 0
      %p189 = por %p187, %p188
      %p190 = scmp.ne.s32.totalorder %s182, %s184
      %p191 = scmp.eq.s32.totalorder %s27, 1
      %p192 = por %p190, %p191
      %p193 = scmp.ne.s32.totalorder %s184, %s185
      %p194 = scmp.eq.s32.totalorder %s27, 0
      %p195 = por %p193, %p194
      %p196 = scmp.ne.s32.totalorder %s184, %s185
      %p197 = scmp.eq.s32.totalorder %s28, 1
      %p198 = por %p196, %p197
      %p200 = scmp.ne.s32.totalorder %s185, %s199
      %p201 = scmp.eq.s32.totalorder %s28, 0
      %p202 = por %p200, %p201
      %s204 = sadd.s32 %s203, 1
      %p207 = scmp.eq.s32.totalorder %s22, 1
      %p208 = scmp.ne.s32.totalorder %s203, %s205
      %p209 = scmp.eq.s32.totalorder %s22, 0
      %p210 = por %p208, %p209
      %p211 = scmp.ne.s32.totalorder %s203, %s205
      %p212 = scmp.eq.s32.totalorder %s27, 1
      %p213 = por %p211, %p212
      %p214 = scmp.ne.s32.totalorder %s205, %s206
      %p215 = scmp.eq.s32.totalorder %s27, 0
      %p216 = por %p214, %p215
      %p217 = scmp.ne.s32.totalorder %s205, %s206
      %p218 = scmp.eq.s32.totalorder %s28, 1
      %p219 = por %p217, %p218
      %p221 = scmp.ne.s32.totalorder %s206, %s220
      %p222 = scmp.eq.s32.totalorder %s28, 0
      %p223 = por %p221, %p222
      %s225 = sadd.s32 %s224, 1
      %p228 = scmp.eq.s32.totalorder %s22, 1
      %p229 = scmp.ne.s32.totalorder %s224, %s226
      %p230 = scmp.eq.s32.totalorder %s22, 0
      %p231 = por %p229, %p230
      %p232 = scmp.ne.s32.totalorder %s224, %s226
      %p233 = scmp.eq.s32.totalorder %s27, 1
      %p234 = por %p232, %p233
      %p235 = scmp.ne.s32.totalorder %s226, %s227
      %p236 = scmp.eq.s32.totalorder %s27, 0
      %p237 = por %p235, %p236
      %p238 = scmp.ne.s32.totalorder %s226, %s227
      %p239 = scmp.eq.s32.totalorder %s28, 1
      %p240 = por %p238, %p239
      %p242 = scmp.ne.s32.totalorder %s227, %s241
      %p243 = scmp.eq.s32.totalorder %s28, 0
      %p244 = por %p242, %p243
      %s246 = sadd.s32 %s245, 1
      %p249 = scmp.eq.s32.totalorder %s22, 1
      %p250 = scmp.ne.s32.totalorder %s245, %s247
      %p251 = scmp.eq.s32.totalorder %s22, 0
      %p252 = por %p250, %p251
      %p253 = scmp.ne.s32.totalorder %s245, %s247
      %p254 = scmp.eq.s32.totalorder %s27, 1
      %p255 = por %p253, %p254
      %p256 = scmp.ne.s32.totalorder %s247, %s248
      %p257 = scmp.eq.s32.totalorder %s27, 0
      %p258 = por %p256, %p257
      %p259 = scmp.ne.s32.totalorder %s247, %s248
      %p260 = scmp.eq.s32.totalorder %s28, 1
      %p261 = por %p259, %p260
      %p263 = scmp.ne.s32.totalorder %s248, %s262
      %p264 = scmp.eq.s32.totalorder %s28, 0
      %p265 = por %p263, %p264
      %s266 = ssub.s32 %s22, %s29
      %p267 = scmp.eq.s32.totalorder %s266, 0
      %s269 = sadd.s32 %s268, 1
      %s270 = scalar_select %p267, %s268, %s269
      %p273 = pneg %p267
      %p274 = scmp.eq.s32.totalorder %s22, 1
      %p275 = por %p273, %p274
      %p276 = scmp.ne.s32.totalorder %s268, %s271
      %p277 = scmp.eq.s32.totalorder %s22, 0
      %p278 = por %p276, %p277
      %p279 = scmp.ne.s32.totalorder %s268, %s271
      %p280 = scmp.eq.s32.totalorder %s27, 1
      %p281 = por %p279, %p280
      %p282 = scmp.ne.s32.totalorder %s271, %s272
      %p283 = scmp.eq.s32.totalorder %s27, 0
      %p284 = por %p282, %p283
      %p285 = scmp.ne.s32.totalorder %s271, %s272
      %p286 = scmp.eq.s32.totalorder %s28, 1
      %p287 = por %p285, %p286
      %p289 = scmp.ne.s32.totalorder %s272, %s288
      %p290 = scmp.eq.s32.totalorder %s28, 0
      %p291 = por %p289, %p290
      %p292 = scmp.le.s32.totalorder 1, %s22
      %p293 = scmp.lt.s32.totalorder %s22, 3
      %p294 = pnand %p292, %p293
      %p295 = pneg %p294
      // Predicated region
      $region9: #{sed_forward.1} parent=5 // pred_check
        _
      $region10: #{sed_forward.1} parent=5 // pred_check_branch
        %297 = sbr.rel (%p294) target = $region12
      $region11: #{sed_forward.1} parent=5 // pred_region
        %s298 = ssub.s32 %s22, 1
        // Predicated region
        $region13: #{sed_forward.1} parent=11 // pred_check
          %p299 = pneg %p69
        $region14: #{sed_forward.1} parent=11 // pred_check_branch
          %301 = sbr.rel (%p299) target = $region16
        $region15: #{sed_forward.1} parent=11 // pred_region
          %s303 = ssub.s32 512, 512
          %304 = vsyncadd [#allocation3], %s303
          %s305 = sshll.u32 [#allocation2], 4
          %s306 = int_to_ptr.vmem [resolvable:$true] %s305
          %311 = dma.hbm_to_vmem [thread:$0]  %s1, 512, %s306, [#allocation3], 64, 64, 4
        $region16: #{sed_forward.1} parent=11 // pred_fallthru
          _
        // Predicated region
        $region17: #{sed_forward.1} parent=11 // pred_check
          %p312 = pneg %p90
        $region18: #{sed_forward.1} parent=11 // pred_check_branch
          %314 = sbr.rel (%p312) target = $region20
        $region19: #{sed_forward.1} parent=11 // pred_region
          %s316 = ssub.s32 512, 512
          %317 = vsyncadd [#allocation5], %s316
          %s318 = sshll.u32 [#allocation4], 4
          %s319 = int_to_ptr.vmem [resolvable:$true] %s318
          %324 = dma.hbm_to_vmem [thread:$0]  %s2, 512, %s319, [#allocation5], 64, 64, 4
        $region20: #{sed_forward.1} parent=11 // pred_fallthru
          _
        // Predicated region
        $region21: #{sed_forward.1} parent=11 // pred_check
          %p325 = pneg %p111
        $region22: #{sed_forward.1} parent=11 // pred_check_branch
          %327 = sbr.rel (%p325) target = $region24
        $region23: #{sed_forward.1} parent=11 // pred_region
          _
        $region24: #{sed_forward.1} parent=11 // pred_fallthru
          _
        // Predicated region
        $region25: #{sed_forward.1} parent=11 // pred_check
          %p328 = pneg %p132
        $region26: #{sed_forward.1} parent=11 // pred_check_branch
          %330 = sbr.rel (%p328) target = $region28
        $region27: #{sed_forward.1} parent=11 // pred_region
          %s332 = ssub.s32 43008, 43008
          %333 = vsyncadd [#allocation5], %s332
          %s334 = sshll.u32 [#allocation6], 4
          %s335 = int_to_ptr.vmem [resolvable:$true] %s334
          %340 = dma.hbm_to_vmem [thread:$0]  %s4, 43008, %s335, [#allocation5], 384, 384, 24
        $region28: #{sed_forward.1} parent=11 // pred_fallthru
          _
        // Predicated region
        $region29: #{sed_forward.1} parent=11 // pred_check
          %p341 = pneg %p153
        $region30: #{sed_forward.1} parent=11 // pred_check_branch
          %343 = sbr.rel (%p341) target = $region32
        $region31: #{sed_forward.1} parent=11 // pred_region
          %s345 = ssub.s32 96, 96
          %346 = vsyncadd [#allocation8], %s345
          %s348 = sshll.u32 [#allocation7], 4
          %s349 = int_to_ptr.vmem [resolvable:$true] %s348
          %351 = dma.hbm_to_vmem [thread:$0]  %s5, 96, %s349, [#allocation8]
        $region32: #{sed_forward.1} parent=11 // pred_fallthru
          _
        // Predicated region
        $region33: #{sed_forward.1} parent=11 // pred_check
          %p352 = pneg %p174
        $region34: #{sed_forward.1} parent=11 // pred_check_branch
          %354 = sbr.rel (%p352) target = $region36
        $region35: #{sed_forward.1} parent=11 // pred_region
          %s356 = ssub.s32 12288, 12288
          %357 = vsyncadd [#allocation8], %s356
          %s358 = sshll.u32 [#allocation9], 4
          %s359 = int_to_ptr.vmem [resolvable:$true] %s358
          %364 = dma.hbm_to_vmem [thread:$0]  %s6, 12288, %s359, [#allocation8], 128, 128, 8
        $region36: #{sed_forward.1} parent=11 // pred_fallthru
          _
        // Predicated region
        $region37: #{sed_forward.1} parent=11 // pred_check
          %p365 = pneg %p195
        $region38: #{sed_forward.1} parent=11 // pred_check_branch
          %367 = sbr.rel (%p365) target = $region40
        $region39: #{sed_forward.1} parent=11 // pred_region
          %s369 = ssub.s32 32, 32
          %370 = vsyncadd [#allocation11], %s369
          %s372 = sshll.u32 [#allocation10], 4
          %s373 = int_to_ptr.vmem [resolvable:$true] %s372
          %375 = dma.hbm_to_vmem [thread:$0]  %s7, 32, %s373, [#allocation11]
        $region40: #{sed_forward.1} parent=11 // pred_fallthru
          _
        // Predicated region
        $region41: #{sed_forward.1} parent=11 // pred_check
          %p376 = pneg %p216
        $region42: #{sed_forward.1} parent=11 // pred_check_branch
          %378 = sbr.rel (%p376) target = $region44
        $region43: #{sed_forward.1} parent=11 // pred_region
          %s380 = ssub.s32 256, 256
          %381 = vsyncadd [#allocation11], %s380
          %s382 = sshll.u32 [#allocation12], 4
          %s383 = int_to_ptr.vmem [resolvable:$true] %s382
          %388 = dma.hbm_to_vmem [thread:$0]  %s8, 256, %s383, [#allocation11], 64, 64, 4
        $region44: #{sed_forward.1} parent=11 // pred_fallthru
          _
        // Predicated region
        $region45: #{sed_forward.1} parent=11 // pred_check
          %p389 = pneg %p237
        $region46: #{sed_forward.1} parent=11 // pred_check_branch
          %391 = sbr.rel (%p389) target = $region48
        $region47: #{sed_forward.1} parent=11 // pred_region
          %s393 = ssub.s32 1024, 1024
          %394 = vsyncadd [#allocation14], %s393
          %s395 = sshll.u32 [#allocation13], 4
          %s396 = int_to_ptr.vmem [resolvable:$true] %s395
          %401 = dma.hbm_to_vmem [thread:$0]  %s9, 1024, %s396, [#allocation14], 64, 64, 4
        $region48: #{sed_forward.1} parent=11 // pred_fallthru
          _
        // Predicated region
        $region49: #{sed_forward.1} parent=11 // pred_check
          %p402 = pneg %p258
        $region50: #{sed_forward.1} parent=11 // pred_check_branch
          %404 = sbr.rel (%p402) target = $region52
        $region51: #{sed_forward.1} parent=11 // pred_region
          %s406 = ssub.s32 16, 16
          %407 = vsyncadd [#allocation14], %s406
          %s409 = sshll.u32 [#allocation15], 4
          %s410 = int_to_ptr.vmem [resolvable:$true] %s409
          %412 = dma.hbm_to_vmem [thread:$0]  %s10, 16, %s410, [#allocation14]
        $region52: #{sed_forward.1} parent=11 // pred_fallthru
          _
      $region12: #{sed_forward.1} parent=5 // pred_fallthru
        _
      %p413 = scmp.lt.s32.totalorder %s22, 2
      // Predicated region
      $region53: #{sed_forward.1} parent=5 // pred_check
        %p414 = pneg %p413
      $region54: #{sed_forward.1} parent=5 // pred_check_branch
        %416 = sbr.rel (%p414) target = $region56
      $region55: #{sed_forward.1} parent=5 // pred_region
        // Predicated region
        $region57: #{sed_forward.1} parent=55 // pred_check
          %p417 = pneg %p42
        $region58: #{sed_forward.1} parent=55 // pred_check_branch
          %419 = sbr.rel (%p417) target = $region60
        $region59: #{sed_forward.1} parent=55 // pred_region
          %s420 = smul.u32 2, %s22
          %p421 = scmp.lt.s32.totalorder %s420, 3
          %s422 = scalar_select %p421, %s420, 3
          %s423 = smul.addr %s422, 8
          %s424 = scalar_lea.vmem %s0, %s423
          %s425 = smul.u32 2, %s22
        $region60: #{sed_forward.1} parent=55 // pred_fallthru
          _
      $region56: #{sed_forward.1} parent=5 // pred_fallthru
        _
      %p426 = scmp.le.s32.totalorder 1, %s22
      %p427 = scmp.lt.s32.totalorder %s22, 3
      %p428 = pnand %p426, %p427
      %p429 = pneg %p428
      // Predicated region
      $region61: #{sed_forward.1} parent=5 // pred_check
        _
      $region62: #{sed_forward.1} parent=5 // pred_check_branch
        %431 = sbr.rel (%p428) target = $region64
      $region63: #{sed_forward.1} parent=5 // pred_region
        %s432 = ssub.s32 %s22, 1
        // Predicated region
        $region65: #{sed_forward.1} parent=63 // pred_check
          %p433 = pneg %p69
        $region66: #{sed_forward.1} parent=63 // pred_check_branch
          %435 = sbr.rel (%p433) target = $region68
        $region67: #{sed_forward.1} parent=63 // pred_region
          %436 = dma.done [#allocation3], 512
        $region68: #{sed_forward.1} parent=63 // pred_fallthru
          _
        // Predicated region
        $region69: #{sed_forward.1} parent=63 // pred_check
          %p437 = pneg %p90
        $region70: #{sed_forward.1} parent=63 // pred_check_branch
          %439 = sbr.rel (%p437) target = $region72
        $region71: #{sed_forward.1} parent=63 // pred_region
          %440 = dma.done [#allocation5], 512
        $region72: #{sed_forward.1} parent=63 // pred_fallthru
          _
        // Predicated region
        $region73: #{sed_forward.1} parent=63 // pred_check
          %p441 = pneg %p132
        $region74: #{sed_forward.1} parent=63 // pred_check_branch
          %443 = sbr.rel (%p441) target = $region76
        $region75: #{sed_forward.1} parent=63 // pred_region
          %444 = dma.done [#allocation5], 43008
        $region76: #{sed_forward.1} parent=63 // pred_fallthru
          _
        // Predicated region
        $region77: #{sed_forward.1} parent=63 // pred_check
          %p445 = pneg %p153
        $region78: #{sed_forward.1} parent=63 // pred_check_branch
          %447 = sbr.rel (%p445) target = $region80
        $region79: #{sed_forward.1} parent=63 // pred_region
          %448 = dma.done [#allocation8], 96
        $region80: #{sed_forward.1} parent=63 // pred_fallthru
          _
        // Predicated region
        $region81: #{sed_forward.1} parent=63 // pred_check
          %p449 = pneg %p174
        $region82: #{sed_forward.1} parent=63 // pred_check_branch
          %451 = sbr.rel (%p449) target = $region84
        $region83: #{sed_forward.1} parent=63 // pred_region
          %452 = dma.done [#allocation8], 12288
        $region84: #{sed_forward.1} parent=63 // pred_fallthru
          _
        // Predicated region
        $region85: #{sed_forward.1} parent=63 // pred_check
          %p453 = pneg %p195
        $region86: #{sed_forward.1} parent=63 // pred_check_branch
          %455 = sbr.rel (%p453) target = $region88
        $region87: #{sed_forward.1} parent=63 // pred_region
          %456 = dma.done [#allocation11], 32
        $region88: #{sed_forward.1} parent=63 // pred_fallthru
          _
        // Predicated region
        $region89: #{sed_forward.1} parent=63 // pred_check
          %p457 = pneg %p216
        $region90: #{sed_forward.1} parent=63 // pred_check_branch
          %459 = sbr.rel (%p457) target = $region92
        $region91: #{sed_forward.1} parent=63 // pred_region
          %460 = dma.done [#allocation11], 256
        $region92: #{sed_forward.1} parent=63 // pred_fallthru
          _
        // Predicated region
        $region93: #{sed_forward.1} parent=63 // pred_check
          %p461 = pneg %p237
        $region94: #{sed_forward.1} parent=63 // pred_check_branch
          %463 = sbr.rel (%p461) target = $region96
        $region95: #{sed_forward.1} parent=63 // pred_region
          %464 = dma.done [#allocation14], 1024
        $region96: #{sed_forward.1} parent=63 // pred_fallthru
          _
        // Predicated region
        $region97: #{sed_forward.1} parent=63 // pred_check
          %p465 = pneg %p258
        $region98: #{sed_forward.1} parent=63 // pred_check_branch
          %467 = sbr.rel (%p465) target = $region100
        $region99: #{sed_forward.1} parent=63 // pred_region
          %468 = dma.done [#allocation14], 16
        $region100: #{sed_forward.1} parent=63 // pred_fallthru
          _
        %s469 = smul.u32 2, %s27
        %p470 = scmp.lt.s32.totalorder %s469, 3
        %s471 = scalar_select %p470, %s469, 3
        %s472 = smul.addr %s471, 8
        %s473 = scalar_lea.vmem %s0, %s472
        %p474 = pneg %p48
        %p475 = pneg %p45
        %p476 = pneg %p69
        %p477 = pneg %p66
        %p478 = pneg %p90
        %p479 = pneg %p87
        %p480 = pneg %p111
        %p481 = pneg %p108
        %p482 = pneg %p132
        %p483 = pneg %p129
        %p484 = pneg %p153
        %p485 = pneg %p150
        %p486 = pneg %p174
        %p487 = pneg %p171
        %p488 = pneg %p195
        %p489 = pneg %p192
        %p490 = pneg %p216
        %p491 = pneg %p213
        %p492 = pneg %p237
        %p493 = pneg %p234
        %p494 = pneg %p258
        %p495 = pneg %p255
        %p496 = pneg %p284
        %p497 = pneg %p281
        %s498 = smul.u32 2, %s27
        %p499 = scmp.lt.s32.totalorder %s498, 3
        %s500 = scalar_select %p499, %s498, 3
        %s501 = smul.addr %s500, 8
        %s502 = scalar_lea.vmem %s11, %s501
        %s503 = smul.u32 2, %s27
        %p504 = scmp.lt.s32.totalorder %s503, 3
        %s505 = scalar_select %p504, %s503, 3
        %s506 = smul.addr %s505, 8
        %s507 = scalar_lea.vmem %s0, %s506
        %s508 = smul.u32 2, %s27
        %s509 = smul.u32 2, %s27
        %p510 = scmp.lt.s32.totalorder %s509, 3
        %s511 = scalar_select %p510, %s509, 3
        %s512 = smul.addr %s511, 8
        %s513 = scalar_lea.vmem %s11, %s512
        %s514 = smul.u32 2, %s27
        %v516 = vld [vmem:[%s507] sm:$0xff]
        %v517 = vld [vmem:[%s507 + $0x8] sm:$0xff]
        %v518 = vpack.c.bf16 %v517, %v516
        %v519 = vld [vmem:[#allocation2] sm:$0xf]
        %v520 = vld [vmem:[#allocation2 + $0x4] sm:$0xf]
        %v521 = vld [vmem:[#allocation2 + $0x8] sm:$0xf]
        %v522 = vld [vmem:[#allocation2 + $0xc] sm:$0xf]
        %v523 = vld [vmem:[#allocation2 + $0x10] sm:$0xf]
        %v524 = vld [vmem:[#allocation2 + $0x14] sm:$0xf]
        %v525 = vld [vmem:[#allocation2 + $0x18] sm:$0xf]
        %v526 = vld [vmem:[#allocation2 + $0x1c] sm:$0xf]
        %v535 = vunpack.c.l.b16 %v519
        %v536 = vunpack.c.l.b16 %v520
        %v537 = vunpack.c.l.b16 %v521
        %v538 = vunpack.c.l.b16 %v522
        %v539 = vunpack.c.l.b16 %v523
        %v540 = vunpack.c.l.b16 %v524
        %v541 = vunpack.c.l.b16 %v525
        %v542 = vunpack.c.l.b16 %v526
        %v543 = vpack.c.b16 %v536, %v535
        %v544 = vpack.c.b16 %v538, %v537
        %v545 = vpack.c.b16 %v540, %v539
        %v546 = vpack.c.b16 %v542, %v541
        %vm551 = vcmask 523264
        %v553 = vsel %vm551, %v518, 0
        %555 = vmatprep.subr.bf16.mxu0 0
        %556 = vmatpush1.bf16.msra.mxu0 %v543
        %557 = vmatprep.subr.bf16.mxu0 0
        %558 = vmatpush1.bf16.msra.mxu0 %v544
        %559 = vmatprep.subr.bf16.mxu0 0
        %560 = vmatpush1.bf16.msra.mxu0 %v545
        %561 = vmatprep.subr.bf16.mxu0 0
        %562 = vmatpush1.bf16.msra.mxu0 %v546
        %563 = vmatprep.subr.bf16.mxu0 0
        %564 = vmatpush1.bf16.msra.mxu0 0
        %565 = vmatprep.subr.bf16.mxu0 0
        %566 = vmatpush1.bf16.msra.mxu0 0
        %567 = vmatprep.subr.bf16.mxu0 0
        %568 = vmatpush1.bf16.msra.mxu0 0
        %569 = vmatprep.subr.bf16.mxu0 0
        %570 = vmatpush1.bf16.msra.mxu0 0
        %571 = vmatprep.subr.bf16.mxu0 0
        %572 = vmatpush1.bf16.msra.mxu0 0
        %573 = vmatprep.subr.bf16.mxu0 0
        %574 = vmatpush1.bf16.msra.mxu0 0
        %575 = vmatprep.subr.bf16.mxu0 0
        %576 = vmatpush1.bf16.msra.mxu0 0
        %577 = vmatprep.subr.bf16.mxu0 0
        %578 = vmatpush1.bf16.msra.mxu0 0
        %579 = vmatprep.subr.bf16.mxu0 0
        %580 = vmatpush1.bf16.msra.mxu0 0
        %581 = vmatprep.subr.bf16.mxu0 0
        %582 = vmatpush1.bf16.msra.mxu0 0
        %583 = vmatprep.subr.bf16.mxu0 0
        %584 = vmatpush1.bf16.msra.mxu0 0
        %585 = vmatprep.subr.bf16.mxu0 0
        %586 = vmatpush1.bf16.msra.mxu0 0
        %587 = vmatprep.mubr.bf16.mxu0 0
        %588 = vmatmul.mubr.bf16.gmra.mrb[0].mxu0 %v553
        %v589 = vpop.f32.mrb[0].mxu0
        %v590 = vadd.f32 0.0, %v589
        %v591 = vpop.f32.mrb[0].mxu0
        %v592 = vpop.f32.mrb[0].mxu0
        %v593 = vadd.f32 0.0, %v592
        %v594 = vpop.f32.mrb[0].mxu0
        %595 = vdwg.mxu0
        %v596 = vmax.f32 %v590, 0.0
        %v597 = vmax.f32 %v593, 0.0
        %v598 = vpack.c.bf16 %v597, %v596
        %v599 = vld [vmem:[#allocation4] sm:$0xf]
        %v600 = vld [vmem:[#allocation4 + $0x4] sm:$0xf]
        %v601 = vld [vmem:[#allocation4 + $0x8] sm:$0xf]
        %v602 = vld [vmem:[#allocation4 + $0xc] sm:$0xf]
        %v603 = vld [vmem:[#allocation4 + $0x10] sm:$0xf]
        %v604 = vld [vmem:[#allocation4 + $0x14] sm:$0xf]
        %v605 = vld [vmem:[#allocation4 + $0x18] sm:$0xf]
        %v606 = vld [vmem:[#allocation4 + $0x1c] sm:$0xf]
        %v615 = vunpack.c.l.b16 %v599
        %v616 = vunpack.c.l.b16 %v600
        %v617 = vunpack.c.l.b16 %v601
        %v618 = vunpack.c.l.b16 %v602
        %v619 = vunpack.c.l.b16 %v603
        %v620 = vunpack.c.l.b16 %v604
        %v621 = vunpack.c.l.b16 %v605
        %v622 = vunpack.c.l.b16 %v606
        %v623 = vpack.c.b16 %v616, %v615
        %v624 = vpack.c.b16 %v618, %v617
        %v625 = vpack.c.b16 %v620, %v619
        %v626 = vpack.c.b16 %v622, %v621
        %v632 = vsel %vm551, %v598, 0
        %634 = vmatprep.subr.bf16.mxu0 0
        %635 = vmatpush1.bf16.msra.mxu0 %v623
        %636 = vmatprep.subr.bf16.mxu0 0
        %637 = vmatpush1.bf16.msra.mxu0 %v624
        %638 = vmatprep.subr.bf16.mxu0 0
        %639 = vmatpush1.bf16.msra.mxu0 %v625
        %640 = vmatprep.subr.bf16.mxu0 0
        %641 = vmatpush1.bf16.msra.mxu0 %v626
        %642 = vmatprep.subr.bf16.mxu0 0
        %643 = vmatpush1.bf16.msra.mxu0 0
        %644 = vmatprep.subr.bf16.mxu0 0
        %645 = vmatpush1.bf16.msra.mxu0 0
        %646 = vmatprep.subr.bf16.mxu0 0
        %647 = vmatpush1.bf16.msra.mxu0 0
        %648 = vmatprep.subr.bf16.mxu0 0
        %649 = vmatpush1.bf16.msra.mxu0 0
        %650 = vmatprep.subr.bf16.mxu0 0
        %651 = vmatpush1.bf16.msra.mxu0 0
        %652 = vmatprep.subr.bf16.mxu0 0
        %653 = vmatpush1.bf16.msra.mxu0 0
        %654 = vmatprep.subr.bf16.mxu0 0
        %655 = vmatpush1.bf16.msra.mxu0 0
        %656 = vmatprep.subr.bf16.mxu0 0
        %657 = vmatpush1.bf16.msra.mxu0 0
        %658 = vmatprep.subr.bf16.mxu0 0
        %659 = vmatpush1.bf16.msra.mxu0 0
        %660 = vmatprep.subr.bf16.mxu0 0
        %661 = vmatpush1.bf16.msra.mxu0 0
        %662 = vmatprep.subr.bf16.mxu0 0
        %663 = vmatpush1.bf16.msra.mxu0 0
        %664 = vmatprep.subr.bf16.mxu0 0
        %665 = vmatpush1.bf16.msra.mxu0 0
        %666 = vmatprep.mubr.bf16.mxu0 0
        %667 = vmatmul.mubr.bf16.gmra.mrb[0].mxu0 %v632
        %v668 = vpop.f32.mrb[0].mxu0
        %v669 = vadd.f32 0.0, %v668
        %v670 = vpop.f32.mrb[0].mxu0
        %v671 = vpop.f32.mrb[0].mxu0
        %v672 = vadd.f32 0.0, %v671
        %v673 = vpop.f32.mrb[0].mxu0
        %674 = vdwg.mxu0
        %v675 = vpack.c.bf16 %v672, %v669
        %v676 = vld [vmem:[%s3] sm:$0xf]
        %v677 = vld [vmem:[%s3 + $0x4] sm:$0xf]
        %v678 = vld [vmem:[%s3 + $0x8] sm:$0xf]
        %v679 = vld [vmem:[%s3 + $0xc] sm:$0xf]
        %v684 = vunpack.c.l.b16 %v676
        %v685 = vunpack.c.l.b16 %v677
        %v686 = vunpack.c.l.b16 %v678
        %v687 = vunpack.c.l.b16 %v679
        %v688 = vpack.c.b16 %v685, %v684
        %v689 = vpack.c.b16 %v687, %v686
        %vm690 = vcmask 130048
        %v692 = vsel %vm690, %v688, 0
        %v695 = vsel %vm690, %v689, 0
        %697 = vmatprep.subr.bf16.mxu0 0
        %698 = vmatpush1.bf16.msra.mxu0 %v675
        %699 = vmatprep.subr.bf16.mxu0 0
        %700 = vmatpush1.bf16.msra.mxu0 0
        %701 = vmatprep.subr.bf16.mxu0 0
        %702 = vmatpush1.bf16.msra.mxu0 0
        %703 = vmatprep.subr.bf16.mxu0 0
        %704 = vmatpush1.bf16.msra.mxu0 0
        %705 = vmatprep.subr.bf16.mxu0 0
        %706 = vmatpush1.bf16.msra.mxu0 0
        %707 = vmatprep.subr.bf16.mxu0 0
        %708 = vmatpush1.bf16.msra.mxu0 0
        %709 = vmatprep.subr.bf16.mxu0 0
        %710 = vmatpush1.bf16.msra.mxu0 0
        %711 = vmatprep.subr.bf16.mxu0 0
        %712 = vmatpush1.bf16.msra.mxu0 0
        %713 = vmatprep.subr.bf16.mxu0 0
        %714 = vmatpush1.bf16.msra.mxu0 0
        %715 = vmatprep.subr.bf16.mxu0 0
        %716 = vmatpush1.bf16.msra.mxu0 0
        %717 = vmatprep.subr.bf16.mxu0 0
        %718 = vmatpush1.bf16.msra.mxu0 0
        %719 = vmatprep.subr.bf16.mxu0 0
        %720 = vmatpush1.bf16.msra.mxu0 0
        %721 = vmatprep.subr.bf16.mxu0 0
        %722 = vmatpush1.bf16.msra.mxu0 0
        %723 = vmatprep.subr.bf16.mxu0 0
        %724 = vmatpush1.bf16.msra.mxu0 0
        %725 = vmatprep.subr.bf16.mxu0 0
        %726 = vmatpush1.bf16.msra.mxu0 0
        %727 = vmatprep.subr.bf16.mxu0 0
        %728 = vmatpush1.bf16.msra.mxu0 0
        %729 = vmatprep.mubr.bf16.mxu0 0
        %730 = vmatmul.mubr.bf16.gmra.mrb[0].mxu0 %v692
        %v731 = vpop.f32.mrb[0].mxu0
        %v732 = vadd.f32 0.0, %v731
        %v733 = vpop.f32.mrb[0].mxu0
        %v734 = vpop.f32.mrb[0].mxu0
        %v735 = vadd.f32 0.0, %v734
        %v736 = vpop.f32.mrb[0].mxu0
        %737 = vmatprep.mubr.bf16.mxu0 0
        %738 = vmatmul.mubr.bf16.gmra.mrb[0].mxu0 %v695
        %v739 = vpop.f32.mrb[0].mxu0
        %v740 = vadd.f32 0.0, %v739
        %v741 = vpop.f32.mrb[0].mxu0
        %v742 = vpop.f32.mrb[0].mxu0
        %v743 = vadd.f32 0.0, %v742
        %v744 = vpop.f32.mrb[0].mxu0
        %745 = vdwg.mxu0
        %s746 = scalar_lea.vmem %s3, 16
        %v747 = vld [vmem:[%s746] sm:$0xf]
        %v748 = vld [vmem:[%s746 + $0x4] sm:$0xf]
        %v749 = vld [vmem:[%s746 + $0x8] sm:$0xf]
        %v750 = vld [vmem:[%s746 + $0xc] sm:$0xf]
        %v755 = vunpack.c.l.b16 %v747
        %v756 = vunpack.c.l.b16 %v748
        %v757 = vunpack.c.l.b16 %v749
        %v758 = vunpack.c.l.b16 %v750
        %v759 = vpack.c.b16 %v756, %v755
        %v760 = vpack.c.b16 %v758, %v757
        %v762 = vsel %vm690, %v759, 0
        %v765 = vsel %vm690, %v760, 0
        %767 = vmatprep.subr.bf16.mxu0 0
        %768 = vmatpush1.bf16.msra.mxu0 %v675
        %769 = vmatprep.subr.bf16.mxu0 0
        %770 = vmatpush1.bf16.msra.mxu0 0
        %771 = vmatprep.subr.bf16.mxu0 0
        %772 = vmatpush1.bf16.msra.mxu0 0
        %773 = vmatprep.subr.bf16.mxu0 0
        %774 = vmatpush1.bf16.msra.mxu0 0
        %775 = vmatprep.subr.bf16.mxu0 0
        %776 = vmatpush1.bf16.msra.mxu0 0
        %777 = vmatprep.subr.bf16.mxu0 0
        %778 = vmatpush1.bf16.msra.mxu0 0
        %779 = vmatprep.subr.bf16.mxu0 0
        %780 = vmatpush1.bf16.msra.mxu0 0
        %781 = vmatprep.subr.bf16.mxu0 0
        %782 = vmatpush1.bf16.msra.mxu0 0
        %783 = vmatprep.subr.bf16.mxu0 0
        %784 = vmatpush1.bf16.msra.mxu0 0
        %785 = vmatprep.subr.bf16.mxu0 0
        %786 = vmatpush1.bf16.msra.mxu0 0
        %787 = vmatprep.subr.bf16.mxu0 0
        %788 = vmatpush1.bf16.msra.mxu0 0
        %789 = vmatprep.subr.bf16.mxu0 0
        %790 = vmatpush1.bf16.msra.mxu0 0
        %791 = vmatprep.subr.bf16.mxu0 0
        %792 = vmatpush1.bf16.msra.mxu0 0
        %793 = vmatprep.subr.bf16.mxu0 0
        %794 = vmatpush1.bf16.msra.mxu0 0
        %795 = vmatprep.subr.bf16.mxu0 0
        %796 = vmatpush1.bf16.msra.mxu0 0
        %797 = vmatprep.subr.bf16.mxu0 0
        %798 = vmatpush1.bf16.msra.mxu0 0
        %799 = vmatprep.mubr.bf16.mxu0 0
        %800 = vmatmul.mubr.bf16.gmra.mrb[0].mxu0 %v762
        %v801 = vpop.f32.mrb[0].mxu0
        %v802 = vadd.f32 0.0, %v801
        %v803 = vpop.f32.mrb[0].mxu0
        %v804 = vpop.f32.mrb[0].mxu0
        %v805 = vadd.f32 0.0, %v804
        %v806 = vpop.f32.mrb[0].mxu0
        %807 = vmatprep.mubr.bf16.mxu0 0
        %808 = vmatmul.mubr.bf16.gmra.mrb[0].mxu0 %v765
        %v809 = vpop.f32.mrb[0].mxu0
        %v810 = vadd.f32 0.0, %v809
        %v811 = vpop.f32.mrb[0].mxu0
        %v812 = vpop.f32.mrb[0].mxu0
        %v813 = vadd.f32 0.0, %v812
        %v814 = vpop.f32.mrb[0].mxu0
        %815 = vdwg.mxu0
        %s816 = scalar_lea.vmem %s3, 32
        %v817 = vld [vmem:[%s816] sm:$0xf]
        %v818 = vld [vmem:[%s816 + $0x4] sm:$0xf]
        %v819 = vld [vmem:[%s816 + $0x8] sm:$0xf]
        %v820 = vld [vmem:[%s816 + $0xc] sm:$0xf]
        %v825 = vunpack.c.l.b16 %v817
        %v826 = vunpack.c.l.b16 %v818
        %v827 = vunpack.c.l.b16 %v819
        %v828 = vunpack.c.l.b16 %v820
        %v829 = vpack.c.b16 %v826, %v825
        %v830 = vpack.c.b16 %v828, %v827
        %v832 = vsel %vm690, %v829, 0
        %v835 = vsel %vm690, %v830, 0
        %837 = vmatprep.subr.bf16.mxu0 0
        %838 = vmatpush1.bf16.msra.mxu0 %v675
        %839 = vmatprep.subr.bf16.mxu0 0
        %840 = vmatpush1.bf16.msra.mxu0 0
        %841 = vmatprep.subr.bf16.mxu0 0
        %842 = vmatpush1.bf16.msra.mxu0 0
        %843 = vmatprep.subr.bf16.mxu0 0
        %844 = vmatpush1.bf16.msra.mxu0 0
        %845 = vmatprep.subr.bf16.mxu0 0
        %846 = vmatpush1.bf16.msra.mxu0 0
        %847 = vmatprep.subr.bf16.mxu0 0
        %848 = vmatpush1.bf16.msra.mxu0 0
        %849 = vmatprep.subr.bf16.mxu0 0
        %850 = vmatpush1.bf16.msra.mxu0 0
        %851 = vmatprep.subr.bf16.mxu0 0
        %852 = vmatpush1.bf16.msra.mxu0 0
        %853 = vmatprep.subr.bf16.mxu0 0
        %854 = vmatpush1.bf16.msra.mxu0 0
        %855 = vmatprep.subr.bf16.mxu0 0
        %856 = vmatpush1.bf16.msra.mxu0 0
        %857 = vmatprep.subr.bf16.mxu0 0
        %858 = vmatpush1.bf16.msra.mxu0 0
        %859 = vmatprep.subr.bf16.mxu0 0
        %860 = vmatpush1.bf16.msra.mxu0 0
        %861 = vmatprep.subr.bf16.mxu0 0
        %862 = vmatpush1.bf16.msra.mxu0 0
        %863 = vmatprep.subr.bf16.mxu0 0
        %864 = vmatpush1.bf16.msra.mxu0 0
        %865 = vmatprep.subr.bf16.mxu0 0
        %866 = vmatpush1.bf16.msra.mxu0 0
        %867 = vmatprep.subr.bf16.mxu0 0
        %868 = vmatpush1.bf16.msra.mxu0 0
        %869 = vmatprep.mubr.bf16.mxu0 0
        %870 = vmatmul.mubr.bf16.gmra.mrb[0].mxu0 %v832
        %v871 = vpop.f32.mrb[0].mxu0
        %v872 = vadd.f32 0.0, %v871
        %v873 = vpop.f32.mrb[0].mxu0
        %v874 = vpop.f32.mrb[0].mxu0
        %v875 = vadd.f32 0.0, %v874
        %v876 = vpop.f32.mrb[0].mxu0
        %877 = vmatprep.mubr.bf16.mxu0 0
        %878 = vmatmul.mubr.bf16.gmra.mrb[0].mxu0 %v835
        %v879 = vpop.f32.mrb[0].mxu0
        %v880 = vadd.f32 0.0, %v879
        %v881 = vpop.f32.mrb[0].mxu0
        %v882 = vpop.f32.mrb[0].mxu0
        %v883 = vadd.f32 0.0, %v882
        %v884 = vpop.f32.mrb[0].mxu0
        %885 = vdwg.mxu0
        %s886 = scalar_lea.vmem %s3, 48
        %v887 = vld [vmem:[%s886] sm:$0xf]
        %v888 = vld [vmem:[%s886 + $0x4] sm:$0xf]
        %v889 = vld [vmem:[%s886 + $0x8] sm:$0xf]
        %v890 = vld [vmem:[%s886 + $0xc] sm:$0xf]
        %v895 = vunpack.c.l.b16 %v887
        %v896 = vunpack.c.l.b16 %v888
        %v897 = vunpack.c.l.b16 %v889
        %v898 = vunpack.c.l.b16 %v890
        %v899 = vpack.c.b16 %v896, %v895
        %v900 = vpack.c.b16 %v898, %v897
        %v902 = vsel %vm690, %v899, 0
        %v905 = vsel %vm690, %v900, 0
        %907 = vmatprep.subr.bf16.mxu0 0
        %908 = vmatpush1.bf16.msra.mxu0 %v675
        %909 = vmatprep.subr.bf16.mxu0 0
        %910 = vmatpush1.bf16.msra.mxu0 0
        %911 = vmatprep.subr.bf16.mxu0 0
        %912 = vmatpush1.bf16.msra.mxu0 0
        %913 = vmatprep.subr.bf16.mxu0 0
        %914 = vmatpush1.bf16.msra.mxu0 0
        %915 = vmatprep.subr.bf16.mxu0 0
        %916 = vmatpush1.bf16.msra.mxu0 0
        %917 = vmatprep.subr.bf16.mxu0 0
        %918 = vmatpush1.bf16.msra.mxu0 0
        %919 = vmatprep.subr.bf16.mxu0 0
        %920 = vmatpush1.bf16.msra.mxu0 0
        %921 = vmatprep.subr.bf16.mxu0 0
        %922 = vmatpush1.bf16.msra.mxu0 0
        %923 = vmatprep.subr.bf16.mxu0 0
        %924 = vmatpush1.bf16.msra.mxu0 0
        %925 = vmatprep.subr.bf16.mxu0 0
        %926 = vmatpush1.bf16.msra.mxu0 0
        %927 = vmatprep.subr.bf16.mxu0 0
        %928 = vmatpush1.bf16.msra.mxu0 0
        %929 = vmatprep.subr.bf16.mxu0 0
        %930 = vmatpush1.bf16.msra.mxu0 0
        %931 = vmatprep.subr.bf16.mxu0 0
        %932 = vmatpush1.bf16.msra.mxu0 0
        %933 = vmatprep.subr.bf16.mxu0 0
        %934 = vmatpush1.bf16.msra.mxu0 0
        %935 = vmatprep.subr.bf16.mxu0 0
        %936 = vmatpush1.bf16.msra.mxu0 0
        %937 = vmatprep.subr.bf16.mxu0 0
        %938 = vmatpush1.bf16.msra.mxu0 0
        %939 = vmatprep.mubr.bf16.mxu0 0
        %940 = vmatmul.mubr.bf16.gmra.mrb[0].mxu0 %v902
        %v941 = vpop.f32.mrb[0].mxu0
        %v942 = vadd.f32 0.0, %v941
        %v943 = vpop.f32.mrb[0].mxu0
        %v944 = vpop.f32.mrb[0].mxu0
        %v945 = vadd.f32 0.0, %v944
        %v946 = vpop.f32.mrb[0].mxu0
        %947 = vmatprep.mubr.bf16.mxu0 0
        %948 = vmatmul.mubr.bf16.gmra.mrb[0].mxu0 %v905
        %v949 = vpop.f32.mrb[0].mxu0
        %v950 = vadd.f32 0.0, %v949
        %v951 = vpop.f32.mrb[0].mxu0
        %v952 = vpop.f32.mrb[0].mxu0
        %v953 = vadd.f32 0.0, %v952
        %v954 = vpop.f32.mrb[0].mxu0
        %955 = vdwg.mxu0
        %s956 = scalar_lea.vmem %s3, 64
        %v957 = vld [vmem:[%s956] sm:$0xf]
        %v958 = vld [vmem:[%s956 + $0x4] sm:$0xf]
        %v959 = vld [vmem:[%s956 + $0x8] sm:$0xf]
        %v960 = vld [vmem:[%s956 + $0xc] sm:$0xf]
        %v965 = vunpack.c.l.b16 %v957
        %v966 = vunpack.c.l.b16 %v958
        %v967 = vunpack.c.l.b16 %v959
        %v968 = vunpack.c.l.b16 %v960
        %v969 = vpack.c.b16 %v966, %v965
        %v970 = vpack.c.b16 %v968, %v967
        %v972 = vsel %vm690, %v969, 0
        %v975 = vsel %vm690, %v970, 0
        %977 = vmatprep.subr.bf16.mxu0 0
        %978 = vmatpush1.bf16.msra.mxu0 %v675
        %979 = vmatprep.subr.bf16.mxu0 0
        %980 = vmatpush1.bf16.msra.mxu0 0
        %981 = vmatprep.subr.bf16.mxu0 0
        %982 = vmatpush1.bf16.msra.mxu0 0
        %983 = vmatprep.subr.bf16.mxu0 0
        %984 = vmatpush1.bf16.msra.mxu0 0
        %985 = vmatprep.subr.bf16.mxu0 0
        %986 = vmatpush1.bf16.msra.mxu0 0
        %987 = vmatprep.subr.bf16.mxu0 0
        %988 = vmatpush1.bf16.msra.mxu0 0
        %989 = vmatprep.subr.bf16.mxu0 0
        %990 = vmatpush1.bf16.msra.mxu0 0
        %991 = vmatprep.subr.bf16.mxu0 0
        %992 = vmatpush1.bf16.msra.mxu0 0
        %993 = vmatprep.subr.bf16.mxu0 0
        %994 = vmatpush1.bf16.msra.mxu0 0
        %995 = vmatprep.subr.bf16.mxu0 0
        %996 = vmatpush1.bf16.msra.mxu0 0
        %997 = vmatprep.subr.bf16.mxu0 0
        %998 = vmatpush1.bf16.msra.mxu0 0
        %999 = vmatprep.subr.bf16.mxu0 0
        %1000 = vmatpush1.bf16.msra.mxu0 0
        %1001 = vmatprep.subr.bf16.mxu0 0
        %1002 = vmatpush1.bf16.msra.mxu0 0
        %1003 = vmatprep.subr.bf16.mxu0 0
        %1004 = vmatpush1.bf16.msra.mxu0 0
        %1005 = vmatprep.subr.bf16.mxu0 0
        %1006 = vmatpush1.bf16.msra.mxu0 0
        %1007 = vmatprep.subr.bf16.mxu0 0
        %1008 = vmatpush1.bf16.msra.mxu0 0
        %1009 = vmatprep.mubr.bf16.mxu0 0
        %1010 = vmatmul.mubr.bf16.gmra.mrb[0].mxu0 %v972
        %v1011 = vpop.f32.mrb[0].mxu0
        %v1012 = vadd.f32 0.0, %v1011
        %v1013 = vpop.f32.mrb[0].mxu0
        %v1014 = vpop.f32.mrb[0].mxu0
        %v1015 = vadd.f32 0.0, %v1014
        %v1016 = vpop.f32.mrb[0].mxu0
        %1017 = vmatprep.mubr.bf16.mxu0 0
        %1018 = vmatmul.mubr.bf16.gmra.mrb[0].mxu0 %v975
        %v1019 = vpop.f32.mrb[0].mxu0
        %v1020 = vadd.f32 0.0, %v1019
        %v1021 = vpop.f32.mrb[0].mxu0
        %v1022 = vpop.f32.mrb[0].mxu0
        %v1023 = vadd.f32 0.0, %v1022
        %v1024 = vpop.f32.mrb[0].mxu0
        %1025 = vdwg.mxu0
        %s1026 = scalar_lea.vmem %s3, 80
        %v1027 = vld [vmem:[%s1026] sm:$0xf]
        %v1028 = vld [vmem:[%s1026 + $0x4] sm:$0xf]
        %v1029 = vld [vmem:[%s1026 + $0x8] sm:$0xf]
        %v1030 = vld [vmem:[%s1026 + $0xc] sm:$0xf]
        %v1035 = vunpack.c.l.b16 %v1027
        %v1036 = vunpack.c.l.b16 %v1028
        %v1037 = vunpack.c.l.b16 %v1029
        %v1038 = vunpack.c.l.b16 %v1030
        %v1039 = vpack.c.b16 %v1036, %v1035
        %v1040 = vpack.c.b16 %v1038, %v1037
        %v1042 = vsel %vm690, %v1039, 0
        %v1045 = vsel %vm690, %v1040, 0
        %1047 = vmatprep.subr.bf16.mxu0 0
        %1048 = vmatpush1.bf16.msra.mxu0 %v675
        %1049 = vmatprep.subr.bf16.mxu0 0
        %1050 = vmatpush1.bf16.msra.mxu0 0
        %1051 = vmatprep.subr.bf16.mxu0 0
        %1052 = vmatpush1.bf16.msra.mxu0 0
        %1053 = vmatprep.subr.bf16.mxu0 0
        %1054 = vmatpush1.bf16.msra.mxu0 0
        %1055 = vmatprep.subr.bf16.mxu0 0
        %1056 = vmatpush1.bf16.msra.mxu0 0
        %1057 = vmatprep.subr.bf16.mxu0 0
        %1058 = vmatpush1.bf16.msra.mxu0 0
        %1059 = vmatprep.subr.bf16.mxu0 0
        %1060 = vmatpush1.bf16.msra.mxu0 0
        %1061 = vmatprep.subr.bf16.mxu0 0
        %1062 = vmatpush1.bf16.msra.mxu0 0
        %1063 = vmatprep.subr.bf16.mxu0 0
        %1064 = vmatpush1.bf16.msra.mxu0 0
        %1065 = vmatprep.subr.bf16.mxu0 0
        %1066 = vmatpush1.bf16.msra.mxu0 0
        %1067 = vmatprep.subr.bf16.mxu0 0
        %1068 = vmatpush1.bf16.msra.mxu0 0
        %1069 = vmatprep.subr.bf16.mxu0 0
        %1070 = vmatpush1.bf16.msra.mxu0 0
        %1071 = vmatprep.subr.bf16.mxu0 0
        %1072 = vmatpush1.bf16.msra.mxu0 0
        %1073 = vmatprep.subr.bf16.mxu0 0
        %1074 = vmatpush1.bf16.msra.mxu0 0
        %1075 = vmatprep.subr.bf16.mxu0 0
        %1076 = vmatpush1.bf16.msra.mxu0 0
        %1077 = vmatprep.subr.bf16.mxu0 0
        %1078 = vmatpush1.bf16.msra.mxu0 0
        %1079 = vmatprep.mubr.bf16.mxu0 0
        %1080 = vmatmul.mubr.bf16.gmra.mrb[0].mxu0 %v1042
        %v1081 = vpop.f32.mrb[0].mxu0
        %v1082 = vadd.f32 0.0, %v1081
        %v1083 = vpop.f32.mrb[0].mxu0
        %v1084 = vpop.f32.mrb[0].mxu0
        %v1085 = vadd.f32 0.0, %v1084
        %v1086 = vpop.f32.mrb[0].mxu0
        %1087 = vmatprep.mubr.bf16.mxu0 0
        %1088 = vmatmul.mubr.bf16.gmra.mrb[0].mxu0 %v1045
        %v1089 = vpop.f32.mrb[0].mxu0
        %v1090 = vadd.f32 0.0, %v1089
        %v1091 = vpop.f32.mrb[0].mxu0
        %v1092 = vpop.f32.mrb[0].mxu0
        %v1093 = vadd.f32 0.0, %v1092
        %v1094 = vpop.f32.mrb[0].mxu0
        %1095 = vdwg.mxu0
        %s1096 = scalar_lea.vmem %s3, 96
        %v1097 = vld [vmem:[%s1096] sm:$0xf]
        %v1098 = vld [vmem:[%s1096 + $0x4] sm:$0xf]
        %v1099 = vld [vmem:[%s1096 + $0x8] sm:$0xf]
        %v1100 = vld [vmem:[%s1096 + $0xc] sm:$0xf]
        %v1105 = vunpack.c.l.b16 %v1097
        %v1106 = vunpack.c.l.b16 %v1098
        %v1107 = vunpack.c.l.b16 %v1099
        %v1108 = vunpack.c.l.b16 %v1100
        %v1109 = vpack.c.b16 %v1106, %v1105
        %v1110 = vpack.c.b16 %v1108, %v1107
        %v1112 = vsel %vm690, %v1109, 0
        %v1115 = vsel %vm690, %v1110, 0
        %1117 = vmatprep.subr.bf16.mxu0 0
        %1118 = vmatpush1.bf16.msra.mxu0 %v675
        %1119 = vmatprep.subr.bf16.mxu0 0
        %1120 = vmatpush1.bf16.msra.mxu0 0
        %1121 = vmatprep.subr.bf16.mxu0 0
        %1122 = vmatpush1.bf16.msra.mxu0 0
        %1123 = vmatprep.subr.bf16.mxu0 0
        %1124 = vmatpush1.bf16.msra.mxu0 0
        %1125 = vmatprep.subr.bf16.mxu0 0
        %1126 = vmatpush1.bf16.msra.mxu0 0
        %1127 = vmatprep.subr.bf16.mxu0 0
        %1128 = vmatpush1.bf16.msra.mxu0 0
        %1129 = vmatprep.subr.bf16.mxu0 0
        %1130 = vmatpush1.bf16.msra.mxu0 0
        %1131 = vmatprep.subr.bf16.mxu0 0
        %1132 = vmatpush1.bf16.msra.mxu0 0
        %1133 = vmatprep.subr.bf16.mxu0 0
        %1134 = vmatpush1.bf16.msra.mxu0 0
        %1135 = vmatprep.subr.bf16.mxu0 0
        %1136 = vmatpush1.bf16.msra.mxu0 0
        %1137 = vmatprep.subr.bf16.mxu0 0
        %1138 = vmatpush1.bf16.msra.mxu0 0
        %1139 = vmatprep.subr.bf16.mxu0 0
        %1140 = vmatpush1.bf16.msra.mxu0 0
        %1141 = vmatprep.subr.bf16.mxu0 0
        %1142 = vmatpush1.bf16.msra.mxu0 0
        %1143 = vmatprep.subr.bf16.mxu0 0
        %1144 = vmatpush1.bf16.msra.mxu0 0
        %1145 = vmatprep.subr.bf16.mxu0 0
        %1146 = vmatpush1.bf16.msra.mxu0 0
        %1147 = vmatprep.subr.bf16.mxu0 0
        %1148 = vmatpush1.bf16.msra.mxu0 0
        %1149 = vmatprep.mubr.bf16.mxu0 0
        %1150 = vmatmul.mubr.bf16.gmra.mrb[0].mxu0 %v1112
        %v1151 = vpop.f32.mrb[0].mxu0
        %v1152 = vadd.f32 0.0, %v1151
        %v1153 = vpop.f32.mrb[0].mxu0
        %v1154 = vpop.f32.mrb[0].mxu0
        %v1155 = vadd.f32 0.0, %v1154
        %v1156 = vpop.f32.mrb[0].mxu0
        %1157 = vmatprep.mubr.bf16.mxu0 0
        %1158 = vmatmul.mubr.bf16.gmra.mrb[0].mxu0 %v1115
        %v1159 = vpop.f32.mrb[0].mxu0
        %v1160 = vadd.f32 0.0, %v1159
        %v1161 = vpop.f32.mrb[0].mxu0
        %v1162 = vpop.f32.mrb[0].mxu0
        %v1163 = vadd.f32 0.0, %v1162
        %v1164 = vpop.f32.mrb[0].mxu0
        %1165 = vdwg.mxu0
        %v1166 = vpack.c.bf16 %v735, %v732
        %v1167 = vpack.c.bf16 %v805, %v802
        %v1168 = vpack.c.bf16 %v875, %v872
        %v1169 = vpack.c.bf16 %v945, %v942
        %v1170 = vpack.c.bf16 %v1015, %v1012
        %v1171 = vpack.c.bf16 %v1085, %v1082
        %v1172 = vpack.c.bf16 %v1155, %v1152
        %v1173 = vpack.c.bf16 %v743, %v740
        %v1174 = vpack.c.bf16 %v813, %v810
        %v1175 = vpack.c.bf16 %v883, %v880
        %v1176 = vpack.c.bf16 %v953, %v950
        %v1177 = vpack.c.bf16 %v1023, %v1020
        %v1178 = vpack.c.bf16 %v1093, %v1090
        %v1179 = vpack.c.bf16 %v1163, %v1160
        %v1180 = vld [vmem:[#allocation6] sm:$0xff]
        %v1181 = vld [vmem:[#allocation6 + $0x8] sm:$0xff]
        %v1182 = vld [vmem:[#allocation6 + $0x10] sm:$0xff]
        %v1183 = vld [vmem:[#allocation6 + $0x18] sm:$0xff]
        %v1184 = vld [vmem:[#allocation6 + $0x20] sm:$0xff]
        %v1185 = vld [vmem:[#allocation6 + $0x28] sm:$0xff]
        %v1186 = vld [vmem:[#allocation6 + $0x30] sm:$0xff]
        %v1187 = vld [vmem:[#allocation6 + $0x38] sm:$0xff]
        %v1188 = vld [vmem:[#allocation6 + $0x40] sm:$0xff]
        %v1189 = vld [vmem:[#allocation6 + $0x48] sm:$0xff]
        %v1190 = vld [vmem:[#allocation6 + $0x50] sm:$0xff]
        %v1191 = vld [vmem:[#allocation6 + $0x58] sm:$0xff]
        %v1192 = vld [vmem:[#allocation6 + $0x60] sm:$0xff]
        %v1193 = vld [vmem:[#allocation6 + $0x68] sm:$0xff]
        %v1194 = vld [vmem:[#allocation6 + $0x70] sm:$0xff]
        %v1195 = vld [vmem:[#allocation6 + $0x78] sm:$0xff]
        %v1196 = vld [vmem:[#allocation6 + $0x80] sm:$0xff]
        %v1197 = vld [vmem:[#allocation6 + $0x88] sm:$0xff]
        %v1198 = vld [vmem:[#allocation6 + $0x90] sm:$0xff]
        %v1199 = vld [vmem:[#allocation6 + $0x98] sm:$0xff]
        %v1200 = vld [vmem:[#allocation6 + $0xa0] sm:$0xff]
        %v1201 = vld [vmem:[#allocation6 + $0xa8] sm:$0xff]
        %v1202 = vld [vmem:[#allocation6 + $0xb0] sm:$0xff]
        %v1203 = vld [vmem:[#allocation6 + $0xb8] sm:$0xff]
        %v1204 = vld [vmem:[#allocation6 + $0xc0] sm:$0xff]
        %v1205 = vld [vmem:[#allocation6 + $0xc8] sm:$0xff]
        %v1206 = vld [vmem:[#allocation6 + $0xd0] sm:$0xff]
        %v1207 = vld [vmem:[#allocation6 + $0xd8] sm:$0xff]
        %v1208 = vld [vmem:[#allocation6 + $0xe0] sm:$0xff]
        %v1209 = vld [vmem:[#allocation6 + $0xe8] sm:$0xff]
        %v1210 = vld [vmem:[#allocation6 + $0xf0] sm:$0xff]
        %v1211 = vld [vmem:[#allocation6 + $0xf8] sm:$0xff]
        %v1212 = vld [vmem:[#allocation6 + $0x100] sm:$0xff]
        %v1213 = vld [vmem:[#allocation6 + $0x108] sm:$0xff]
        %v1214 = vld [vmem:[#allocation6 + $0x110] sm:$0xff]
        %v1215 = vld [vmem:[#allocation6 + $0x118] sm:$0xff]
        %v1216 = vld [vmem:[#allocation6 + $0x120] sm:$0xff]
        %v1217 = vld [vmem:[#allocation6 + $0x128] sm:$0xff]
        %v1218 = vld [vmem:[#allocation6 + $0x130] sm:$0xff]
        %v1219 = vld [vmem:[#allocation6 + $0x138] sm:$0xff]
        %v1220 = vld [vmem:[#allocation6 + $0x140] sm:$0xff]
        %v1221 = vld [vmem:[#allocation6 + $0x148] sm:$0xff]
        %v1222 = vld [vmem:[#allocation6 + $0x150] sm:$0xff]
        %v1223 = vld [vmem:[#allocation6 + $0x158] sm:$0xff]
        %v1224 = vld [vmem:[#allocation6 + $0x160] sm:$0xff]
        %v1225 = vld [vmem:[#allocation6 + $0x168] sm:$0xff]
        %v1226 = vld [vmem:[#allocation6 + $0x170] sm:$0xff]
        %v1227 = vld [vmem:[#allocation6 + $0x178] sm:$0xff]
        %v1228 = vld [vmem:[#allocation6 + $0x180] sm:$0xff]
        %v1229 = vld [vmem:[#allocation6 + $0x188] sm:$0xff]
        %v1230 = vld [vmem:[#allocation6 + $0x190] sm:$0xff]
        %v1231 = vld [vmem:[#allocation6 + $0x198] sm:$0xff]
        %v1232 = vld [vmem:[#allocation6 + $0x1a0] sm:$0xff]
        %v1233 = vld [vmem:[#allocation6 + $0x1a8] sm:$0xff]
        %v1234 = vld [vmem:[#allocation6 + $0x1b0] sm:$0xff]
        %v1235 = vld [vmem:[#allocation6 + $0x1b8] sm:$0xff]
        %v1236 = vld [vmem:[#allocation6 + $0x1c0] sm:$0xff]
        %v1237 = vld [vmem:[#allocation6 + $0x1c8] sm:$0xff]
        %v1238 = vld [vmem:[#allocation6 + $0x1d0] sm:$0xff]
        %v1239 = vld [vmem:[#allocation6 + $0x1d8] sm:$0xff]
        %v1240 = vld [vmem:[#allocation6 + $0x1e0] sm:$0xff]
        %v1241 = vld [vmem:[#allocation6 + $0x1e8] sm:$0xff]
        %v1242 = vld [vmem:[#allocation6 + $0x1f0] sm:$0xff]
        %v1243 = vld [vmem:[#allocation6 + $0x1f8] sm:$0xff]
        %v1244 = vld [vmem:[#allocation6 + $0x200] sm:$0xff]
        %v1245 = vld [vmem:[#allocation6 + $0x208] sm:$0xff]
        %v1246 = vld [vmem:[#allocation6 + $0x210] sm:$0xff]
        %v1247 = vld [vmem:[#allocation6 + $0x218] sm:$0xff]
        %v1248 = vld [vmem:[#allocation6 + $0x220] sm:$0xff]
        %v1249 = vld [vmem:[#allocation6 + $0x228] sm:$0xff]
        %v1250 = vld [vmem:[#allocation6 + $0x230] sm:$0xff]
        %v1251 = vld [vmem:[#allocation6 + $0x238] sm:$0xff]
        %v1252 = vld [vmem:[#allocation6 + $0x240] sm:$0xff]
        %v1253 = vld [vmem:[#allocation6 + $0x248] sm:$0xff]
        %v1254 = vld [vmem:[#allocation6 + $0x250] sm:$0xff]
        %v1255 = vld [vmem:[#allocation6 + $0x258] sm:$0xff]
        %v1256 = vld [vmem:[#allocation6 + $0x260] sm:$0xff]
        %v1257 = vld [vmem:[#allocation6 + $0x268] sm:$0xff]
        %v1258 = vld [vmem:[#allocation6 + $0x270] sm:$0xff]
        %v1259 = vld [vmem:[#allocation6 + $0x278] sm:$0xff]
        %v1260 = vld [vmem:[#allocation6 + $0x280] sm:$0xff]
        %v1261 = vld [vmem:[#allocation6 + $0x288] sm:$0xff]
        %v1262 = vld [vmem:[#allocation6 + $0x290] sm:$0xff]
        %v1263 = vld [vmem:[#allocation6 + $0x298] sm:$0xff]
        %v1264 = vld [vmem:[#allocation6 + $0x2a0] sm:$0xff]
        %v1265 = vld [vmem:[#allocation6 + $0x2a8] sm:$0xff]
        %v1266 = vld [vmem:[#allocation6 + $0x2b0] sm:$0xff]
        %v1267 = vld [vmem:[#allocation6 + $0x2b8] sm:$0xff]
        %v1268 = vld [vmem:[#allocation6 + $0x2c0] sm:$0xff]
        %v1269 = vld [vmem:[#allocation6 + $0x2c8] sm:$0xff]
        %v1270 = vld [vmem:[#allocation6 + $0x2d0] sm:$0xff]
        %v1271 = vld [vmem:[#allocation6 + $0x2d8] sm:$0xff]
        %v1272 = vld [vmem:[#allocation6 + $0x2e0] sm:$0xff]
        %v1273 = vld [vmem:[#allocation6 + $0x2e8] sm:$0xff]
        %v1274 = vld [vmem:[#allocation6 + $0x2f0] sm:$0xff]
        %v1275 = vld [vmem:[#allocation6 + $0x2f8] sm:$0xff]
        %v1276 = vld [vmem:[#allocation6 + $0x300] sm:$0xff]
        %v1277 = vld [vmem:[#allocation6 + $0x308] sm:$0xff]
        %v1278 = vld [vmem:[#allocation6 + $0x310] sm:$0xff]
        %v1279 = vld [vmem:[#allocation6 + $0x318] sm:$0xff]
        %v1280 = vld [vmem:[#allocation6 + $0x320] sm:$0xff]
        %v1281 = vld [vmem:[#allocation6 + $0x328] sm:$0xff]
        %v1282 = vld [vmem:[#allocation6 + $0x330] sm:$0xff]
        %v1283 = vld [vmem:[#allocation6 + $0x338] sm:$0xff]
        %v1284 = vld [vmem:[#allocation6 + $0x340] sm:$0xff]
        %v1285 = vld [vmem:[#allocation6 + $0x348] sm:$0xff]
        %v1286 = vld [vmem:[#allocation6 + $0x350] sm:$0xff]
        %v1287 = vld [vmem:[#allocation6 + $0x358] sm:$0xff]
        %v1288 = vld [vmem:[#allocation6 + $0x360] sm:$0xff]
        %v1289 = vld [vmem:[#allocation6 + $0x368] sm:$0xff]
        %v1290 = vld [vmem:[#allocation6 + $0x370] sm:$0xff]
        %v1291 = vld [vmem:[#allocation6 + $0x378] sm:$0xff]
        %v1292 = vld [vmem:[#allocation6 + $0x380] sm:$0xff]
        %v1293 = vld [vmem:[#allocation6 + $0x388] sm:$0xff]
        %v1294 = vld [vmem:[#allocation6 + $0x390] sm:$0xff]
        %v1295 = vld [vmem:[#allocation6 + $0x398] sm:$0xff]
        %v1296 = vld [vmem:[#allocation6 + $0x3a0] sm:$0xff]
        %v1297 = vld [vmem:[#allocation6 + $0x3a8] sm:$0xff]
        %v1298 = vld [vmem:[#allocation6 + $0x3b0] sm:$0xff]
        %v1299 = vld [vmem:[#allocation6 + $0x3b8] sm:$0xff]
        %v1300 = vld [vmem:[#allocation6 + $0x3c0] sm:$0xff]
        %v1301 = vld [vmem:[#allocation6 + $0x3c8] sm:$0xff]
        %v1302 = vld [vmem:[#allocation6 + $0x3d0] sm:$0xff]
        %v1303 = vld [vmem:[#allocation6 + $0x3d8] sm:$0xff]
        %v1304 = vld [vmem:[#allocation6 + $0x3e0] sm:$0xff]
        %v1305 = vld [vmem:[#allocation6 + $0x3e8] sm:$0xff]
        %v1306 = vld [vmem:[#allocation6 + $0x3f0] sm:$0xff]
        %v1307 = vld [vmem:[#allocation6 + $0x3f8] sm:$0xff]
        %v1308 = vld [vmem:[#allocation6 + $0x400] sm:$0xff]
        %v1309 = vld [vmem:[#allocation6 + $0x408] sm:$0xff]
        %v1310 = vld [vmem:[#allocation6 + $0x410] sm:$0xff]
        %v1311 = vld [vmem:[#allocation6 + $0x418] sm:$0xff]
        %v1312 = vld [vmem:[#allocation6 + $0x420] sm:$0xff]
        %v1313 = vld [vmem:[#allocation6 + $0x428] sm:$0xff]
        %v1314 = vld [vmem:[#allocation6 + $0x430] sm:$0xff]
        %v1315 = vld [vmem:[#allocation6 + $0x438] sm:$0xff]
        %v1316 = vld [vmem:[#allocation6 + $0x440] sm:$0xff]
        %v1317 = vld [vmem:[#allocation6 + $0x448] sm:$0xff]
        %v1318 = vld [vmem:[#allocation6 + $0x450] sm:$0xff]
        %v1319 = vld [vmem:[#allocation6 + $0x458] sm:$0xff]
        %v1320 = vld [vmem:[#allocation6 + $0x460] sm:$0xff]
        %v1321 = vld [vmem:[#allocation6 + $0x468] sm:$0xff]
        %v1322 = vld [vmem:[#allocation6 + $0x470] sm:$0xff]
        %v1323 = vld [vmem:[#allocation6 + $0x478] sm:$0xff]
        %v1324 = vld [vmem:[#allocation6 + $0x480] sm:$0xff]
        %v1325 = vld [vmem:[#allocation6 + $0x488] sm:$0xff]
        %v1326 = vld [vmem:[#allocation6 + $0x490] sm:$0xff]
        %v1327 = vld [vmem:[#allocation6 + $0x498] sm:$0xff]
        %v1328 = vld [vmem:[#allocation6 + $0x4a0] sm:$0xff]
        %v1329 = vld [vmem:[#allocation6 + $0x4a8] sm:$0xff]
        %v1330 = vld [vmem:[#allocation6 + $0x4b0] sm:$0xff]
        %v1331 = vld [vmem:[#allocation6 + $0x4b8] sm:$0xff]
        %v1332 = vld [vmem:[#allocation6 + $0x4c0] sm:$0xff]
        %v1333 = vld [vmem:[#allocation6 + $0x4c8] sm:$0xff]
        %v1334 = vld [vmem:[#allocation6 + $0x4d0] sm:$0xff]
        %v1335 = vld [vmem:[#allocation6 + $0x4d8] sm:$0xff]
        %v1336 = vld [vmem:[#allocation6 + $0x4e0] sm:$0xff]
        %v1337 = vld [vmem:[#allocation6 + $0x4e8] sm:$0xff]
        %v1338 = vld [vmem:[#allocation6 + $0x4f0] sm:$0xff]
        %v1339 = vld [vmem:[#allocation6 + $0x4f8] sm:$0xff]
        %v1340 = vld [vmem:[#allocation6 + $0x500] sm:$0xff]
        %v1341 = vld [vmem:[#allocation6 + $0x508] sm:$0xff]
        %v1342 = vld [vmem:[#allocation6 + $0x510] sm:$0xff]
        %v1343 = vld [vmem:[#allocation6 + $0x518] sm:$0xff]
        %v1344 = vld [vmem:[#allocation6 + $0x520] sm:$0xff]
        %v1345 = vld [vmem:[#allocation6 + $0x528] sm:$0xff]
        %v1346 = vld [vmem:[#allocation6 + $0x530] sm:$0xff]
        %v1347 = vld [vmem:[#allocation6 + $0x538] sm:$0xff]
        %v1348 = vld [vmem:[#allocation6 + $0x540] sm:$0xff]
        %v1349 = vld [vmem:[#allocation6 + $0x548] sm:$0xff]
        %v1350 = vld [vmem:[#allocation6 + $0x550] sm:$0xff]
        %v1351 = vld [vmem:[#allocation6 + $0x558] sm:$0xff]
        %v1352 = vld [vmem:[#allocation6 + $0x560] sm:$0xff]
        %v1353 = vld [vmem:[#allocation6 + $0x568] sm:$0xff]
        %v1354 = vld [vmem:[#allocation6 + $0x570] sm:$0xff]
        %v1355 = vld [vmem:[#allocation6 + $0x578] sm:$0xff]
        %v1356 = vld [vmem:[#allocation6 + $0x580] sm:$0xff]
        %v1357 = vld [vmem:[#allocation6 + $0x588] sm:$0xff]
        %v1358 = vld [vmem:[#allocation6 + $0x590] sm:$0xff]
        %v1359 = vld [vmem:[#allocation6 + $0x598] sm:$0xff]
        %v1360 = vld [vmem:[#allocation6 + $0x5a0] sm:$0xff]
        %v1361 = vld [vmem:[#allocation6 + $0x5a8] sm:$0xff]
        %v1362 = vld [vmem:[#allocation6 + $0x5b0] sm:$0xff]
        %v1363 = vld [vmem:[#allocation6 + $0x5b8] sm:$0xff]
        %v1364 = vld [vmem:[#allocation6 + $0x5c0] sm:$0xff]
        %v1365 = vld [vmem:[#allocation6 + $0x5c8] sm:$0xff]
        %v1366 = vld [vmem:[#allocation6 + $0x5d0] sm:$0xff]
        %v1367 = vld [vmem:[#allocation6 + $0x5d8] sm:$0xff]
        %v1368 = vld [vmem:[#allocation6 + $0x5e0] sm:$0xff]
        %v1369 = vld [vmem:[#allocation6 + $0x5e8] sm:$0xff]
        %v1370 = vld [vmem:[#allocation6 + $0x5f0] sm:$0xff]
        %v1371 = vld [vmem:[#allocation6 + $0x5f8] sm:$0xff]
        %v1372 = vld [vmem:[#allocation6 + $0x600] sm:$0xff]
        %v1373 = vld [vmem:[#allocation6 + $0x608] sm:$0xff]
        %v1374 = vld [vmem:[#allocation6 + $0x610] sm:$0xff]
        %v1375 = vld [vmem:[#allocation6 + $0x618] sm:$0xff]
        %v1376 = vld [vmem:[#allocation6 + $0x620] sm:$0xff]
        %v1377 = vld [vmem:[#allocation6 + $0x628] sm:$0xff]
        %v1378 = vld [vmem:[#allocation6 + $0x630] sm:$0xff]
        %v1379 = vld [vmem:[#allocation6 + $0x638] sm:$0xff]
        %v1380 = vld [vmem:[#allocation6 + $0x640] sm:$0xff]
        %v1381 = vld [vmem:[#allocation6 + $0x648] sm:$0xff]
        %v1382 = vld [vmem:[#allocation6 + $0x650] sm:$0xff]
        %v1383 = vld [vmem:[#allocation6 + $0x658] sm:$0xff]
        %v1384 = vld [vmem:[#allocation6 + $0x660] sm:$0xff]
        %v1385 = vld [vmem:[#allocation6 + $0x668] sm:$0xff]
        %v1386 = vld [vmem:[#allocation6 + $0x670] sm:$0xff]
        %v1387 = vld [vmem:[#allocation6 + $0x678] sm:$0xff]
        %v1388 = vld [vmem:[#allocation6 + $0x680] sm:$0xff]
        %v1389 = vld [vmem:[#allocation6 + $0x688] sm:$0xff]
        %v1390 = vld [vmem:[#allocation6 + $0x690] sm:$0xff]
        %v1391 = vld [vmem:[#allocation6 + $0x698] sm:$0xff]
        %v1392 = vld [vmem:[#allocation6 + $0x6a0] sm:$0xff]
        %v1393 = vld [vmem:[#allocation6 + $0x6a8] sm:$0xff]
        %v1394 = vld [vmem:[#allocation6 + $0x6b0] sm:$0xff]
        %v1395 = vld [vmem:[#allocation6 + $0x6b8] sm:$0xff]
        %v1396 = vld [vmem:[#allocation6 + $0x6c0] sm:$0xff]
        %v1397 = vld [vmem:[#allocation6 + $0x6c8] sm:$0xff]
        %v1398 = vld [vmem:[#allocation6 + $0x6d0] sm:$0xff]
        %v1399 = vld [vmem:[#allocation6 + $0x6d8] sm:$0xff]
        %v1400 = vld [vmem:[#allocation6 + $0x6e0] sm:$0xff]
        %v1401 = vld [vmem:[#allocation6 + $0x6e8] sm:$0xff]
        %v1402 = vld [vmem:[#allocation6 + $0x6f0] sm:$0xff]
        %v1403 = vld [vmem:[#allocation6 + $0x6f8] sm:$0xff]
        %v1404 = vld [vmem:[#allocation6 + $0x700] sm:$0xff]
        %v1405 = vld [vmem:[#allocation6 + $0x708] sm:$0xff]
        %v1406 = vld [vmem:[#allocation6 + $0x710] sm:$0xff]
        %v1407 = vld [vmem:[#allocation6 + $0x718] sm:$0xff]
        %v1408 = vld [vmem:[#allocation6 + $0x720] sm:$0xff]
        %v1409 = vld [vmem:[#allocation6 + $0x728] sm:$0xff]
        %v1410 = vld [vmem:[#allocation6 + $0x730] sm:$0xff]
        %v1411 = vld [vmem:[#allocation6 + $0x738] sm:$0xff]
        %v1412 = vld [vmem:[#allocation6 + $0x740] sm:$0xff]
        %v1413 = vld [vmem:[#allocation6 + $0x748] sm:$0xff]
        %v1414 = vld [vmem:[#allocation6 + $0x750] sm:$0xff]
        %v1415 = vld [vmem:[#allocation6 + $0x758] sm:$0xff]
        %v1416 = vld [vmem:[#allocation6 + $0x760] sm:$0xff]
        %v1417 = vld [vmem:[#allocation6 + $0x768] sm:$0xff]
        %v1418 = vld [vmem:[#allocation6 + $0x770] sm:$0xff]
        %v1419 = vld [vmem:[#allocation6 + $0x778] sm:$0xff]
        %v1420 = vld [vmem:[#allocation6 + $0x780] sm:$0xff]
        %v1421 = vld [vmem:[#allocation6 + $0x788] sm:$0xff]
        %v1422 = vld [vmem:[#allocation6 + $0x790] sm:$0xff]
        %v1423 = vld [vmem:[#allocation6 + $0x798] sm:$0xff]
        %v1424 = vld [vmem:[#allocation6 + $0x7a0] sm:$0xff]
        %v1425 = vld [vmem:[#allocation6 + $0x7a8] sm:$0xff]
        %v1426 = vld [vmem:[#allocation6 + $0x7b0] sm:$0xff]
        %v1427 = vld [vmem:[#allocation6 + $0x7b8] sm:$0xff]
        %v1428 = vld [vmem:[#allocation6 + $0x7c0] sm:$0xff]
        %v1429 = vld [vmem:[#allocation6 + $0x7c8] sm:$0xff]
        %v1430 = vld [vmem:[#allocation6 + $0x7d0] sm:$0xff]
        %v1431 = vld [vmem:[#allocation6 + $0x7d8] sm:$0xff]
        %v1432 = vld [vmem:[#allocation6 + $0x7e0] sm:$0xff]
        %v1433 = vld [vmem:[#allocation6 + $0x7e8] sm:$0xff]
        %v1434 = vld [vmem:[#allocation6 + $0x7f0] sm:$0xff]
        %v1435 = vld [vmem:[#allocation6 + $0x7f8] sm:$0xff]
        %v1436 = vld [vmem:[#allocation6 + $0x800] sm:$0xff]
        %v1437 = vld [vmem:[#allocation6 + $0x808] sm:$0xff]
        %v1438 = vld [vmem:[#allocation6 + $0x810] sm:$0xff]
        %v1439 = vld [vmem:[#allocation6 + $0x818] sm:$0xff]
        %v1440 = vld [vmem:[#allocation6 + $0x820] sm:$0xff]
        %v1441 = vld [vmem:[#allocation6 + $0x828] sm:$0xff]
        %v1442 = vld [vmem:[#allocation6 + $0x830] sm:$0xff]
        %v1443 = vld [vmem:[#allocation6 + $0x838] sm:$0xff]
        %v1444 = vld [vmem:[#allocation6 + $0x840] sm:$0xff]
        %v1445 = vld [vmem:[#allocation6 + $0x848] sm:$0xff]
        %v1446 = vld [vmem:[#allocation6 + $0x850] sm:$0xff]
        %v1447 = vld [vmem:[#allocation6 + $0x858] sm:$0xff]
        %v1448 = vld [vmem:[#allocation6 + $0x860] sm:$0xff]
        %v1449 = vld [vmem:[#allocation6 + $0x868] sm:$0xff]
        %v1450 = vld [vmem:[#allocation6 + $0x870] sm:$0xff]
        %v1451 = vld [vmem:[#allocation6 + $0x878] sm:$0xff]
        %v1452 = vld [vmem:[#allocation6 + $0x880] sm:$0xff]
        %v1453 = vld [vmem:[#allocation6 + $0x888] sm:$0xff]
        %v1454 = vld [vmem:[#allocation6 + $0x890] sm:$0xff]
        %v1455 = vld [vmem:[#allocation6 + $0x898] sm:$0xff]
        %v1456 = vld [vmem:[#allocation6 + $0x8a0] sm:$0xff]
        %v1457 = vld [vmem:[#allocation6 + $0x8a8] sm:$0xff]
        %v1458 = vld [vmem:[#allocation6 + $0x8b0] sm:$0xff]
        %v1459 = vld [vmem:[#allocation6 + $0x8b8] sm:$0xff]
        %v1460 = vld [vmem:[#allocation6 + $0x8c0] sm:$0xff]
        %v1461 = vld [vmem:[#allocation6 + $0x8c8] sm:$0xff]
        %v1462 = vld [vmem:[#allocation6 + $0x8d0] sm:$0xff]
        %v1463 = vld [vmem:[#allocation6 + $0x8d8] sm:$0xff]
        %v1464 = vld [vmem:[#allocation6 + $0x8e0] sm:$0xff]
        %v1465 = vld [vmem:[#allocation6 + $0x8e8] sm:$0xff]
        %v1466 = vld [vmem:[#allocation6 + $0x8f0] sm:$0xff]
        %v1467 = vld [vmem:[#allocation6 + $0x8f8] sm:$0xff]
        %v1468 = vld [vmem:[#allocation6 + $0x900] sm:$0xff]
        %v1469 = vld [vmem:[#allocation6 + $0x908] sm:$0xff]
        %v1470 = vld [vmem:[#allocation6 + $0x910] sm:$0xff]
        %v1471 = vld [vmem:[#allocation6 + $0x918] sm:$0xff]
        %v1472 = vld [vmem:[#allocation6 + $0x920] sm:$0xff]
        %v1473 = vld [vmem:[#allocation6 + $0x928] sm:$0xff]
        %v1474 = vld [vmem:[#allocation6 + $0x930] sm:$0xff]
        %v1475 = vld [vmem:[#allocation6 + $0x938] sm:$0xff]
        %v1476 = vld [vmem:[#allocation6 + $0x940] sm:$0xff]
        %v1477 = vld [vmem:[#allocation6 + $0x948] sm:$0xff]
        %v1478 = vld [vmem:[#allocation6 + $0x950] sm:$0xff]
        %v1479 = vld [vmem:[#allocation6 + $0x958] sm:$0xff]
        %v1480 = vld [vmem:[#allocation6 + $0x960] sm:$0xff]
        %v1481 = vld [vmem:[#allocation6 + $0x968] sm:$0xff]
        %v1482 = vld [vmem:[#allocation6 + $0x970] sm:$0xff]
        %v1483 = vld [vmem:[#allocation6 + $0x978] sm:$0xff]
        %v1484 = vld [vmem:[#allocation6 + $0x980] sm:$0xff]
        %v1485 = vld [vmem:[#allocation6 + $0x988] sm:$0xff]
        %v1486 = vld [vmem:[#allocation6 + $0x990] sm:$0xff]
        %v1487 = vld [vmem:[#allocation6 + $0x998] sm:$0xff]
        %v1488 = vld [vmem:[#allocation6 + $0x9a0] sm:$0xff]
        %v1489 = vld [vmem:[#allocation6 + $0x9a8] sm:$0xff]
        %v1490 = vld [vmem:[#allocation6 + $0x9b0] sm:$0xff]
        %v1491 = vld [vmem:[#allocation6 + $0x9b8] sm:$0xff]
        %v1492 = vld [vmem:[#allocation6 + $0x9c0] sm:$0xff]
        %v1493 = vld [vmem:[#allocation6 + $0x9c8] sm:$0xff]
        %v1494 = vld [vmem:[#allocation6 + $0x9d0] sm:$0xff]
        %v1495 = vld [vmem:[#allocation6 + $0x9d8] sm:$0xff]
        %v1496 = vld [vmem:[#allocation6 + $0x9e0] sm:$0xff]
        %v1497 = vld [vmem:[#allocation6 + $0x9e8] sm:$0xff]
        %v1498 = vld [vmem:[#allocation6 + $0x9f0] sm:$0xff]
        %v1499 = vld [vmem:[#allocation6 + $0x9f8] sm:$0xff]
        %v1500 = vld [vmem:[#allocation6 + $0xa00] sm:$0xff]
        %v1501 = vld [vmem:[#allocation6 + $0xa08] sm:$0xff]
        %v1502 = vld [vmem:[#allocation6 + $0xa10] sm:$0xff]
        %v1503 = vld [vmem:[#allocation6 + $0xa18] sm:$0xff]
        %v1504 = vld [vmem:[#allocation6 + $0xa20] sm:$0xff]
        %v1505 = vld [vmem:[#allocation6 + $0xa28] sm:$0xff]
        %v1506 = vld [vmem:[#allocation6 + $0xa30] sm:$0xff]
        %v1507 = vld [vmem:[#allocation6 + $0xa38] sm:$0xff]
        %v1508 = vld [vmem:[#allocation6 + $0xa40] sm:$0xff]
        %v1509 = vld [vmem:[#allocation6 + $0xa48] sm:$0xff]
        %v1510 = vld [vmem:[#allocation6 + $0xa50] sm:$0xff]
        %v1511 = vld [vmem:[#allocation6 + $0xa58] sm:$0xff]
        %v1512 = vld [vmem:[#allocation6 + $0xa60] sm:$0xff]
        %v1513 = vld [vmem:[#allocation6 + $0xa68] sm:$0xff]
        %v1514 = vld [vmem:[#allocation6 + $0xa70] sm:$0xff]
        %v1515 = vld [vmem:[#allocation6 + $0xa78] sm:$0xff]
        %v1516 = vld [vmem:[#allocation7] sm:$0x3f]
        %v1518 = vlaneseq
        %v1519 = vshrl.u32 %v1518, 7
        %v1520 = vsub.s32 0, %v1519
        %v1521 = vrot.slane %v1516, %v1520
        %v1522 = vlaneseq
        %v1523 = vshrl.u32 %v1522, 7
        %v1524 = vsub.s32 1, %v1523
        %v1525 = vrot.slane %v1516, %v1524
        %v1526 = vlaneseq
        %v1527 = vshrl.u32 %v1526, 7
        %v1528 = vsub.s32 2, %v1527
        %v1529 = vrot.slane %v1516, %v1528
        %v1530 = vlaneseq
        %v1531 = vshrl.u32 %v1530, 7
        %v1532 = vsub.s32 3, %v1531
        %v1533 = vrot.slane %v1516, %v1532
        %v1534 = vlaneseq
        %v1535 = vshrl.u32 %v1534, 7
        %v1536 = vsub.s32 4, %v1535
        %v1537 = vrot.slane %v1516, %v1536
        %v1538 = vlaneseq
        %v1539 = vshrl.u32 %v1538, 7
        %v1540 = vsub.s32 5, %v1539
        %v1541 = vrot.slane %v1516, %v1540
        %v1884 = vunpack.c.l.b16 %v1180
        %v1885 = vunpack.c.h.b16 %v1180
        %v1886 = vunpack.c.l.b16 %v1181
        %v1887 = vunpack.c.h.b16 %v1181
        %v1888 = vunpack.c.l.b16 %v1182
        %v1889 = vunpack.c.h.b16 %v1182
        %v1890 = vunpack.c.l.b16 %v1183
        %v1891 = vunpack.c.h.b16 %v1183
        %v1892 = vunpack.c.l.b16 %v1184
        %v1893 = vunpack.c.h.b16 %v1184
        %v1894 = vunpack.c.l.b16 %v1185
        %v1895 = vunpack.c.h.b16 %v1185
        %v1896 = vunpack.c.l.b16 %v1186
        %v1897 = vunpack.c.h.b16 %v1186
        %v1898 = vunpack.c.l.b16 %v1187
        %v1899 = vunpack.c.h.b16 %v1187
        %v1900 = vunpack.c.l.b16 %v1188
        %v1901 = vunpack.c.h.b16 %v1188
        %v1902 = vunpack.c.l.b16 %v1189
        %v1903 = vunpack.c.h.b16 %v1189
        %v1904 = vunpack.c.l.b16 %v1190
        %v1905 = vunpack.c.h.b16 %v1190
        %v1906 = vunpack.c.l.b16 %v1191
        %v1907 = vunpack.c.h.b16 %v1191
        %v1908 = vunpack.c.l.b16 %v1192
        %v1909 = vunpack.c.h.b16 %v1192
        %v1910 = vunpack.c.l.b16 %v1193
        %v1911 = vunpack.c.h.b16 %v1193
        %v1912 = vunpack.c.l.b16 %v1194
        %v1913 = vunpack.c.h.b16 %v1194
        %v1914 = vunpack.c.l.b16 %v1195
        %v1915 = vunpack.c.h.b16 %v1195
        %v1916 = vunpack.c.l.b16 %v1196
        %v1917 = vunpack.c.h.b16 %v1196
        %v1918 = vunpack.c.l.b16 %v1197
        %v1919 = vunpack.c.h.b16 %v1197
        %v1920 = vunpack.c.l.b16 %v1198
        %v1921 = vunpack.c.h.b16 %v1198
        %v1922 = vunpack.c.l.b16 %v1199
        %v1923 = vunpack.c.h.b16 %v1199
        %v1924 = vunpack.c.l.b16 %v1200
        %v1925 = vunpack.c.h.b16 %v1200
        %v1926 = vunpack.c.l.b16 %v1201
        %v1927 = vunpack.c.h.b16 %v1201
        %v1928 = vunpack.c.l.b16 %v1202
        %v1929 = vunpack.c.h.b16 %v1202
        %v1930 = vunpack.c.l.b16 %v1203
        %v1931 = vunpack.c.h.b16 %v1203
        %v1932 = vunpack.c.l.b16 %v1204
        %v1933 = vunpack.c.h.b16 %v1204
        %v1934 = vunpack.c.l.b16 %v1205
        %v1935 = vunpack.c.h.b16 %v1205
        %v1936 = vunpack.c.l.b16 %v1206
        %v1937 = vunpack.c.h.b16 %v1206
        %v1938 = vunpack.c.l.b16 %v1207
        %v1939 = vunpack.c.h.b16 %v1207
        %v1940 = vunpack.c.l.b16 %v1208
        %v1941 = vunpack.c.h.b16 %v1208
        %v1942 = vunpack.c.l.b16 %v1209
        %v1943 = vunpack.c.h.b16 %v1209
        %v1944 = vunpack.c.l.b16 %v1210
        %v1945 = vunpack.c.h.b16 %v1210
        %v1946 = vunpack.c.l.b16 %v1211
        %v1947 = vunpack.c.h.b16 %v1211
        %v1948 = vunpack.c.l.b16 %v1212
        %v1949 = vunpack.c.h.b16 %v1212
        %v1950 = vunpack.c.l.b16 %v1213
        %v1951 = vunpack.c.h.b16 %v1213
        %v1952 = vunpack.c.l.b16 %v1214
        %v1953 = vunpack.c.h.b16 %v1214
        %v1954 = vunpack.c.l.b16 %v1215
        %v1955 = vunpack.c.h.b16 %v1215
        %v1956 = vunpack.c.l.b16 %v1216
        %v1957 = vunpack.c.h.b16 %v1216
        %v1958 = vunpack.c.l.b16 %v1217
        %v1959 = vunpack.c.h.b16 %v1217
        %v1960 = vunpack.c.l.b16 %v1218
        %v1961 = vunpack.c.h.b16 %v1218
        %v1962 = vunpack.c.l.b16 %v1219
        %v1963 = vunpack.c.h.b16 %v1219
        %v1964 = vunpack.c.l.b16 %v1220
        %v1965 = vunpack.c.h.b16 %v1220
        %v1966 = vunpack.c.l.b16 %v1221
        %v1967 = vunpack.c.h.b16 %v1221
        %v1968 = vunpack.c.l.b16 %v1222
        %v1969 = vunpack.c.h.b16 %v1222
        %v1970 = vunpack.c.l.b16 %v1223
        %v1971 = vunpack.c.h.b16 %v1223
        %v1972 = vunpack.c.l.b16 %v1224
        %v1973 = vunpack.c.h.b16 %v1224
        %v1974 = vunpack.c.l.b16 %v1225
        %v1975 = vunpack.c.h.b16 %v1225
        %v1976 = vunpack.c.l.b16 %v1226
        %v1977 = vunpack.c.h.b16 %v1226
        %v1978 = vunpack.c.l.b16 %v1227
        %v1979 = vunpack.c.h.b16 %v1227
        %v1980 = vunpack.c.l.b16 %v1228
        %v1981 = vunpack.c.h.b16 %v1228
        %v1982 = vunpack.c.l.b16 %v1229
        %v1983 = vunpack.c.h.b16 %v1229
        %v1984 = vunpack.c.l.b16 %v1230
        %v1985 = vunpack.c.h.b16 %v1230
        %v1986 = vunpack.c.l.b16 %v1231
        %v1987 = vunpack.c.h.b16 %v1231
        %v1988 = vunpack.c.l.b16 %v1232
        %v1989 = vunpack.c.h.b16 %v1232
        %v1990 = vunpack.c.l.b16 %v1233
        %v1991 = vunpack.c.h.b16 %v1233
        %v1992 = vunpack.c.l.b16 %v1234
        %v1993 = vunpack.c.h.b16 %v1234
        %v1994 = vunpack.c.l.b16 %v1235
        %v1995 = vunpack.c.h.b16 %v1235
        %v1996 = vunpack.c.l.b16 %v1236
        %v1997 = vunpack.c.h.b16 %v1236
        %v1998 = vunpack.c.l.b16 %v1237
        %v1999 = vunpack.c.h.b16 %v1237
        %v2000 = vunpack.c.l.b16 %v1238
        %v2001 = vunpack.c.h.b16 %v1238
        %v2002 = vunpack.c.l.b16 %v1239
        %v2003 = vunpack.c.h.b16 %v1239
        %v2004 = vunpack.c.l.b16 %v1240
        %v2005 = vunpack.c.h.b16 %v1240
        %v2006 = vunpack.c.l.b16 %v1241
        %v2007 = vunpack.c.h.b16 %v1241
        %v2008 = vunpack.c.l.b16 %v1242
        %v2009 = vunpack.c.h.b16 %v1242
        %v2010 = vunpack.c.l.b16 %v1243
        %v2011 = vunpack.c.h.b16 %v1243
        %v2012 = vunpack.c.l.b16 %v1244
        %v2013 = vunpack.c.h.b16 %v1244
        %v2014 = vunpack.c.l.b16 %v1245
        %v2015 = vunpack.c.h.b16 %v1245
        %v2016 = vunpack.c.l.b16 %v1246
        %v2017 = vunpack.c.h.b16 %v1246
        %v2018 = vunpack.c.l.b16 %v1247
        %v2019 = vunpack.c.h.b16 %v1247
        %v2020 = vunpack.c.l.b16 %v1248
        %v2021 = vunpack.c.h.b16 %v1248
        %v2022 = vunpack.c.l.b16 %v1249
        %v2023 = vunpack.c.h.b16 %v1249
        %v2024 = vunpack.c.l.b16 %v1250
        %v2025 = vunpack.c.h.b16 %v1250
        %v2026 = vunpack.c.l.b16 %v1251
        %v2027 = vunpack.c.h.b16 %v1251
        %v2028 = vunpack.c.l.b16 %v1252
        %v2029 = vunpack.c.h.b16 %v1252
        %v2030 = vunpack.c.l.b16 %v1253
        %v2031 = vunpack.c.h.b16 %v1253
        %v2032 = vunpack.c.l.b16 %v1254
        %v2033 = vunpack.c.h.b16 %v1254
        %v2034 = vunpack.c.l.b16 %v1255
        %v2035 = vunpack.c.h.b16 %v1255
        %v2036 = vunpack.c.l.b16 %v1256
        %v2037 = vunpack.c.h.b16 %v1256
        %v2038 = vunpack.c.l.b16 %v1257
        %v2039 = vunpack.c.h.b16 %v1257
        %v2040 = vunpack.c.l.b16 %v1258
        %v2041 = vunpack.c.h.b16 %v1258
        %v2042 = vunpack.c.l.b16 %v1259
        %v2043 = vunpack.c.h.b16 %v1259
        %v2044 = vunpack.c.l.b16 %v1260
        %v2045 = vunpack.c.h.b16 %v1260
        %v2046 = vunpack.c.l.b16 %v1261
        %v2047 = vunpack.c.h.b16 %v1261
        %v2048 = vunpack.c.l.b16 %v1262
        %v2049 = vunpack.c.h.b16 %v1262
        %v2050 = vunpack.c.l.b16 %v1263
        %v2051 = vunpack.c.h.b16 %v1263
        %v2052 = vunpack.c.l.b16 %v1264
        %v2053 = vunpack.c.h.b16 %v1264
        %v2054 = vunpack.c.l.b16 %v1265
        %v2055 = vunpack.c.h.b16 %v1265
        %v2056 = vunpack.c.l.b16 %v1266
        %v2057 = vunpack.c.h.b16 %v1266
        %v2058 = vunpack.c.l.b16 %v1267
        %v2059 = vunpack.c.h.b16 %v1267
        %v2060 = vunpack.c.l.b16 %v1268
        %v2061 = vunpack.c.h.b16 %v1268
        %v2062 = vunpack.c.l.b16 %v1269
        %v2063 = vunpack.c.h.b16 %v1269
        %v2064 = vunpack.c.l.b16 %v1270
        %v2065 = vunpack.c.h.b16 %v1270
        %v2066 = vunpack.c.l.b16 %v1271
        %v2067 = vunpack.c.h.b16 %v1271
        %v2068 = vunpack.c.l.b16 %v1272
        %v2069 = vunpack.c.h.b16 %v1272
        %v2070 = vunpack.c.l.b16 %v1273
        %v2071 = vunpack.c.h.b16 %v1273
        %v2072 = vunpack.c.l.b16 %v1274
        %v2073 = vunpack.c.h.b16 %v1274
        %v2074 = vunpack.c.l.b16 %v1275
        %v2075 = vunpack.c.h.b16 %v1275
        %v2076 = vunpack.c.l.b16 %v1276
        %v2077 = vunpack.c.h.b16 %v1276
        %v2078 = vunpack.c.l.b16 %v1277
        %v2079 = vunpack.c.h.b16 %v1277
        %v2080 = vunpack.c.l.b16 %v1278
        %v2081 = vunpack.c.h.b16 %v1278
        %v2082 = vunpack.c.l.b16 %v1279
        %v2083 = vunpack.c.h.b16 %v1279
        %v2084 = vunpack.c.l.b16 %v1280
        %v2085 = vunpack.c.h.b16 %v1280
        %v2086 = vunpack.c.l.b16 %v1281
        %v2087 = vunpack.c.h.b16 %v1281
        %v2088 = vunpack.c.l.b16 %v1282
        %v2089 = vunpack.c.h.b16 %v1282
        %v2090 = vunpack.c.l.b16 %v1283
        %v2091 = vunpack.c.h.b16 %v1283
        %v2092 = vunpack.c.l.b16 %v1284
        %v2093 = vunpack.c.h.b16 %v1284
        %v2094 = vunpack.c.l.b16 %v1285
        %v2095 = vunpack.c.h.b16 %v1285
        %v2096 = vunpack.c.l.b16 %v1286
        %v2097 = vunpack.c.h.b16 %v1286
        %v2098 = vunpack.c.l.b16 %v1287
        %v2099 = vunpack.c.h.b16 %v1287
        %v2100 = vunpack.c.l.b16 %v1288
        %v2101 = vunpack.c.h.b16 %v1288
        %v2102 = vunpack.c.l.b16 %v1289
        %v2103 = vunpack.c.h.b16 %v1289
        %v2104 = vunpack.c.l.b16 %v1290
        %v2105 = vunpack.c.h.b16 %v1290
        %v2106 = vunpack.c.l.b16 %v1291
        %v2107 = vunpack.c.h.b16 %v1291
        %v2108 = vunpack.c.l.b16 %v1292
        %v2109 = vunpack.c.h.b16 %v1292
        %v2110 = vunpack.c.l.b16 %v1293
        %v2111 = vunpack.c.h.b16 %v1293
        %v2112 = vunpack.c.l.b16 %v1294
        %v2113 = vunpack.c.h.b16 %v1294
        %v2114 = vunpack.c.l.b16 %v1295
        %v2115 = vunpack.c.h.b16 %v1295
        %v2116 = vunpack.c.l.b16 %v1296
        %v2117 = vunpack.c.h.b16 %v1296
        %v2118 = vunpack.c.l.b16 %v1297
        %v2119 = vunpack.c.h.b16 %v1297
        %v2120 = vunpack.c.l.b16 %v1298
        %v2121 = vunpack.c.h.b16 %v1298
        %v2122 = vunpack.c.l.b16 %v1299
        %v2123 = vunpack.c.h.b16 %v1299
        %v2124 = vunpack.c.l.b16 %v1300
        %v2125 = vunpack.c.h.b16 %v1300
        %v2126 = vunpack.c.l.b16 %v1301
        %v2127 = vunpack.c.h.b16 %v1301
        %v2128 = vunpack.c.l.b16 %v1302
        %v2129 = vunpack.c.h.b16 %v1302
        %v2130 = vunpack.c.l.b16 %v1303
        %v2131 = vunpack.c.h.b16 %v1303
        %v2132 = vunpack.c.l.b16 %v1304
        %v2133 = vunpack.c.h.b16 %v1304
        %v2134 = vunpack.c.l.b16 %v1305
        %v2135 = vunpack.c.h.b16 %v1305
        %v2136 = vunpack.c.l.b16 %v1306
        %v2137 = vunpack.c.h.b16 %v1306
        %v2138 = vunpack.c.l.b16 %v1307
        %v2139 = vunpack.c.h.b16 %v1307
        %v2140 = vunpack.c.l.b16 %v1308
        %v2141 = vunpack.c.h.b16 %v1308
        %v2142 = vunpack.c.l.b16 %v1309
        %v2143 = vunpack.c.h.b16 %v1309
        %v2144 = vunpack.c.l.b16 %v1310
        %v2145 = vunpack.c.h.b16 %v1310
        %v2146 = vunpack.c.l.b16 %v1311
        %v2147 = vunpack.c.h.b16 %v1311
        %v2148 = vunpack.c.l.b16 %v1312
        %v2149 = vunpack.c.h.b16 %v1312
        %v2150 = vunpack.c.l.b16 %v1313
        %v2151 = vunpack.c.h.b16 %v1313
        %v2152 = vunpack.c.l.b16 %v1314
        %v2153 = vunpack.c.h.b16 %v1314
        %v2154 = vunpack.c.l.b16 %v1315
        %v2155 = vunpack.c.h.b16 %v1315
        %v2156 = vunpack.c.l.b16 %v1316
        %v2157 = vunpack.c.h.b16 %v1316
        %v2158 = vunpack.c.l.b16 %v1317
        %v2159 = vunpack.c.h.b16 %v1317
        %v2160 = vunpack.c.l.b16 %v1318
        %v2161 = vunpack.c.h.b16 %v1318
        %v2162 = vunpack.c.l.b16 %v1319
        %v2163 = vunpack.c.h.b16 %v1319
        %v2164 = vunpack.c.l.b16 %v1320
        %v2165 = vunpack.c.h.b16 %v1320
        %v2166 = vunpack.c.l.b16 %v1321
        %v2167 = vunpack.c.h.b16 %v1321
        %v2168 = vunpack.c.l.b16 %v1322
        %v2169 = vunpack.c.h.b16 %v1322
        %v2170 = vunpack.c.l.b16 %v1323
        %v2171 = vunpack.c.h.b16 %v1323
        %v2172 = vunpack.c.l.b16 %v1324
        %v2173 = vunpack.c.h.b16 %v1324
        %v2174 = vunpack.c.l.b16 %v1325
        %v2175 = vunpack.c.h.b16 %v1325
        %v2176 = vunpack.c.l.b16 %v1326
        %v2177 = vunpack.c.h.b16 %v1326
        %v2178 = vunpack.c.l.b16 %v1327
        %v2179 = vunpack.c.h.b16 %v1327
        %v2180 = vunpack.c.l.b16 %v1328
        %v2181 = vunpack.c.h.b16 %v1328
        %v2182 = vunpack.c.l.b16 %v1329
        %v2183 = vunpack.c.h.b16 %v1329
        %v2184 = vunpack.c.l.b16 %v1330
        %v2185 = vunpack.c.h.b16 %v1330
        %v2186 = vunpack.c.l.b16 %v1331
        %v2187 = vunpack.c.h.b16 %v1331
        %v2188 = vunpack.c.l.b16 %v1332
        %v2189 = vunpack.c.h.b16 %v1332
        %v2190 = vunpack.c.l.b16 %v1333
        %v2191 = vunpack.c.h.b16 %v1333
        %v2192 = vunpack.c.l.b16 %v1334
        %v2193 = vunpack.c.h.b16 %v1334
        %v2194 = vunpack.c.l.b16 %v1335
        %v2195 = vunpack.c.h.b16 %v1335
        %v2196 = vunpack.c.l.b16 %v1336
        %v2197 = vunpack.c.h.b16 %v1336
        %v2198 = vunpack.c.l.b16 %v1337
        %v2199 = vunpack.c.h.b16 %v1337
        %v2200 = vunpack.c.l.b16 %v1338
        %v2201 = vunpack.c.h.b16 %v1338
        %v2202 = vunpack.c.l.b16 %v1339
        %v2203 = vunpack.c.h.b16 %v1339
        %v2204 = vunpack.c.l.b16 %v1340
        %v2205 = vunpack.c.h.b16 %v1340
        %v2206 = vunpack.c.l.b16 %v1341
        %v2207 = vunpack.c.h.b16 %v1341
        %v2208 = vunpack.c.l.b16 %v1342
        %v2209 = vunpack.c.h.b16 %v1342
        %v2210 = vunpack.c.l.b16 %v1343
        %v2211 = vunpack.c.h.b16 %v1343
        %v2212 = vunpack.c.l.b16 %v1344
        %v2213 = vunpack.c.h.b16 %v1344
        %v2214 = vunpack.c.l.b16 %v1345
        %v2215 = vunpack.c.h.b16 %v1345
        %v2216 = vunpack.c.l.b16 %v1346
        %v2217 = vunpack.c.h.b16 %v1346
        %v2218 = vunpack.c.l.b16 %v1347
        %v2219 = vunpack.c.h.b16 %v1347
        %v2220 = vunpack.c.l.b16 %v1348
        %v2221 = vunpack.c.h.b16 %v1348
        %v2222 = vunpack.c.l.b16 %v1349
        %v2223 = vunpack.c.h.b16 %v1349
        %v2224 = vunpack.c.l.b16 %v1350
        %v2225 = vunpack.c.h.b16 %v1350
        %v2226 = vunpack.c.l.b16 %v1351
        %v2227 = vunpack.c.h.b16 %v1351
        %v2228 = vunpack.c.l.b16 %v1352
        %v2229 = vunpack.c.h.b16 %v1352
        %v2230 = vunpack.c.l.b16 %v1353
        %v2231 = vunpack.c.h.b16 %v1353
        %v2232 = vunpack.c.l.b16 %v1354
        %v2233 = vunpack.c.h.b16 %v1354
        %v2234 = vunpack.c.l.b16 %v1355
        %v2235 = vunpack.c.h.b16 %v1355
        %v2236 = vunpack.c.l.b16 %v1356
        %v2237 = vunpack.c.h.b16 %v1356
        %v2238 = vunpack.c.l.b16 %v1357
        %v2239 = vunpack.c.h.b16 %v1357
        %v2240 = vunpack.c.l.b16 %v1358
        %v2241 = vunpack.c.h.b16 %v1358
        %v2242 = vunpack.c.l.b16 %v1359
        %v2243 = vunpack.c.h.b16 %v1359
        %v2244 = vunpack.c.l.b16 %v1360
        %v2245 = vunpack.c.h.b16 %v1360
        %v2246 = vunpack.c.l.b16 %v1361
        %v2247 = vunpack.c.h.b16 %v1361
        %v2248 = vunpack.c.l.b16 %v1362
        %v2249 = vunpack.c.h.b16 %v1362
        %v2250 = vunpack.c.l.b16 %v1363
        %v2251 = vunpack.c.h.b16 %v1363
        %v2252 = vunpack.c.l.b16 %v1364
        %v2253 = vunpack.c.h.b16 %v1364
        %v2254 = vunpack.c.l.b16 %v1365
        %v2255 = vunpack.c.h.b16 %v1365
        %v2256 = vunpack.c.l.b16 %v1366
        %v2257 = vunpack.c.h.b16 %v1366
        %v2258 = vunpack.c.l.b16 %v1367
        %v2259 = vunpack.c.h.b16 %v1367
        %v2260 = vunpack.c.l.b16 %v1368
        %v2261 = vunpack.c.h.b16 %v1368
        %v2262 = vunpack.c.l.b16 %v1369
        %v2263 = vunpack.c.h.b16 %v1369
        %v2264 = vunpack.c.l.b16 %v1370
        %v2265 = vunpack.c.h.b16 %v1370
        %v2266 = vunpack.c.l.b16 %v1371
        %v2267 = vunpack.c.h.b16 %v1371
        %v2268 = vunpack.c.l.b16 %v1372
        %v2269 = vunpack.c.h.b16 %v1372
        %v2270 = vunpack.c.l.b16 %v1373
        %v2271 = vunpack.c.h.b16 %v1373
        %v2272 = vunpack.c.l.b16 %v1374
        %v2273 = vunpack.c.h.b16 %v1374
        %v2274 = vunpack.c.l.b16 %v1375
        %v2275 = vunpack.c.h.b16 %v1375
        %v2276 = vunpack.c.l.b16 %v1376
        %v2277 = vunpack.c.h.b16 %v1376
        %v2278 = vunpack.c.l.b16 %v1377
        %v2279 = vunpack.c.h.b16 %v1377
        %v2280 = vunpack.c.l.b16 %v1378
        %v2281 = vunpack.c.h.b16 %v1378
        %v2282 = vunpack.c.l.b16 %v1379
        %v2283 = vunpack.c.h.b16 %v1379
        %v2284 = vunpack.c.l.b16 %v1380
        %v2285 = vunpack.c.h.b16 %v1380
        %v2286 = vunpack.c.l.b16 %v1381
        %v2287 = vunpack.c.h.b16 %v1381
        %v2288 = vunpack.c.l.b16 %v1382
        %v2289 = vunpack.c.h.b16 %v1382
        %v2290 = vunpack.c.l.b16 %v1383
        %v2291 = vunpack.c.h.b16 %v1383
        %v2292 = vunpack.c.l.b16 %v1384
        %v2293 = vunpack.c.h.b16 %v1384
        %v2294 = vunpack.c.l.b16 %v1385
        %v2295 = vunpack.c.h.b16 %v1385
        %v2296 = vunpack.c.l.b16 %v1386
        %v2297 = vunpack.c.h.b16 %v1386
        %v2298 = vunpack.c.l.b16 %v1387
        %v2299 = vunpack.c.h.b16 %v1387
        %v2300 = vunpack.c.l.b16 %v1388
        %v2301 = vunpack.c.h.b16 %v1388
        %v2302 = vunpack.c.l.b16 %v1389
        %v2303 = vunpack.c.h.b16 %v1389
        %v2304 = vunpack.c.l.b16 %v1390
        %v2305 = vunpack.c.h.b16 %v1390
        %v2306 = vunpack.c.l.b16 %v1391
        %v2307 = vunpack.c.h.b16 %v1391
        %v2308 = vunpack.c.l.b16 %v1392
        %v2309 = vunpack.c.h.b16 %v1392
        %v2310 = vunpack.c.l.b16 %v1393
        %v2311 = vunpack.c.h.b16 %v1393
        %v2312 = vunpack.c.l.b16 %v1394
        %v2313 = vunpack.c.h.b16 %v1394
        %v2314 = vunpack.c.l.b16 %v1395
        %v2315 = vunpack.c.h.b16 %v1395
        %v2316 = vunpack.c.l.b16 %v1396
        %v2317 = vunpack.c.h.b16 %v1396
        %v2318 = vunpack.c.l.b16 %v1397
        %v2319 = vunpack.c.h.b16 %v1397
        %v2320 = vunpack.c.l.b16 %v1398
        %v2321 = vunpack.c.h.b16 %v1398
        %v2322 = vunpack.c.l.b16 %v1399
        %v2323 = vunpack.c.h.b16 %v1399
        %v2324 = vunpack.c.l.b16 %v1400
        %v2325 = vunpack.c.h.b16 %v1400
        %v2326 = vunpack.c.l.b16 %v1401
        %v2327 = vunpack.c.h.b16 %v1401
        %v2328 = vunpack.c.l.b16 %v1402
        %v2329 = vunpack.c.h.b16 %v1402
        %v2330 = vunpack.c.l.b16 %v1403
        %v2331 = vunpack.c.h.b16 %v1403
        %v2332 = vunpack.c.l.b16 %v1404
        %v2333 = vunpack.c.h.b16 %v1404
        %v2334 = vunpack.c.l.b16 %v1405
        %v2335 = vunpack.c.h.b16 %v1405
        %v2336 = vunpack.c.l.b16 %v1406
        %v2337 = vunpack.c.h.b16 %v1406
        %v2338 = vunpack.c.l.b16 %v1407
        %v2339 = vunpack.c.h.b16 %v1407
        %v2340 = vunpack.c.l.b16 %v1408
        %v2341 = vunpack.c.h.b16 %v1408
        %v2342 = vunpack.c.l.b16 %v1409
        %v2343 = vunpack.c.h.b16 %v1409
        %v2344 = vunpack.c.l.b16 %v1410
        %v2345 = vunpack.c.h.b16 %v1410
        %v2346 = vunpack.c.l.b16 %v1411
        %v2347 = vunpack.c.h.b16 %v1411
        %v2348 = vunpack.c.l.b16 %v1412
        %v2349 = vunpack.c.h.b16 %v1412
        %v2350 = vunpack.c.l.b16 %v1413
        %v2351 = vunpack.c.h.b16 %v1413
        %v2352 = vunpack.c.l.b16 %v1414
        %v2353 = vunpack.c.h.b16 %v1414
        %v2354 = vunpack.c.l.b16 %v1415
        %v2355 = vunpack.c.h.b16 %v1415
        %v2356 = vunpack.c.l.b16 %v1416
        %v2357 = vunpack.c.h.b16 %v1416
        %v2358 = vunpack.c.l.b16 %v1417
        %v2359 = vunpack.c.h.b16 %v1417
        %v2360 = vunpack.c.l.b16 %v1418
        %v2361 = vunpack.c.h.b16 %v1418
        %v2362 = vunpack.c.l.b16 %v1419
        %v2363 = vunpack.c.h.b16 %v1419
        %v2364 = vunpack.c.l.b16 %v1420
        %v2365 = vunpack.c.h.b16 %v1420
        %v2366 = vunpack.c.l.b16 %v1421
        %v2367 = vunpack.c.h.b16 %v1421
        %v2368 = vunpack.c.l.b16 %v1422
        %v2369 = vunpack.c.h.b16 %v1422
        %v2370 = vunpack.c.l.b16 %v1423
        %v2371 = vunpack.c.h.b16 %v1423
        %v2372 = vunpack.c.l.b16 %v1424
        %v2373 = vunpack.c.h.b16 %v1424
        %v2374 = vunpack.c.l.b16 %v1425
        %v2375 = vunpack.c.h.b16 %v1425
        %v2376 = vunpack.c.l.b16 %v1426
        %v2377 = vunpack.c.h.b16 %v1426
        %v2378 = vunpack.c.l.b16 %v1427
        %v2379 = vunpack.c.h.b16 %v1427
        %v2380 = vunpack.c.l.b16 %v1428
        %v2381 = vunpack.c.h.b16 %v1428
        %v2382 = vunpack.c.l.b16 %v1429
        %v2383 = vunpack.c.h.b16 %v1429
        %v2384 = vunpack.c.l.b16 %v1430
        %v2385 = vunpack.c.h.b16 %v1430
        %v2386 = vunpack.c.l.b16 %v1431
        %v2387 = vunpack.c.h.b16 %v1431
        %v2388 = vunpack.c.l.b16 %v1432
        %v2389 = vunpack.c.h.b16 %v1432
        %v2390 = vunpack.c.l.b16 %v1433
        %v2391 = vunpack.c.h.b16 %v1433
        %v2392 = vunpack.c.l.b16 %v1434
        %v2393 = vunpack.c.h.b16 %v1434
        %v2394 = vunpack.c.l.b16 %v1435
        %v2395 = vunpack.c.h.b16 %v1435
        %v2396 = vunpack.c.l.b16 %v1436
        %v2397 = vunpack.c.h.b16 %v1436
        %v2398 = vunpack.c.l.b16 %v1437
        %v2399 = vunpack.c.h.b16 %v1437
        %v2400 = vunpack.c.l.b16 %v1438
        %v2401 = vunpack.c.h.b16 %v1438
        %v2402 = vunpack.c.l.b16 %v1439
        %v2403 = vunpack.c.h.b16 %v1439
        %v2404 = vunpack.c.l.b16 %v1440
        %v2405 = vunpack.c.h.b16 %v1440
        %v2406 = vunpack.c.l.b16 %v1441
        %v2407 = vunpack.c.h.b16 %v1441
        %v2408 = vunpack.c.l.b16 %v1442
        %v2409 = vunpack.c.h.b16 %v1442
        %v2410 = vunpack.c.l.b16 %v1443
        %v2411 = vunpack.c.h.b16 %v1443
        %v2412 = vunpack.c.l.b16 %v1444
        %v2413 = vunpack.c.h.b16 %v1444
        %v2414 = vunpack.c.l.b16 %v1445
        %v2415 = vunpack.c.h.b16 %v1445
        %v2416 = vunpack.c.l.b16 %v1446
        %v2417 = vunpack.c.h.b16 %v1446
        %v2418 = vunpack.c.l.b16 %v1447
        %v2419 = vunpack.c.h.b16 %v1447
        %v2420 = vunpack.c.l.b16 %v1448
        %v2421 = vunpack.c.h.b16 %v1448
        %v2422 = vunpack.c.l.b16 %v1449
        %v2423 = vunpack.c.h.b16 %v1449
        %v2424 = vunpack.c.l.b16 %v1450
        %v2425 = vunpack.c.h.b16 %v1450
        %v2426 = vunpack.c.l.b16 %v1451
        %v2427 = vunpack.c.h.b16 %v1451
        %v2428 = vunpack.c.l.b16 %v1452
        %v2429 = vunpack.c.h.b16 %v1452
        %v2430 = vunpack.c.l.b16 %v1453
        %v2431 = vunpack.c.h.b16 %v1453
        %v2432 = vunpack.c.l.b16 %v1454
        %v2433 = vunpack.c.h.b16 %v1454
        %v2434 = vunpack.c.l.b16 %v1455
        %v2435 = vunpack.c.h.b16 %v1455
        %v2436 = vunpack.c.l.b16 %v1456
        %v2437 = vunpack.c.h.b16 %v1456
        %v2438 = vunpack.c.l.b16 %v1457
        %v2439 = vunpack.c.h.b16 %v1457
        %v2440 = vunpack.c.l.b16 %v1458
        %v2441 = vunpack.c.h.b16 %v1458
        %v2442 = vunpack.c.l.b16 %v1459
        %v2443 = vunpack.c.h.b16 %v1459
        %v2444 = vunpack.c.l.b16 %v1460
        %v2445 = vunpack.c.h.b16 %v1460
        %v2446 = vunpack.c.l.b16 %v1461
        %v2447 = vunpack.c.h.b16 %v1461
        %v2448 = vunpack.c.l.b16 %v1462
        %v2449 = vunpack.c.h.b16 %v1462
        %v2450 = vunpack.c.l.b16 %v1463
        %v2451 = vunpack.c.h.b16 %v1463
        %v2452 = vunpack.c.l.b16 %v1464
        %v2453 = vunpack.c.h.b16 %v1464
        %v2454 = vunpack.c.l.b16 %v1465
        %v2455 = vunpack.c.h.b16 %v1465
        %v2456 = vunpack.c.l.b16 %v1466
        %v2457 = vunpack.c.h.b16 %v1466
        %v2458 = vunpack.c.l.b16 %v1467
        %v2459 = vunpack.c.h.b16 %v1467
        %v2460 = vunpack.c.l.b16 %v1468
        %v2461 = vunpack.c.h.b16 %v1468
        %v2462 = vunpack.c.l.b16 %v1469
        %v2463 = vunpack.c.h.b16 %v1469
        %v2464 = vunpack.c.l.b16 %v1470
        %v2465 = vunpack.c.h.b16 %v1470
        %v2466 = vunpack.c.l.b16 %v1471
        %v2467 = vunpack.c.h.b16 %v1471
        %v2468 = vunpack.c.l.b16 %v1472
        %v2469 = vunpack.c.h.b16 %v1472
        %v2470 = vunpack.c.l.b16 %v1473
        %v2471 = vunpack.c.h.b16 %v1473
        %v2472 = vunpack.c.l.b16 %v1474
        %v2473 = vunpack.c.h.b16 %v1474
        %v2474 = vunpack.c.l.b16 %v1475
        %v2475 = vunpack.c.h.b16 %v1475
        %v2476 = vunpack.c.l.b16 %v1476
        %v2477 = vunpack.c.h.b16 %v1476
        %v2478 = vunpack.c.l.b16 %v1477
        %v2479 = vunpack.c.h.b16 %v1477
        %v2480 = vunpack.c.l.b16 %v1478
        %v2481 = vunpack.c.h.b16 %v1478
        %v2482 = vunpack.c.l.b16 %v1479
        %v2483 = vunpack.c.h.b16 %v1479
        %v2484 = vunpack.c.l.b16 %v1480
        %v2485 = vunpack.c.h.b16 %v1480
        %v2486 = vunpack.c.l.b16 %v1481
        %v2487 = vunpack.c.h.b16 %v1481
        %v2488 = vunpack.c.l.b16 %v1482
        %v2489 = vunpack.c.h.b16 %v1482
        %v2490 = vunpack.c.l.b16 %v1483
        %v2491 = vunpack.c.h.b16 %v1483
        %v2492 = vunpack.c.l.b16 %v1484
        %v2493 = vunpack.c.h.b16 %v1484
        %v2494 = vunpack.c.l.b16 %v1485
        %v2495 = vunpack.c.h.b16 %v1485
        %v2496 = vunpack.c.l.b16 %v1486
        %v2497 = vunpack.c.h.b16 %v1486
        %v2498 = vunpack.c.l.b16 %v1487
        %v2499 = vunpack.c.h.b16 %v1487
        %v2500 = vunpack.c.l.b16 %v1488
        %v2501 = vunpack.c.h.b16 %v1488
        %v2502 = vunpack.c.l.b16 %v1489
        %v2503 = vunpack.c.h.b16 %v1489
        %v2504 = vunpack.c.l.b16 %v1490
        %v2505 = vunpack.c.h.b16 %v1490
        %v2506 = vunpack.c.l.b16 %v1491
        %v2507 = vunpack.c.h.b16 %v1491
        %v2508 = vunpack.c.l.b16 %v1492
        %v2509 = vunpack.c.h.b16 %v1492
        %v2510 = vunpack.c.l.b16 %v1493
        %v2511 = vunpack.c.h.b16 %v1493
        %v2512 = vunpack.c.l.b16 %v1494
        %v2513 = vunpack.c.h.b16 %v1494
        %v2514 = vunpack.c.l.b16 %v1495
        %v2515 = vunpack.c.h.b16 %v1495
        %v2516 = vunpack.c.l.b16 %v1496
        %v2517 = vunpack.c.h.b16 %v1496
        %v2518 = vunpack.c.l.b16 %v1497
        %v2519 = vunpack.c.h.b16 %v1497
        %v2520 = vunpack.c.l.b16 %v1498
        %v2521 = vunpack.c.h.b16 %v1498
        %v2522 = vunpack.c.l.b16 %v1499
        %v2523 = vunpack.c.h.b16 %v1499
        %v2524 = vunpack.c.l.b16 %v1500
        %v2525 = vunpack.c.h.b16 %v1500
        %v2526 = vunpack.c.l.b16 %v1501
        %v2527 = vunpack.c.h.b16 %v1501
        %v2528 = vunpack.c.l.b16 %v1502
        %v2529 = vunpack.c.h.b16 %v1502
        %v2530 = vunpack.c.l.b16 %v1503
        %v2531 = vunpack.c.h.b16 %v1503
        %v2532 = vunpack.c.l.b16 %v1504
        %v2533 = vunpack.c.h.b16 %v1504
        %v2534 = vunpack.c.l.b16 %v1505
        %v2535 = vunpack.c.h.b16 %v1505
        %v2536 = vunpack.c.l.b16 %v1506
        %v2537 = vunpack.c.h.b16 %v1506
        %v2538 = vunpack.c.l.b16 %v1507
        %v2539 = vunpack.c.h.b16 %v1507
        %v2540 = vunpack.c.l.b16 %v1508
        %v2541 = vunpack.c.h.b16 %v1508
        %v2542 = vunpack.c.l.b16 %v1509
        %v2543 = vunpack.c.h.b16 %v1509
        %v2544 = vunpack.c.l.b16 %v1510
        %v2545 = vunpack.c.h.b16 %v1510
        %v2546 = vunpack.c.l.b16 %v1511
        %v2547 = vunpack.c.h.b16 %v1511
        %v2548 = vunpack.c.l.b16 %v1512
        %v2549 = vunpack.c.h.b16 %v1512
        %v2550 = vunpack.c.l.b16 %v1513
        %v2551 = vunpack.c.h.b16 %v1513
        %v2552 = vunpack.c.l.b16 %v1514
        %v2553 = vunpack.c.h.b16 %v1514
        %v2554 = vunpack.c.l.b16 %v1515
        %v2555 = vunpack.c.h.b16 %v1515
        %v2556 = vpack.c.b16 %v1890, %v1884
        %v2557 = vpack.c.b16 %v1891, %v1885
        %v2558 = vpack.c.b16 %v1892, %v1886
        %v2559 = vpack.c.b16 %v1893, %v1887
        %v2560 = vpack.c.b16 %v1894, %v1888
        %v2561 = vpack.c.b16 %v1895, %v1889
        %v2562 = vpack.c.b16 %v1902, %v1896
        %v2563 = vpack.c.b16 %v1903, %v1897
        %v2564 = vpack.c.b16 %v1904, %v1898
        %v2565 = vpack.c.b16 %v1905, %v1899
        %v2566 = vpack.c.b16 %v1906, %v1900
        %v2567 = vpack.c.b16 %v1907, %v1901
        %v2568 = vpack.c.b16 %v1914, %v1908
        %v2569 = vpack.c.b16 %v1915, %v1909
        %v2570 = vpack.c.b16 %v1916, %v1910
        %v2571 = vpack.c.b16 %v1917, %v1911
        %v2572 = vpack.c.b16 %v1918, %v1912
        %v2573 = vpack.c.b16 %v1919, %v1913
        %v2574 = vpack.c.b16 %v1926, %v1920
        %v2575 = vpack.c.b16 %v1927, %v1921
        %v2576 = vpack.c.b16 %v1928, %v1922
        %v2577 = vpack.c.b16 %v1929, %v1923
        %v2578 = vpack.c.b16 %v1930, %v1924
        %v2579 = vpack.c.b16 %v1931, %v1925
        %v2580 = vpack.c.b16 %v1938, %v1932
        %v2581 = vpack.c.b16 %v1939, %v1933
        %v2582 = vpack.c.b16 %v1940, %v1934
        %v2583 = vpack.c.b16 %v1941, %v1935
        %v2584 = vpack.c.b16 %v1942, %v1936
        %v2585 = vpack.c.b16 %v1943, %v1937
        %v2586 = vpack.c.b16 %v1950, %v1944
        %v2587 = vpack.c.b16 %v1951, %v1945
        %v2588 = vpack.c.b16 %v1952, %v1946
        %v2589 = vpack.c.b16 %v1953, %v1947
        %v2590 = vpack.c.b16 %v1954, %v1948
        %v2591 = vpack.c.b16 %v1955, %v1949
        %v2592 = vpack.c.b16 %v1962, %v1956
        %v2593 = vpack.c.b16 %v1963, %v1957
        %v2594 = vpack.c.b16 %v1964, %v1958
        %v2595 = vpack.c.b16 %v1965, %v1959
        %v2596 = vpack.c.b16 %v1966, %v1960
        %v2597 = vpack.c.b16 %v1967, %v1961
        %v2598 = vpack.c.b16 %v1974, %v1968
        %v2599 = vpack.c.b16 %v1975, %v1969
        %v2600 = vpack.c.b16 %v1976, %v1970
        %v2601 = vpack.c.b16 %v1977, %v1971
        %v2602 = vpack.c.b16 %v1978, %v1972
        %v2603 = vpack.c.b16 %v1979, %v1973
        %v2604 = vpack.c.b16 %v1986, %v1980
        %v2605 = vpack.c.b16 %v1987, %v1981
        %v2606 = vpack.c.b16 %v1988, %v1982
        %v2607 = vpack.c.b16 %v1989, %v1983
        %v2608 = vpack.c.b16 %v1990, %v1984
        %v2609 = vpack.c.b16 %v1991, %v1985
        %v2610 = vpack.c.b16 %v1998, %v1992
        %v2611 = vpack.c.b16 %v1999, %v1993
        %v2612 = vpack.c.b16 %v2000, %v1994
        %v2613 = vpack.c.b16 %v2001, %v1995
        %v2614 = vpack.c.b16 %v2002, %v1996
        %v2615 = vpack.c.b16 %v2003, %v1997
        %v2616 = vpack.c.b16 %v2010, %v2004
        %v2617 = vpack.c.b16 %v2011, %v2005
        %v2618 = vpack.c.b16 %v2012, %v2006
        %v2619 = vpack.c.b16 %v2013, %v2007
        %v2620 = vpack.c.b16 %v2014, %v2008
        %v2621 = vpack.c.b16 %v2015, %v2009
        %v2622 = vpack.c.b16 %v2022, %v2016
        %v2623 = vpack.c.b16 %v2023, %v2017
        %v2624 = vpack.c.b16 %v2024, %v2018
        %v2625 = vpack.c.b16 %v2025, %v2019
        %v2626 = vpack.c.b16 %v2026, %v2020
        %v2627 = vpack.c.b16 %v2027, %v2021
        %v2628 = vpack.c.b16 %v2034, %v2028
        %v2629 = vpack.c.b16 %v2035, %v2029
        %v2630 = vpack.c.b16 %v2036, %v2030
        %v2631 = vpack.c.b16 %v2037, %v2031
        %v2632 = vpack.c.b16 %v2038, %v2032
        %v2633 = vpack.c.b16 %v2039, %v2033
        %v2634 = vpack.c.b16 %v2046, %v2040
        %v2635 = vpack.c.b16 %v2047, %v2041
        %v2636 = vpack.c.b16 %v2048, %v2042
        %v2637 = vpack.c.b16 %v2049, %v2043
        %v2638 = vpack.c.b16 %v2050, %v2044
        %v2639 = vpack.c.b16 %v2051, %v2045
        %v2640 = vpack.c.b16 %v2058, %v2052
        %v2641 = vpack.c.b16 %v2059, %v2053
        %v2642 = vpack.c.b16 %v2060, %v2054
        %v2643 = vpack.c.b16 %v2061, %v2055
        %v2644 = vpack.c.b16 %v2062, %v2056
        %v2645 = vpack.c.b16 %v2063, %v2057
        %v2646 = vpack.c.b16 %v2070, %v2064
        %v2647 = vpack.c.b16 %v2071, %v2065
        %v2648 = vpack.c.b16 %v2072, %v2066
        %v2649 = vpack.c.b16 %v2073, %v2067
        %v2650 = vpack.c.b16 %v2074, %v2068
        %v2651 = vpack.c.b16 %v2075, %v2069
        %v2652 = vpack.c.b16 %v2082, %v2076
        %v2653 = vpack.c.b16 %v2083, %v2077
        %v2654 = vpack.c.b16 %v2084, %v2078
        %v2655 = vpack.c.b16 %v2085, %v2079
        %v2656 = vpack.c.b16 %v2086, %v2080
        %v2657 = vpack.c.b16 %v2087, %v2081
        %v2658 = vpack.c.b16 %v2094, %v2088
        %v2659 = vpack.c.b16 %v2095, %v2089
        %v2660 = vpack.c.b16 %v2096, %v2090
        %v2661 = vpack.c.b16 %v2097, %v2091
        %v2662 = vpack.c.b16 %v2098, %v2092
        %v2663 = vpack.c.b16 %v2099, %v2093
        %v2664 = vpack.c.b16 %v2106, %v2100
        %v2665 = vpack.c.b16 %v2107, %v2101
        %v2666 = vpack.c.b16 %v2108, %v2102
        %v2667 = vpack.c.b16 %v2109, %v2103
        %v2668 = vpack.c.b16 %v2110, %v2104
        %v2669 = vpack.c.b16 %v2111, %v2105
        %v2670 = vpack.c.b16 %v2118, %v2112
        %v2671 = vpack.c.b16 %v2119, %v2113
        %v2672 = vpack.c.b16 %v2120, %v2114
        %v2673 = vpack.c.b16 %v2121, %v2115
        %v2674 = vpack.c.b16 %v2122, %v2116
        %v2675 = vpack.c.b16 %v2123, %v2117
        %v2676 = vpack.c.b16 %v2130, %v2124
        %v2677 = vpack.c.b16 %v2131, %v2125
        %v2678 = vpack.c.b16 %v2132, %v2126
        %v2679 = vpack.c.b16 %v2133, %v2127
        %v2680 = vpack.c.b16 %v2134, %v2128
        %v2681 = vpack.c.b16 %v2135, %v2129
        %v2682 = vpack.c.b16 %v2142, %v2136
        %v2683 = vpack.c.b16 %v2143, %v2137
        %v2684 = vpack.c.b16 %v2144, %v2138
        %v2685 = vpack.c.b16 %v2145, %v2139
        %v2686 = vpack.c.b16 %v2146, %v2140
        %v2687 = vpack.c.b16 %v2147, %v2141
        %v2688 = vpack.c.b16 %v2154, %v2148
        %v2689 = vpack.c.b16 %v2155, %v2149
        %v2690 = vpack.c.b16 %v2156, %v2150
        %v2691 = vpack.c.b16 %v2157, %v2151
        %v2692 = vpack.c.b16 %v2158, %v2152
        %v2693 = vpack.c.b16 %v2159, %v2153
        %v2694 = vpack.c.b16 %v2166, %v2160
        %v2695 = vpack.c.b16 %v2167, %v2161
        %v2696 = vpack.c.b16 %v2168, %v2162
        %v2697 = vpack.c.b16 %v2169, %v2163
        %v2698 = vpack.c.b16 %v2170, %v2164
        %v2699 = vpack.c.b16 %v2171, %v2165
        %v2700 = vpack.c.b16 %v2178, %v2172
        %v2701 = vpack.c.b16 %v2179, %v2173
        %v2702 = vpack.c.b16 %v2180, %v2174
        %v2703 = vpack.c.b16 %v2181, %v2175
        %v2704 = vpack.c.b16 %v2182, %v2176
        %v2705 = vpack.c.b16 %v2183, %v2177
        %v2706 = vpack.c.b16 %v2190, %v2184
        %v2707 = vpack.c.b16 %v2191, %v2185
        %v2708 = vpack.c.b16 %v2192, %v2186
        %v2709 = vpack.c.b16 %v2193, %v2187
        %v2710 = vpack.c.b16 %v2194, %v2188
        %v2711 = vpack.c.b16 %v2195, %v2189
        %v2712 = vpack.c.b16 %v2202, %v2196
        %v2713 = vpack.c.b16 %v2203, %v2197
        %v2714 = vpack.c.b16 %v2204, %v2198
        %v2715 = vpack.c.b16 %v2205, %v2199
        %v2716 = vpack.c.b16 %v2206, %v2200
        %v2717 = vpack.c.b16 %v2207, %v2201
        %v2718 = vpack.c.b16 %v2214, %v2208
        %v2719 = vpack.c.b16 %v2215, %v2209
        %v2720 = vpack.c.b16 %v2216, %v2210
        %v2721 = vpack.c.b16 %v2217, %v2211
        %v2722 = vpack.c.b16 %v2218, %v2212
        %v2723 = vpack.c.b16 %v2219, %v2213
        %v2724 = vpack.c.b16 %v2226, %v2220
        %v2725 = vpack.c.b16 %v2227, %v2221
        %v2726 = vpack.c.b16 %v2228, %v2222
        %v2727 = vpack.c.b16 %v2229, %v2223
        %v2728 = vpack.c.b16 %v2230, %v2224
        %v2729 = vpack.c.b16 %v2231, %v2225
        %v2730 = vpack.c.b16 %v2238, %v2232
        %v2731 = vpack.c.b16 %v2239, %v2233
        %v2732 = vpack.c.b16 %v2240, %v2234
        %v2733 = vpack.c.b16 %v2241, %v2235
        %v2734 = vpack.c.b16 %v2242, %v2236
        %v2735 = vpack.c.b16 %v2243, %v2237
        %v2736 = vpack.c.b16 %v2250, %v2244
        %v2737 = vpack.c.b16 %v2251, %v2245
        %v2738 = vpack.c.b16 %v2252, %v2246
        %v2739 = vpack.c.b16 %v2253, %v2247
        %v2740 = vpack.c.b16 %v2254, %v2248
        %v2741 = vpack.c.b16 %v2255, %v2249
        %v2742 = vpack.c.b16 %v2262, %v2256
        %v2743 = vpack.c.b16 %v2263, %v2257
        %v2744 = vpack.c.b16 %v2264, %v2258
        %v2745 = vpack.c.b16 %v2265, %v2259
        %v2746 = vpack.c.b16 %v2266, %v2260
        %v2747 = vpack.c.b16 %v2267, %v2261
        %v2748 = vpack.c.b16 %v2274, %v2268
        %v2749 = vpack.c.b16 %v2275, %v2269
        %v2750 = vpack.c.b16 %v2276, %v2270
        %v2751 = vpack.c.b16 %v2277, %v2271
        %v2752 = vpack.c.b16 %v2278, %v2272
        %v2753 = vpack.c.b16 %v2279, %v2273
        %v2754 = vpack.c.b16 %v2286, %v2280
        %v2755 = vpack.c.b16 %v2287, %v2281
        %v2756 = vpack.c.b16 %v2288, %v2282
        %v2757 = vpack.c.b16 %v2289, %v2283
        %v2758 = vpack.c.b16 %v2290, %v2284
        %v2759 = vpack.c.b16 %v2291, %v2285
        %v2760 = vpack.c.b16 %v2298, %v2292
        %v2761 = vpack.c.b16 %v2299, %v2293
        %v2762 = vpack.c.b16 %v2300, %v2294
        %v2763 = vpack.c.b16 %v2301, %v2295
        %v2764 = vpack.c.b16 %v2302, %v2296
        %v2765 = vpack.c.b16 %v2303, %v2297
        %v2766 = vpack.c.b16 %v2310, %v2304
        %v2767 = vpack.c.b16 %v2311, %v2305
        %v2768 = vpack.c.b16 %v2312, %v2306
        %v2769 = vpack.c.b16 %v2313, %v2307
        %v2770 = vpack.c.b16 %v2314, %v2308
        %v2771 = vpack.c.b16 %v2315, %v2309
        %v2772 = vpack.c.b16 %v2322, %v2316
        %v2773 = vpack.c.b16 %v2323, %v2317
        %v2774 = vpack.c.b16 %v2324, %v2318
        %v2775 = vpack.c.b16 %v2325, %v2319
        %v2776 = vpack.c.b16 %v2326, %v2320
        %v2777 = vpack.c.b16 %v2327, %v2321
        %v2778 = vpack.c.b16 %v2334, %v2328
        %v2779 = vpack.c.b16 %v2335, %v2329
        %v2780 = vpack.c.b16 %v2336, %v2330
        %v2781 = vpack.c.b16 %v2337, %v2331
        %v2782 = vpack.c.b16 %v2338, %v2332
        %v2783 = vpack.c.b16 %v2339, %v2333
        %v2784 = vpack.c.b16 %v2346, %v2340
        %v2785 = vpack.c.b16 %v2347, %v2341
        %v2786 = vpack.c.b16 %v2348, %v2342
        %v2787 = vpack.c.b16 %v2349, %v2343
        %v2788 = vpack.c.b16 %v2350, %v2344
        %v2789 = vpack.c.b16 %v2351, %v2345
        %v2790 = vpack.c.b16 %v2358, %v2352
        %v2791 = vpack.c.b16 %v2359, %v2353
        %v2792 = vpack.c.b16 %v2360, %v2354
        %v2793 = vpack.c.b16 %v2361, %v2355
        %v2794 = vpack.c.b16 %v2362, %v2356
        %v2795 = vpack.c.b16 %v2363, %v2357
        %v2796 = vpack.c.b16 %v2370, %v2364
        %v2797 = vpack.c.b16 %v2371, %v2365
        %v2798 = vpack.c.b16 %v2372, %v2366
        %v2799 = vpack.c.b16 %v2373, %v2367
        %v2800 = vpack.c.b16 %v2374, %v2368
        %v2801 = vpack.c.b16 %v2375, %v2369
        %v2802 = vpack.c.b16 %v2382, %v2376
        %v2803 = vpack.c.b16 %v2383, %v2377
        %v2804 = vpack.c.b16 %v2384, %v2378
        %v2805 = vpack.c.b16 %v2385, %v2379
        %v2806 = vpack.c.b16 %v2386, %v2380
        %v2807 = vpack.c.b16 %v2387, %v2381
        %v2808 = vpack.c.b16 %v2394, %v2388
        %v2809 = vpack.c.b16 %v2395, %v2389
        %v2810 = vpack.c.b16 %v2396, %v2390
        %v2811 = vpack.c.b16 %v2397, %v2391
        %v2812 = vpack.c.b16 %v2398, %v2392
        %v2813 = vpack.c.b16 %v2399, %v2393
        %v2814 = vpack.c.b16 %v2406, %v2400
        %v2815 = vpack.c.b16 %v2407, %v2401
        %v2816 = vpack.c.b16 %v2408, %v2402
        %v2817 = vpack.c.b16 %v2409, %v2403
        %v2818 = vpack.c.b16 %v2410, %v2404
        %v2819 = vpack.c.b16 %v2411, %v2405
        %v2820 = vpack.c.b16 %v2418, %v2412
        %v2821 = vpack.c.b16 %v2419, %v2413
        %v2822 = vpack.c.b16 %v2420, %v2414
        %v2823 = vpack.c.b16 %v2421, %v2415
        %v2824 = vpack.c.b16 %v2422, %v2416
        %v2825 = vpack.c.b16 %v2423, %v2417
        %v2826 = vpack.c.b16 %v2430, %v2424
        %v2827 = vpack.c.b16 %v2431, %v2425
        %v2828 = vpack.c.b16 %v2432, %v2426
        %v2829 = vpack.c.b16 %v2433, %v2427
        %v2830 = vpack.c.b16 %v2434, %v2428
        %v2831 = vpack.c.b16 %v2435, %v2429
        %v2832 = vpack.c.b16 %v2442, %v2436
        %v2833 = vpack.c.b16 %v2443, %v2437
        %v2834 = vpack.c.b16 %v2444, %v2438
        %v2835 = vpack.c.b16 %v2445, %v2439
        %v2836 = vpack.c.b16 %v2446, %v2440
        %v2837 = vpack.c.b16 %v2447, %v2441
        %v2838 = vpack.c.b16 %v2454, %v2448
        %v2839 = vpack.c.b16 %v2455, %v2449
        %v2840 = vpack.c.b16 %v2456, %v2450
        %v2841 = vpack.c.b16 %v2457, %v2451
        %v2842 = vpack.c.b16 %v2458, %v2452
        %v2843 = vpack.c.b16 %v2459, %v2453
        %v2844 = vpack.c.b16 %v2466, %v2460
        %v2845 = vpack.c.b16 %v2467, %v2461
        %v2846 = vpack.c.b16 %v2468, %v2462
        %v2847 = vpack.c.b16 %v2469, %v2463
        %v2848 = vpack.c.b16 %v2470, %v2464
        %v2849 = vpack.c.b16 %v2471, %v2465
        %v2850 = vpack.c.b16 %v2478, %v2472
        %v2851 = vpack.c.b16 %v2479, %v2473
        %v2852 = vpack.c.b16 %v2480, %v2474
        %v2853 = vpack.c.b16 %v2481, %v2475
        %v2854 = vpack.c.b16 %v2482, %v2476
        %v2855 = vpack.c.b16 %v2483, %v2477
        %v2856 = vpack.c.b16 %v2490, %v2484
        %v2857 = vpack.c.b16 %v2491, %v2485
        %v2858 = vpack.c.b16 %v2492, %v2486
        %v2859 = vpack.c.b16 %v2493, %v2487
        %v2860 = vpack.c.b16 %v2494, %v2488
        %v2861 = vpack.c.b16 %v2495, %v2489
        %v2862 = vpack.c.b16 %v2502, %v2496
        %v2863 = vpack.c.b16 %v2503, %v2497
        %v2864 = vpack.c.b16 %v2504, %v2498
        %v2865 = vpack.c.b16 %v2505, %v2499
        %v2866 = vpack.c.b16 %v2506, %v2500
        %v2867 = vpack.c.b16 %v2507, %v2501
        %v2868 = vpack.c.b16 %v2514, %v2508
        %v2869 = vpack.c.b16 %v2515, %v2509
        %v2870 = vpack.c.b16 %v2516, %v2510
        %v2871 = vpack.c.b16 %v2517, %v2511
        %v2872 = vpack.c.b16 %v2518, %v2512
        %v2873 = vpack.c.b16 %v2519, %v2513
        %v2874 = vpack.c.b16 %v2526, %v2520
        %v2875 = vpack.c.b16 %v2527, %v2521
        %v2876 = vpack.c.b16 %v2528, %v2522
        %v2877 = vpack.c.b16 %v2529, %v2523
        %v2878 = vpack.c.b16 %v2530, %v2524
        %v2879 = vpack.c.b16 %v2531, %v2525
        %v2880 = vpack.c.b16 %v2538, %v2532
        %v2881 = vpack.c.b16 %v2539, %v2533
        %v2882 = vpack.c.b16 %v2540, %v2534
        %v2883 = vpack.c.b16 %v2541, %v2535
        %v2884 = vpack.c.b16 %v2542, %v2536
        %v2885 = vpack.c.b16 %v2543, %v2537
        %v2886 = vpack.c.b16 %v2550, %v2544
        %v2887 = vpack.c.b16 %v2551, %v2545
        %v2888 = vpack.c.b16 %v2552, %v2546
        %v2889 = vpack.c.b16 %v2553, %v2547
        %v2890 = vpack.c.b16 %v2554, %v2548
        %v2891 = vpack.c.b16 %v2555, %v2549
        %3228 = vmatprep.subr.bf16.mxu0 %v2557
        %3229 = vmatpush1.bf16.msra.mxu0 %v2556
        %3230 = vmatprep.subr.bf16.mxu0 %v2563
        %3231 = vmatpush1.bf16.msra.mxu0 %v2562
        %3232 = vmatprep.subr.bf16.mxu0 %v2569
        %3233 = vmatpush1.bf16.msra.mxu0 %v2568
        %3234 = vmatprep.subr.bf16.mxu0 %v2575
        %3235 = vmatpush1.bf16.msra.mxu0 %v2574
        %3236 = vmatprep.subr.bf16.mxu0 %v2581
        %3237 = vmatpush1.bf16.msra.mxu0 %v2580
        %3238 = vmatprep.subr.bf16.mxu0 %v2587
        %3239 = vmatpush1.bf16.msra.mxu0 %v2586
        %3240 = vmatprep.subr.bf16.mxu0 %v2593
        %3241 = vmatpush1.bf16.msra.mxu0 %v2592
        %3242 = vmatprep.subr.bf16.mxu0 %v2599
        %3243 = vmatpush1.bf16.msra.mxu0 %v2598
        %3244 = vmatprep.subr.bf16.mxu0 %v2605
        %3245 = vmatpush1.bf16.msra.mxu0 %v2604
        %3246 = vmatprep.subr.bf16.mxu0 %v2611
        %3247 = vmatpush1.bf16.msra.mxu0 %v2610
        %3248 = vmatprep.subr.bf16.mxu0 %v2617
        %3249 = vmatpush1.bf16.msra.mxu0 %v2616
        %3250 = vmatprep.subr.bf16.mxu0 %v2623
        %3251 = vmatpush1.bf16.msra.mxu0 %v2622
        %3252 = vmatprep.subr.bf16.mxu0 %v2629
        %3253 = vmatpush1.bf16.msra.mxu0 %v2628
        %3254 = vmatprep.subr.bf16.mxu0 %v2635
        %3255 = vmatpush1.bf16.msra.mxu0 %v2634
        %3256 = vmatprep.subr.bf16.mxu0 %v2641
        %3257 = vmatpush1.bf16.msra.mxu0 %v2640
        %3258 = vmatprep.subr.bf16.mxu0 %v2647
        %3259 = vmatpush1.bf16.msra.mxu0 %v2646
        %3260 = vmatprep.mubr.bf16.mxu0 %v1167
        %3261 = vmatmul.mubr.bf16.gmra.mrb[0].mxu0 %v1166
        %v3262 = vpop.f32.mrb[0].mxu0
        %v3263 = vadd.f32 %v1521, %v3262
        %v3264 = vpop.f32.mrb[0].mxu0
        %v3265 = vadd.f32 %v1525, %v3264
        %v3266 = vpop.f32.mrb[0].mxu0
        %v3267 = vadd.f32 %v1521, %v3266
        %v3268 = vpop.f32.mrb[0].mxu0
        %v3269 = vadd.f32 %v1525, %v3268
        %3270 = vmatprep.mubr.bf16.mxu0 %v1174
        %3271 = vmatmul.mubr.bf16.gmra.mrb[0].mxu0 %v1173
        %v3272 = vpop.f32.mrb[0].mxu0
        %v3273 = vadd.f32 %v1521, %v3272
        %v3274 = vpop.f32.mrb[0].mxu0
        %v3275 = vadd.f32 %v1525, %v3274
        %v3276 = vpop.f32.mrb[0].mxu0
        %v3277 = vadd.f32 %v1521, %v3276
        %v3278 = vpop.f32.mrb[0].mxu0
        %v3279 = vadd.f32 %v1525, %v3278
        %3280 = vdwg.mxu0
        %3281 = vmatprep.subr.bf16.mxu0 %v2653
        %3282 = vmatpush1.bf16.msra.mxu0 %v2652
        %3283 = vmatprep.subr.bf16.mxu0 %v2659
        %3284 = vmatpush1.bf16.msra.mxu0 %v2658
        %3285 = vmatprep.subr.bf16.mxu0 %v2665
        %3286 = vmatpush1.bf16.msra.mxu0 %v2664
        %3287 = vmatprep.subr.bf16.mxu0 %v2671
        %3288 = vmatpush1.bf16.msra.mxu0 %v2670
        %3289 = vmatprep.subr.bf16.mxu0 %v2677
        %3290 = vmatpush1.bf16.msra.mxu0 %v2676
        %3291 = vmatprep.subr.bf16.mxu0 %v2683
        %3292 = vmatpush1.bf16.msra.mxu0 %v2682
        %3293 = vmatprep.subr.bf16.mxu0 %v2689
        %3294 = vmatpush1.bf16.msra.mxu0 %v2688
        %3295 = vmatprep.subr.bf16.mxu0 %v2695
        %3296 = vmatpush1.bf16.msra.mxu0 %v2694
        %3297 = vmatprep.subr.bf16.mxu0 %v2701
        %3298 = vmatpush1.bf16.msra.mxu0 %v2700
        %3299 = vmatprep.subr.bf16.mxu0 %v2707
        %3300 = vmatpush1.bf16.msra.mxu0 %v2706
        %3301 = vmatprep.subr.bf16.mxu0 %v2713
        %3302 = vmatpush1.bf16.msra.mxu0 %v2712
        %3303 = vmatprep.subr.bf16.mxu0 %v2719
        %3304 = vmatpush1.bf16.msra.mxu0 %v2718
        %3305 = vmatprep.subr.bf16.mxu0 %v2725
        %3306 = vmatpush1.bf16.msra.mxu0 %v2724
        %3307 = vmatprep.subr.bf16.mxu0 %v2731
        %3308 = vmatpush1.bf16.msra.mxu0 %v2730
        %3309 = vmatprep.subr.bf16.mxu0 %v2737
        %3310 = vmatpush1.bf16.msra.mxu0 %v2736
        %3311 = vmatprep.subr.bf16.mxu0 %v2743
        %3312 = vmatpush1.bf16.msra.mxu0 %v2742
        %3313 = vmatprep.mubr.bf16.mxu0 %v1169
        %3314 = vmatmul.mubr.bf16.gmra.mrb[0].mxu0 %v1168
        %v3315 = vpop.f32.mrb[0].mxu0
        %v3316 = vadd.f32 %v3263, %v3315
        %v3317 = vpop.f32.mrb[0].mxu0
        %v3318 = vadd.f32 %v3265, %v3317
        %v3319 = vpop.f32.mrb[0].mxu0
        %v3320 = vadd.f32 %v3267, %v3319
        %v3321 = vpop.f32.mrb[0].mxu0
        %v3322 = vadd.f32 %v3269, %v3321
        %3323 = vmatprep.mubr.bf16.mxu0 %v1176
        %3324 = vmatmul.mubr.bf16.gmra.mrb[0].mxu0 %v1175
        %v3325 = vpop.f32.mrb[0].mxu0
        %v3326 = vadd.f32 %v3273, %v3325
        %v3327 = vpop.f32.mrb[0].mxu0
        %v3328 = vadd.f32 %v3275, %v3327
        %v3329 = vpop.f32.mrb[0].mxu0
        %v3330 = vadd.f32 %v3277, %v3329
        %v3331 = vpop.f32.mrb[0].mxu0
        %v3332 = vadd.f32 %v3279, %v3331
        %3333 = vdwg.mxu0
        %3334 = vmatprep.subr.bf16.mxu0 %v2749
        %3335 = vmatpush1.bf16.msra.mxu0 %v2748
        %3336 = vmatprep.subr.bf16.mxu0 %v2755
        %3337 = vmatpush1.bf16.msra.mxu0 %v2754
        %3338 = vmatprep.subr.bf16.mxu0 %v2761
        %3339 = vmatpush1.bf16.msra.mxu0 %v2760
        %3340 = vmatprep.subr.bf16.mxu0 %v2767
        %3341 = vmatpush1.bf16.msra.mxu0 %v2766
        %3342 = vmatprep.subr.bf16.mxu0 %v2773
        %3343 = vmatpush1.bf16.msra.mxu0 %v2772
        %3344 = vmatprep.subr.bf16.mxu0 %v2779
        %3345 = vmatpush1.bf16.msra.mxu0 %v2778
        %3346 = vmatprep.subr.bf16.mxu0 %v2785
        %3347 = vmatpush1.bf16.msra.mxu0 %v2784
        %3348 = vmatprep.subr.bf16.mxu0 %v2791
        %3349 = vmatpush1.bf16.msra.mxu0 %v2790
        %3350 = vmatprep.subr.bf16.mxu0 %v2797
        %3351 = vmatpush1.bf16.msra.mxu0 %v2796
        %3352 = vmatprep.subr.bf16.mxu0 %v2803
        %3353 = vmatpush1.bf16.msra.mxu0 %v2802
        %3354 = vmatprep.subr.bf16.mxu0 %v2809
        %3355 = vmatpush1.bf16.msra.mxu0 %v2808
        %3356 = vmatprep.subr.bf16.mxu0 %v2815
        %3357 = vmatpush1.bf16.msra.mxu0 %v2814
        %3358 = vmatprep.subr.bf16.mxu0 %v2821
        %3359 = vmatpush1.bf16.msra.mxu0 %v2820
        %3360 = vmatprep.subr.bf16.mxu0 %v2827
        %3361 = vmatpush1.bf16.msra.mxu0 %v2826
        %3362 = vmatprep.subr.bf16.mxu0 %v2833
        %3363 = vmatpush1.bf16.msra.mxu0 %v2832
        %3364 = vmatprep.subr.bf16.mxu0 %v2839
        %3365 = vmatpush1.bf16.msra.mxu0 %v2838
        %3366 = vmatprep.mubr.bf16.mxu0 %v1171
        %3367 = vmatmul.mubr.bf16.gmra.mrb[0].mxu0 %v1170
        %v3368 = vpop.f32.mrb[0].mxu0
        %v3369 = vadd.f32 %v3316, %v3368
        %v3370 = vpop.f32.mrb[0].mxu0
        %v3371 = vadd.f32 %v3318, %v3370
        %v3372 = vpop.f32.mrb[0].mxu0
        %v3373 = vadd.f32 %v3320, %v3372
        %v3374 = vpop.f32.mrb[0].mxu0
        %v3375 = vadd.f32 %v3322, %v3374
        %3376 = vmatprep.mubr.bf16.mxu0 %v1178
        %3377 = vmatmul.mubr.bf16.gmra.mrb[0].mxu0 %v1177
        %v3378 = vpop.f32.mrb[0].mxu0
        %v3379 = vadd.f32 %v3326, %v3378
        %v3380 = vpop.f32.mrb[0].mxu0
        %v3381 = vadd.f32 %v3328, %v3380
        %v3382 = vpop.f32.mrb[0].mxu0
        %v3383 = vadd.f32 %v3330, %v3382
        %v3384 = vpop.f32.mrb[0].mxu0
        %v3385 = vadd.f32 %v3332, %v3384
        %3386 = vdwg.mxu0
        %3387 = vmatprep.subr.bf16.mxu0 %v2845
        %3388 = vmatpush1.bf16.msra.mxu0 %v2844
        %3389 = vmatprep.subr.bf16.mxu0 %v2851
        %3390 = vmatpush1.bf16.msra.mxu0 %v2850
        %3391 = vmatprep.subr.bf16.mxu0 %v2857
        %3392 = vmatpush1.bf16.msra.mxu0 %v2856
        %3393 = vmatprep.subr.bf16.mxu0 %v2863
        %3394 = vmatpush1.bf16.msra.mxu0 %v2862
        %3395 = vmatprep.subr.bf16.mxu0 %v2869
        %3396 = vmatpush1.bf16.msra.mxu0 %v2868
        %3397 = vmatprep.subr.bf16.mxu0 %v2875
        %3398 = vmatpush1.bf16.msra.mxu0 %v2874
        %3399 = vmatprep.subr.bf16.mxu0 %v2881
        %3400 = vmatpush1.bf16.msra.mxu0 %v2880
        %3401 = vmatprep.subr.bf16.mxu0 %v2887
        %3402 = vmatpush1.bf16.msra.mxu0 %v2886
        %3403 = vmatprep.subr.bf16.mxu0 0
        %3404 = vmatpush1.bf16.msra.mxu0 0
        %3405 = vmatprep.subr.bf16.mxu0 0
        %3406 = vmatpush1.bf16.msra.mxu0 0
        %3407 = vmatprep.subr.bf16.mxu0 0
        %3408 = vmatpush1.bf16.msra.mxu0 0
        %3409 = vmatprep.subr.bf16.mxu0 0
        %3410 = vmatpush1.bf16.msra.mxu0 0
        %3411 = vmatprep.subr.bf16.mxu0 0
        %3412 = vmatpush1.bf16.msra.mxu0 0
        %3413 = vmatprep.subr.bf16.mxu0 0
        %3414 = vmatpush1.bf16.msra.mxu0 0
        %3415 = vmatprep.subr.bf16.mxu0 0
        %3416 = vmatpush1.bf16.msra.mxu0 0
        %3417 = vmatprep.subr.bf16.mxu0 0
        %3418 = vmatpush1.bf16.msra.mxu0 0
        %3419 = vmatprep.mubr.bf16.mxu0 0
        %3420 = vmatmul.mubr.bf16.gmra.mrb[0].mxu0 %v1172
        %v3421 = vpop.f32.mrb[0].mxu0
        %v3422 = vadd.f32 %v3369, %v3421
        %v3423 = vpop.f32.mrb[0].mxu0
        %v3424 = vadd.f32 %v3371, %v3423
        %v3425 = vpop.f32.mrb[0].mxu0
        %v3426 = vadd.f32 %v3373, %v3425
        %v3427 = vpop.f32.mrb[0].mxu0
        %v3428 = vadd.f32 %v3375, %v3427
        %3429 = vmatprep.mubr.bf16.mxu0 0
        %3430 = vmatmul.mubr.bf16.gmra.mrb[0].mxu0 %v1179
        %v3431 = vpop.f32.mrb[0].mxu0
        %v3432 = vadd.f32 %v3379, %v3431
        %v3433 = vpop.f32.mrb[0].mxu0
        %v3434 = vadd.f32 %v3381, %v3433
        %v3435 = vpop.f32.mrb[0].mxu0
        %v3436 = vadd.f32 %v3383, %v3435
        %v3437 = vpop.f32.mrb[0].mxu0
        %v3438 = vadd.f32 %v3385, %v3437
        %3439 = vdwg.mxu0
        %3440 = vmatprep.subr.bf16.mxu0 %v2559
        %3441 = vmatpush1.bf16.msra.mxu0 %v2558
        %3442 = vmatprep.subr.bf16.mxu0 %v2565
        %3443 = vmatpush1.bf16.msra.mxu0 %v2564
        %3444 = vmatprep.subr.bf16.mxu0 %v2571
        %3445 = vmatpush1.bf16.msra.mxu0 %v2570
        %3446 = vmatprep.subr.bf16.mxu0 %v2577
        %3447 = vmatpush1.bf16.msra.mxu0 %v2576
        %3448 = vmatprep.subr.bf16.mxu0 %v2583
        %3449 = vmatpush1.bf16.msra.mxu0 %v2582
        %3450 = vmatprep.subr.bf16.mxu0 %v2589
        %3451 = vmatpush1.bf16.msra.mxu0 %v2588
        %3452 = vmatprep.subr.bf16.mxu0 %v2595
        %3453 = vmatpush1.bf16.msra.mxu0 %v2594
        %3454 = vmatprep.subr.bf16.mxu0 %v2601
        %3455 = vmatpush1.bf16.msra.mxu0 %v2600
        %3456 = vmatprep.subr.bf16.mxu0 %v2607
        %3457 = vmatpush1.bf16.msra.mxu0 %v2606
        %3458 = vmatprep.subr.bf16.mxu0 %v2613
        %3459 = vmatpush1.bf16.msra.mxu0 %v2612
        %3460 = vmatprep.subr.bf16.mxu0 %v2619
        %3461 = vmatpush1.bf16.msra.mxu0 %v2618
        %3462 = vmatprep.subr.bf16.mxu0 %v2625
        %3463 = vmatpush1.bf16.msra.mxu0 %v2624
        %3464 = vmatprep.subr.bf16.mxu0 %v2631
        %3465 = vmatpush1.bf16.msra.mxu0 %v2630
        %3466 = vmatprep.subr.bf16.mxu0 %v2637
        %3467 = vmatpush1.bf16.msra.mxu0 %v2636
        %3468 = vmatprep.subr.bf16.mxu0 %v2643
        %3469 = vmatpush1.bf16.msra.mxu0 %v2642
        %3470 = vmatprep.subr.bf16.mxu0 %v2649
        %3471 = vmatpush1.bf16.msra.mxu0 %v2648
        %3472 = vmatprep.mubr.bf16.mxu0 %v1167
        %3473 = vmatmul.mubr.bf16.gmra.mrb[0].mxu0 %v1166
        %v3474 = vpop.f32.mrb[0].mxu0
        %v3475 = vadd.f32 %v1529, %v3474
        %v3476 = vpop.f32.mrb[0].mxu0
        %v3477 = vadd.f32 %v1533, %v3476
        %v3478 = vpop.f32.mrb[0].mxu0
        %v3479 = vadd.f32 %v1529, %v3478
        %v3480 = vpop.f32.mrb[0].mxu0
        %v3481 = vadd.f32 %v1533, %v3480
        %3482 = vmatprep.mubr.bf16.mxu0 %v1174
        %3483 = vmatmul.mubr.bf16.gmra.mrb[0].mxu0 %v1173
        %v3484 = vpop.f32.mrb[0].mxu0
        %v3485 = vadd.f32 %v1529, %v3484
        %v3486 = vpop.f32.mrb[0].mxu0
        %v3487 = vadd.f32 %v1533, %v3486
        %v3488 = vpop.f32.mrb[0].mxu0
        %v3489 = vadd.f32 %v1529, %v3488
        %v3490 = vpop.f32.mrb[0].mxu0
        %v3491 = vadd.f32 %v1533, %v3490
        %3492 = vdwg.mxu0
        %3493 = vmatprep.subr.bf16.mxu0 %v2655
        %3494 = vmatpush1.bf16.msra.mxu0 %v2654
        %3495 = vmatprep.subr.bf16.mxu0 %v2661
        %3496 = vmatpush1.bf16.msra.mxu0 %v2660
        %3497 = vmatprep.subr.bf16.mxu0 %v2667
        %3498 = vmatpush1.bf16.msra.mxu0 %v2666
        %3499 = vmatprep.subr.bf16.mxu0 %v2673
        %3500 = vmatpush1.bf16.msra.mxu0 %v2672
        %3501 = vmatprep.subr.bf16.mxu0 %v2679
        %3502 = vmatpush1.bf16.msra.mxu0 %v2678
        %3503 = vmatprep.subr.bf16.mxu0 %v2685
        %3504 = vmatpush1.bf16.msra.mxu0 %v2684
        %3505 = vmatprep.subr.bf16.mxu0 %v2691
        %3506 = vmatpush1.bf16.msra.mxu0 %v2690
        %3507 = vmatprep.subr.bf16.mxu0 %v2697
        %3508 = vmatpush1.bf16.msra.mxu0 %v2696
        %3509 = vmatprep.subr.bf16.mxu0 %v2703
        %3510 = vmatpush1.bf16.msra.mxu0 %v2702
        %3511 = vmatprep.subr.bf16.mxu0 %v2709
        %3512 = vmatpush1.bf16.msra.mxu0 %v2708
        %3513 = vmatprep.subr.bf16.mxu0 %v2715
        %3514 = vmatpush1.bf16.msra.mxu0 %v2714
        %3515 = vmatprep.subr.bf16.mxu0 %v2721
        %3516 = vmatpush1.bf16.msra.mxu0 %v2720
        %3517 = vmatprep.subr.bf16.mxu0 %v2727
        %3518 = vmatpush1.bf16.msra.mxu0 %v2726
        %3519 = vmatprep.subr.bf16.mxu0 %v2733
        %3520 = vmatpush1.bf16.msra.mxu0 %v2732
        %3521 = vmatprep.subr.bf16.mxu0 %v2739
        %3522 = vmatpush1.bf16.msra.mxu0 %v2738
        %3523 = vmatprep.subr.bf16.mxu0 %v2745
        %3524 = vmatpush1.bf16.msra.mxu0 %v2744
        %3525 = vmatprep.mubr.bf16.mxu0 %v1169
        %3526 = vmatmul.mubr.bf16.gmra.mrb[0].mxu0 %v1168
        %v3527 = vpop.f32.mrb[0].mxu0
        %v3528 = vadd.f32 %v3475, %v3527
        %v3529 = vpop.f32.mrb[0].mxu0
        %v3530 = vadd.f32 %v3477, %v3529
        %v3531 = vpop.f32.mrb[0].mxu0
        %v3532 = vadd.f32 %v3479, %v3531
        %v3533 = vpop.f32.mrb[0].mxu0
        %v3534 = vadd.f32 %v3481, %v3533
        %3535 = vmatprep.mubr.bf16.mxu0 %v1176
        %3536 = vmatmul.mubr.bf16.gmra.mrb[0].mxu0 %v1175
        %v3537 = vpop.f32.mrb[0].mxu0
        %v3538 = vadd.f32 %v3485, %v3537
        %v3539 = vpop.f32.mrb[0].mxu0
        %v3540 = vadd.f32 %v3487, %v3539
        %v3541 = vpop.f32.mrb[0].mxu0
        %v3542 = vadd.f32 %v3489, %v3541
        %v3543 = vpop.f32.mrb[0].mxu0
        %v3544 = vadd.f32 %v3491, %v3543
        %3545 = vdwg.mxu0
        %3546 = vmatprep.subr.bf16.mxu0 %v2751
        %3547 = vmatpush1.bf16.msra.mxu0 %v2750
        %3548 = vmatprep.subr.bf16.mxu0 %v2757
        %3549 = vmatpush1.bf16.msra.mxu0 %v2756
        %3550 = vmatprep.subr.bf16.mxu0 %v2763
        %3551 = vmatpush1.bf16.msra.mxu0 %v2762
        %3552 = vmatprep.subr.bf16.mxu0 %v2769
        %3553 = vmatpush1.bf16.msra.mxu0 %v2768
        %3554 = vmatprep.subr.bf16.mxu0 %v2775
        %3555 = vmatpush1.bf16.msra.mxu0 %v2774
        %3556 = vmatprep.subr.bf16.mxu0 %v2781
        %3557 = vmatpush1.bf16.msra.mxu0 %v2780
        %3558 = vmatprep.subr.bf16.mxu0 %v2787
        %3559 = vmatpush1.bf16.msra.mxu0 %v2786
        %3560 = vmatprep.subr.bf16.mxu0 %v2793
        %3561 = vmatpush1.bf16.msra.mxu0 %v2792
        %3562 = vmatprep.subr.bf16.mxu0 %v2799
        %3563 = vmatpush1.bf16.msra.mxu0 %v2798
        %3564 = vmatprep.subr.bf16.mxu0 %v2805
        %3565 = vmatpush1.bf16.msra.mxu0 %v2804
        %3566 = vmatprep.subr.bf16.mxu0 %v2811
        %3567 = vmatpush1.bf16.msra.mxu0 %v2810
        %3568 = vmatprep.subr.bf16.mxu0 %v2817
        %3569 = vmatpush1.bf16.msra.mxu0 %v2816
        %3570 = vmatprep.subr.bf16.mxu0 %v2823
        %3571 = vmatpush1.bf16.msra.mxu0 %v2822
        %3572 = vmatprep.subr.bf16.mxu0 %v2829
        %3573 = vmatpush1.bf16.msra.mxu0 %v2828
        %3574 = vmatprep.subr.bf16.mxu0 %v2835
        %3575 = vmatpush1.bf16.msra.mxu0 %v2834
        %3576 = vmatprep.subr.bf16.mxu0 %v2841
        %3577 = vmatpush1.bf16.msra.mxu0 %v2840
        %3578 = vmatprep.mubr.bf16.mxu0 %v1171
        %3579 = vmatmul.mubr.bf16.gmra.mrb[0].mxu0 %v1170
        %v3580 = vpop.f32.mrb[0].mxu0
        %v3581 = vadd.f32 %v3528, %v3580
        %v3582 = vpop.f32.mrb[0].mxu0
        %v3583 = vadd.f32 %v3530, %v3582
        %v3584 = vpop.f32.mrb[0].mxu0
        %v3585 = vadd.f32 %v3532, %v3584
        %v3586 = vpop.f32.mrb[0].mxu0
        %v3587 = vadd.f32 %v3534, %v3586
        %3588 = vmatprep.mubr.bf16.mxu0 %v1178
        %3589 = vmatmul.mubr.bf16.gmra.mrb[0].mxu0 %v1177
        %v3590 = vpop.f32.mrb[0].mxu0
        %v3591 = vadd.f32 %v3538, %v3590
        %v3592 = vpop.f32.mrb[0].mxu0
        %v3593 = vadd.f32 %v3540, %v3592
        %v3594 = vpop.f32.mrb[0].mxu0
        %v3595 = vadd.f32 %v3542, %v3594
        %v3596 = vpop.f32.mrb[0].mxu0
        %v3597 = vadd.f32 %v3544, %v3596
        %3598 = vdwg.mxu0
        %3599 = vmatprep.subr.bf16.mxu0 %v2847
        %3600 = vmatpush1.bf16.msra.mxu0 %v2846
        %3601 = vmatprep.subr.bf16.mxu0 %v2853
        %3602 = vmatpush1.bf16.msra.mxu0 %v2852
        %3603 = vmatprep.subr.bf16.mxu0 %v2859
        %3604 = vmatpush1.bf16.msra.mxu0 %v2858
        %3605 = vmatprep.subr.bf16.mxu0 %v2865
        %3606 = vmatpush1.bf16.msra.mxu0 %v2864
        %3607 = vmatprep.subr.bf16.mxu0 %v2871
        %3608 = vmatpush1.bf16.msra.mxu0 %v2870
        %3609 = vmatprep.subr.bf16.mxu0 %v2877
        %3610 = vmatpush1.bf16.msra.mxu0 %v2876
        %3611 = vmatprep.subr.bf16.mxu0 %v2883
        %3612 = vmatpush1.bf16.msra.mxu0 %v2882
        %3613 = vmatprep.subr.bf16.mxu0 %v2889
        %3614 = vmatpush1.bf16.msra.mxu0 %v2888
        %3615 = vmatprep.subr.bf16.mxu0 0
        %3616 = vmatpush1.bf16.msra.mxu0 0
        %3617 = vmatprep.subr.bf16.mxu0 0
        %3618 = vmatpush1.bf16.msra.mxu0 0
        %3619 = vmatprep.subr.bf16.mxu0 0
        %3620 = vmatpush1.bf16.msra.mxu0 0
        %3621 = vmatprep.subr.bf16.mxu0 0
        %3622 = vmatpush1.bf16.msra.mxu0 0
        %3623 = vmatprep.subr.bf16.mxu0 0
        %3624 = vmatpush1.bf16.msra.mxu0 0
        %3625 = vmatprep.subr.bf16.mxu0 0
        %3626 = vmatpush1.bf16.msra.mxu0 0
        %3627 = vmatprep.subr.bf16.mxu0 0
        %3628 = vmatpush1.bf16.msra.mxu0 0
        %3629 = vmatprep.subr.bf16.mxu0 0
        %3630 = vmatpush1.bf16.msra.mxu0 0
        %3631 = vmatprep.mubr.bf16.mxu0 0
        %3632 = vmatmul.mubr.bf16.gmra.mrb[0].mxu0 %v1172
        %v3633 = vpop.f32.mrb[0].mxu0
        %v3634 = vadd.f32 %v3581, %v3633
        %v3635 = vpop.f32.mrb[0].mxu0
        %v3636 = vadd.f32 %v3583, %v3635
        %v3637 = vpop.f32.mrb[0].mxu0
        %v3638 = vadd.f32 %v3585, %v3637
        %v3639 = vpop.f32.mrb[0].mxu0
        %v3640 = vadd.f32 %v3587, %v3639
        %3641 = vmatprep.mubr.bf16.mxu0 0
        %3642 = vmatmul.mubr.bf16.gmra.mrb[0].mxu0 %v1179
        %v3643 = vpop.f32.mrb[0].mxu0
        %v3644 = vadd.f32 %v3591, %v3643
        %v3645 = vpop.f32.mrb[0].mxu0
        %v3646 = vadd.f32 %v3593, %v3645
        %v3647 = vpop.f32.mrb[0].mxu0
        %v3648 = vadd.f32 %v3595, %v3647
        %v3649 = vpop.f32.mrb[0].mxu0
        %v3650 = vadd.f32 %v3597, %v3649
        %3651 = vdwg.mxu0
        %3652 = vmatprep.subr.bf16.mxu0 %v2561
        %3653 = vmatpush1.bf16.msra.mxu0 %v2560
        %3654 = vmatprep.subr.bf16.mxu0 %v2567
        %3655 = vmatpush1.bf16.msra.mxu0 %v2566
        %3656 = vmatprep.subr.bf16.mxu0 %v2573
        %3657 = vmatpush1.bf16.msra.mxu0 %v2572
        %3658 = vmatprep.subr.bf16.mxu0 %v2579
        %3659 = vmatpush1.bf16.msra.mxu0 %v2578
        %3660 = vmatprep.subr.bf16.mxu0 %v2585
        %3661 = vmatpush1.bf16.msra.mxu0 %v2584
        %3662 = vmatprep.subr.bf16.mxu0 %v2591
        %3663 = vmatpush1.bf16.msra.mxu0 %v2590
        %3664 = vmatprep.subr.bf16.mxu0 %v2597
        %3665 = vmatpush1.bf16.msra.mxu0 %v2596
        %3666 = vmatprep.subr.bf16.mxu0 %v2603
        %3667 = vmatpush1.bf16.msra.mxu0 %v2602
        %3668 = vmatprep.subr.bf16.mxu0 %v2609
        %3669 = vmatpush1.bf16.msra.mxu0 %v2608
        %3670 = vmatprep.subr.bf16.mxu0 %v2615
        %3671 = vmatpush1.bf16.msra.mxu0 %v2614
        %3672 = vmatprep.subr.bf16.mxu0 %v2621
        %3673 = vmatpush1.bf16.msra.mxu0 %v2620
        %3674 = vmatprep.subr.bf16.mxu0 %v2627
        %3675 = vmatpush1.bf16.msra.mxu0 %v2626
        %3676 = vmatprep.subr.bf16.mxu0 %v2633
        %3677 = vmatpush1.bf16.msra.mxu0 %v2632
        %3678 = vmatprep.subr.bf16.mxu0 %v2639
        %3679 = vmatpush1.bf16.msra.mxu0 %v2638
        %3680 = vmatprep.subr.bf16.mxu0 %v2645
        %3681 = vmatpush1.bf16.msra.mxu0 %v2644
        %3682 = vmatprep.subr.bf16.mxu0 %v2651
        %3683 = vmatpush1.bf16.msra.mxu0 %v2650
        %3684 = vmatprep.mubr.bf16.mxu0 %v1167
        %3685 = vmatmul.mubr.bf16.gmra.mrb[0].mxu0 %v1166
        %v3686 = vpop.f32.mrb[0].mxu0
        %v3687 = vadd.f32 %v1537, %v3686
        %v3688 = vpop.f32.mrb[0].mxu0
        %v3689 = vadd.f32 %v1541, %v3688
        %v3690 = vpop.f32.mrb[0].mxu0
        %v3691 = vadd.f32 %v1537, %v3690
        %v3692 = vpop.f32.mrb[0].mxu0
        %v3693 = vadd.f32 %v1541, %v3692
        %3694 = vmatprep.mubr.bf16.mxu0 %v1174
        %3695 = vmatmul.mubr.bf16.gmra.mrb[0].mxu0 %v1173
        %v3696 = vpop.f32.mrb[0].mxu0
        %v3697 = vadd.f32 %v1537, %v3696
        %v3698 = vpop.f32.mrb[0].mxu0
        %v3699 = vadd.f32 %v1541, %v3698
        %v3700 = vpop.f32.mrb[0].mxu0
        %v3701 = vadd.f32 %v1537, %v3700
        %v3702 = vpop.f32.mrb[0].mxu0
        %v3703 = vadd.f32 %v1541, %v3702
        %3704 = vdwg.mxu0
        %3705 = vmatprep.subr.bf16.mxu0 %v2657
        %3706 = vmatpush1.bf16.msra.mxu0 %v2656
        %3707 = vmatprep.subr.bf16.mxu0 %v2663
        %3708 = vmatpush1.bf16.msra.mxu0 %v2662
        %3709 = vmatprep.subr.bf16.mxu0 %v2669
        %3710 = vmatpush1.bf16.msra.mxu0 %v2668
        %3711 = vmatprep.subr.bf16.mxu0 %v2675
        %3712 = vmatpush1.bf16.msra.mxu0 %v2674
        %3713 = vmatprep.subr.bf16.mxu0 %v2681
        %3714 = vmatpush1.bf16.msra.mxu0 %v2680
        %3715 = vmatprep.subr.bf16.mxu0 %v2687
        %3716 = vmatpush1.bf16.msra.mxu0 %v2686
        %3717 = vmatprep.subr.bf16.mxu0 %v2693
        %3718 = vmatpush1.bf16.msra.mxu0 %v2692
        %3719 = vmatprep.subr.bf16.mxu0 %v2699
        %3720 = vmatpush1.bf16.msra.mxu0 %v2698
        %3721 = vmatprep.subr.bf16.mxu0 %v2705
        %3722 = vmatpush1.bf16.msra.mxu0 %v2704
        %3723 = vmatprep.subr.bf16.mxu0 %v2711
        %3724 = vmatpush1.bf16.msra.mxu0 %v2710
        %3725 = vmatprep.subr.bf16.mxu0 %v2717
        %3726 = vmatpush1.bf16.msra.mxu0 %v2716
        %3727 = vmatprep.subr.bf16.mxu0 %v2723
        %3728 = vmatpush1.bf16.msra.mxu0 %v2722
        %3729 = vmatprep.subr.bf16.mxu0 %v2729
        %3730 = vmatpush1.bf16.msra.mxu0 %v2728
        %3731 = vmatprep.subr.bf16.mxu0 %v2735
        %3732 = vmatpush1.bf16.msra.mxu0 %v2734
        %3733 = vmatprep.subr.bf16.mxu0 %v2741
        %3734 = vmatpush1.bf16.msra.mxu0 %v2740
        %3735 = vmatprep.subr.bf16.mxu0 %v2747
        %3736 = vmatpush1.bf16.msra.mxu0 %v2746
        %3737 = vmatprep.mubr.bf16.mxu0 %v1169
        %3738 = vmatmul.mubr.bf16.gmra.mrb[0].mxu0 %v1168
        %v3739 = vpop.f32.mrb[0].mxu0
        %v3740 = vadd.f32 %v3687, %v3739
        %v3741 = vpop.f32.mrb[0].mxu0
        %v3742 = vadd.f32 %v3689, %v3741
        %v3743 = vpop.f32.mrb[0].mxu0
        %v3744 = vadd.f32 %v3691, %v3743
        %v3745 = vpop.f32.mrb[0].mxu0
        %v3746 = vadd.f32 %v3693, %v3745
        %3747 = vmatprep.mubr.bf16.mxu0 %v1176
        %3748 = vmatmul.mubr.bf16.gmra.mrb[0].mxu0 %v1175
        %v3749 = vpop.f32.mrb[0].mxu0
        %v3750 = vadd.f32 %v3697, %v3749
        %v3751 = vpop.f32.mrb[0].mxu0
        %v3752 = vadd.f32 %v3699, %v3751
        %v3753 = vpop.f32.mrb[0].mxu0
        %v3754 = vadd.f32 %v3701, %v3753
        %v3755 = vpop.f32.mrb[0].mxu0
        %v3756 = vadd.f32 %v3703, %v3755
        %3757 = vdwg.mxu0
        %3758 = vmatprep.subr.bf16.mxu0 %v2753
        %3759 = vmatpush1.bf16.msra.mxu0 %v2752
        %3760 = vmatprep.subr.bf16.mxu0 %v2759
        %3761 = vmatpush1.bf16.msra.mxu0 %v2758
        %3762 = vmatprep.subr.bf16.mxu0 %v2765
        %3763 = vmatpush1.bf16.msra.mxu0 %v2764
        %3764 = vmatprep.subr.bf16.mxu0 %v2771
        %3765 = vmatpush1.bf16.msra.mxu0 %v2770
        %3766 = vmatprep.subr.bf16.mxu0 %v2777
        %3767 = vmatpush1.bf16.msra.mxu0 %v2776
        %3768 = vmatprep.subr.bf16.mxu0 %v2783
        %3769 = vmatpush1.bf16.msra.mxu0 %v2782
        %3770 = vmatprep.subr.bf16.mxu0 %v2789
        %3771 = vmatpush1.bf16.msra.mxu0 %v2788
        %3772 = vmatprep.subr.bf16.mxu0 %v2795
        %3773 = vmatpush1.bf16.msra.mxu0 %v2794
        %3774 = vmatprep.subr.bf16.mxu0 %v2801
        %3775 = vmatpush1.bf16.msra.mxu0 %v2800
        %3776 = vmatprep.subr.bf16.mxu0 %v2807
        %3777 = vmatpush1.bf16.msra.mxu0 %v2806
        %3778 = vmatprep.subr.bf16.mxu0 %v2813
        %3779 = vmatpush1.bf16.msra.mxu0 %v2812
        %3780 = vmatprep.subr.bf16.mxu0 %v2819
        %3781 = vmatpush1.bf16.msra.mxu0 %v2818
        %3782 = vmatprep.subr.bf16.mxu0 %v2825
        %3783 = vmatpush1.bf16.msra.mxu0 %v2824
        %3784 = vmatprep.subr.bf16.mxu0 %v2831
        %3785 = vmatpush1.bf16.msra.mxu0 %v2830
        %3786 = vmatprep.subr.bf16.mxu0 %v2837
        %3787 = vmatpush1.bf16.msra.mxu0 %v2836
        %3788 = vmatprep.subr.bf16.mxu0 %v2843
        %3789 = vmatpush1.bf16.msra.mxu0 %v2842
        %3790 = vmatprep.mubr.bf16.mxu0 %v1171
        %3791 = vmatmul.mubr.bf16.gmra.mrb[0].mxu0 %v1170
        %v3792 = vpop.f32.mrb[0].mxu0
        %v3793 = vadd.f32 %v3740, %v3792
        %v3794 = vpop.f32.mrb[0].mxu0
        %v3795 = vadd.f32 %v3742, %v3794
        %v3796 = vpop.f32.mrb[0].mxu0
        %v3797 = vadd.f32 %v3744, %v3796
        %v3798 = vpop.f32.mrb[0].mxu0
        %v3799 = vadd.f32 %v3746, %v3798
        %3800 = vmatprep.mubr.bf16.mxu0 %v1178
        %3801 = vmatmul.mubr.bf16.gmra.mrb[0].mxu0 %v1177
        %v3802 = vpop.f32.mrb[0].mxu0
        %v3803 = vadd.f32 %v3750, %v3802
        %v3804 = vpop.f32.mrb[0].mxu0
        %v3805 = vadd.f32 %v3752, %v3804
        %v3806 = vpop.f32.mrb[0].mxu0
        %v3807 = vadd.f32 %v3754, %v3806
        %v3808 = vpop.f32.mrb[0].mxu0
        %v3809 = vadd.f32 %v3756, %v3808
        %3810 = vdwg.mxu0
        %3811 = vmatprep.subr.bf16.mxu0 %v2849
        %3812 = vmatpush1.bf16.msra.mxu0 %v2848
        %3813 = vmatprep.subr.bf16.mxu0 %v2855
        %3814 = vmatpush1.bf16.msra.mxu0 %v2854
        %3815 = vmatprep.subr.bf16.mxu0 %v2861
        %3816 = vmatpush1.bf16.msra.mxu0 %v2860
        %3817 = vmatprep.subr.bf16.mxu0 %v2867
        %3818 = vmatpush1.bf16.msra.mxu0 %v2866
        %3819 = vmatprep.subr.bf16.mxu0 %v2873
        %3820 = vmatpush1.bf16.msra.mxu0 %v2872
        %3821 = vmatprep.subr.bf16.mxu0 %v2879
        %3822 = vmatpush1.bf16.msra.mxu0 %v2878
        %3823 = vmatprep.subr.bf16.mxu0 %v2885
        %3824 = vmatpush1.bf16.msra.mxu0 %v2884
        %3825 = vmatprep.subr.bf16.mxu0 %v2891
        %3826 = vmatpush1.bf16.msra.mxu0 %v2890
        %3827 = vmatprep.subr.bf16.mxu0 0
        %3828 = vmatpush1.bf16.msra.mxu0 0
        %3829 = vmatprep.subr.bf16.mxu0 0
        %3830 = vmatpush1.bf16.msra.mxu0 0
        %3831 = vmatprep.subr.bf16.mxu0 0
        %3832 = vmatpush1.bf16.msra.mxu0 0
        %3833 = vmatprep.subr.bf16.mxu0 0
        %3834 = vmatpush1.bf16.msra.mxu0 0
        %3835 = vmatprep.subr.bf16.mxu0 0
        %3836 = vmatpush1.bf16.msra.mxu0 0
        %3837 = vmatprep.subr.bf16.mxu0 0
        %3838 = vmatpush1.bf16.msra.mxu0 0
        %3839 = vmatprep.subr.bf16.mxu0 0
        %3840 = vmatpush1.bf16.msra.mxu0 0
        %3841 = vmatprep.subr.bf16.mxu0 0
        %3842 = vmatpush1.bf16.msra.mxu0 0
        %3843 = vmatprep.mubr.bf16.mxu0 0
        %3844 = vmatmul.mubr.bf16.gmra.mrb[0].mxu0 %v1172
        %v3845 = vpop.f32.mrb[0].mxu0
        %v3846 = vadd.f32 %v3793, %v3845
        %v3847 = vpop.f32.mrb[0].mxu0
        %v3848 = vadd.f32 %v3795, %v3847
        %v3849 = vpop.f32.mrb[0].mxu0
        %v3850 = vadd.f32 %v3797, %v3849
        %v3851 = vpop.f32.mrb[0].mxu0
        %v3852 = vadd.f32 %v3799, %v3851
        %3853 = vmatprep.mubr.bf16.mxu0 0
        %3854 = vmatmul.mubr.bf16.gmra.mrb[0].mxu0 %v1179
        %v3855 = vpop.f32.mrb[0].mxu0
        %v3856 = vadd.f32 %v3803, %v3855
        %v3857 = vpop.f32.mrb[0].mxu0
        %v3858 = vadd.f32 %v3805, %v3857
        %v3859 = vpop.f32.mrb[0].mxu0
        %v3860 = vadd.f32 %v3807, %v3859
        %v3861 = vpop.f32.mrb[0].mxu0
        %v3862 = vadd.f32 %v3809, %v3861
        %3863 = vdwg.mxu0
        %v3864 = vmax.f32 %v3422, 0.0
        %v3865 = vmax.f32 %v3424, 0.0
        %v3866 = vmax.f32 %v3634, 0.0
        %v3867 = vmax.f32 %v3636, 0.0
        %v3868 = vmax.f32 %v3846, 0.0
        %v3869 = vmax.f32 %v3848, 0.0
        %v3870 = vmax.f32 %v3426, 0.0
        %v3871 = vmax.f32 %v3428, 0.0
        %v3872 = vmax.f32 %v3638, 0.0
        %v3873 = vmax.f32 %v3640, 0.0
        %v3874 = vmax.f32 %v3850, 0.0
        %v3875 = vmax.f32 %v3852, 0.0
        %v3876 = vmax.f32 %v3432, 0.0
        %v3877 = vmax.f32 %v3434, 0.0
        %v3878 = vmax.f32 %v3644, 0.0
        %v3879 = vmax.f32 %v3646, 0.0
        %v3880 = vmax.f32 %v3856, 0.0
        %v3881 = vmax.f32 %v3858, 0.0
        %v3882 = vmax.f32 %v3436, 0.0
        %v3883 = vmax.f32 %v3438, 0.0
        %v3884 = vmax.f32 %v3648, 0.0
        %v3885 = vmax.f32 %v3650, 0.0
        %v3886 = vmax.f32 %v3860, 0.0
        %v3887 = vmax.f32 %v3862, 0.0
        %v3888 = vpack.c.bf16 %v3870, %v3864
        %v3889 = vpack.c.bf16 %v3871, %v3865
        %v3890 = vpack.c.bf16 %v3872, %v3866
        %v3891 = vpack.c.bf16 %v3873, %v3867
        %v3892 = vpack.c.bf16 %v3874, %v3868
        %v3893 = vpack.c.bf16 %v3875, %v3869
        %v3894 = vpack.c.bf16 %v3882, %v3876
        %v3895 = vpack.c.bf16 %v3883, %v3877
        %v3896 = vpack.c.bf16 %v3884, %v3878
        %v3897 = vpack.c.bf16 %v3885, %v3879
        %v3898 = vpack.c.bf16 %v3886, %v3880
        %v3899 = vpack.c.bf16 %v3887, %v3881
        %v3900 = vld [vmem:[#allocation9] sm:$0xff]
        %v3901 = vld [vmem:[#allocation9 + $0x8] sm:$0xff]
        %v3902 = vld [vmem:[#allocation9 + $0x10] sm:$0xff]
        %v3903 = vld [vmem:[#allocation9 + $0x18] sm:$0xff]
        %v3904 = vld [vmem:[#allocation9 + $0x20] sm:$0xff]
        %v3905 = vld [vmem:[#allocation9 + $0x28] sm:$0xff]
        %v3906 = vld [vmem:[#allocation9 + $0x30] sm:$0xff]
        %v3907 = vld [vmem:[#allocation9 + $0x38] sm:$0xff]
        %v3908 = vld [vmem:[#allocation9 + $0x40] sm:$0xff]
        %v3909 = vld [vmem:[#allocation9 + $0x48] sm:$0xff]
        %v3910 = vld [vmem:[#allocation9 + $0x50] sm:$0xff]
        %v3911 = vld [vmem:[#allocation9 + $0x58] sm:$0xff]
        %v3912 = vld [vmem:[#allocation9 + $0x60] sm:$0xff]
        %v3913 = vld [vmem:[#allocation9 + $0x68] sm:$0xff]
        %v3914 = vld [vmem:[#allocation9 + $0x70] sm:$0xff]
        %v3915 = vld [vmem:[#allocation9 + $0x78] sm:$0xff]
        %v3916 = vld [vmem:[#allocation9 + $0x80] sm:$0xff]
        %v3917 = vld [vmem:[#allocation9 + $0x88] sm:$0xff]
        %v3918 = vld [vmem:[#allocation9 + $0x90] sm:$0xff]
        %v3919 = vld [vmem:[#allocation9 + $0x98] sm:$0xff]
        %v3920 = vld [vmem:[#allocation9 + $0xa0] sm:$0xff]
        %v3921 = vld [vmem:[#allocation9 + $0xa8] sm:$0xff]
        %v3922 = vld [vmem:[#allocation9 + $0xb0] sm:$0xff]
        %v3923 = vld [vmem:[#allocation9 + $0xb8] sm:$0xff]
        %v3924 = vld [vmem:[#allocation9 + $0xc0] sm:$0xff]
        %v3925 = vld [vmem:[#allocation9 + $0xc8] sm:$0xff]
        %v3926 = vld [vmem:[#allocation9 + $0xd0] sm:$0xff]
        %v3927 = vld [vmem:[#allocation9 + $0xd8] sm:$0xff]
        %v3928 = vld [vmem:[#allocation9 + $0xe0] sm:$0xff]
        %v3929 = vld [vmem:[#allocation9 + $0xe8] sm:$0xff]
        %v3930 = vld [vmem:[#allocation9 + $0xf0] sm:$0xff]
        %v3931 = vld [vmem:[#allocation9 + $0xf8] sm:$0xff]
        %v3932 = vld [vmem:[#allocation9 + $0x100] sm:$0xff]
        %v3933 = vld [vmem:[#allocation9 + $0x108] sm:$0xff]
        %v3934 = vld [vmem:[#allocation9 + $0x110] sm:$0xff]
        %v3935 = vld [vmem:[#allocation9 + $0x118] sm:$0xff]
        %v3936 = vld [vmem:[#allocation9 + $0x120] sm:$0xff]
        %v3937 = vld [vmem:[#allocation9 + $0x128] sm:$0xff]
        %v3938 = vld [vmem:[#allocation9 + $0x130] sm:$0xff]
        %v3939 = vld [vmem:[#allocation9 + $0x138] sm:$0xff]
        %v3940 = vld [vmem:[#allocation9 + $0x140] sm:$0xff]
        %v3941 = vld [vmem:[#allocation9 + $0x148] sm:$0xff]
        %v3942 = vld [vmem:[#allocation9 + $0x150] sm:$0xff]
        %v3943 = vld [vmem:[#allocation9 + $0x158] sm:$0xff]
        %v3944 = vld [vmem:[#allocation9 + $0x160] sm:$0xff]
        %v3945 = vld [vmem:[#allocation9 + $0x168] sm:$0xff]
        %v3946 = vld [vmem:[#allocation9 + $0x170] sm:$0xff]
        %v3947 = vld [vmem:[#allocation9 + $0x178] sm:$0xff]
        %v3948 = vld [vmem:[#allocation9 + $0x180] sm:$0xff]
        %v3949 = vld [vmem:[#allocation9 + $0x188] sm:$0xff]
        %v3950 = vld [vmem:[#allocation9 + $0x190] sm:$0xff]
        %v3951 = vld [vmem:[#allocation9 + $0x198] sm:$0xff]
        %v3952 = vld [vmem:[#allocation9 + $0x1a0] sm:$0xff]
        %v3953 = vld [vmem:[#allocation9 + $0x1a8] sm:$0xff]
        %v3954 = vld [vmem:[#allocation9 + $0x1b0] sm:$0xff]
        %v3955 = vld [vmem:[#allocation9 + $0x1b8] sm:$0xff]
        %v3956 = vld [vmem:[#allocation9 + $0x1c0] sm:$0xff]
        %v3957 = vld [vmem:[#allocation9 + $0x1c8] sm:$0xff]
        %v3958 = vld [vmem:[#allocation9 + $0x1d0] sm:$0xff]
        %v3959 = vld [vmem:[#allocation9 + $0x1d8] sm:$0xff]
        %v3960 = vld [vmem:[#allocation9 + $0x1e0] sm:$0xff]
        %v3961 = vld [vmem:[#allocation9 + $0x1e8] sm:$0xff]
        %v3962 = vld [vmem:[#allocation9 + $0x1f0] sm:$0xff]
        %v3963 = vld [vmem:[#allocation9 + $0x1f8] sm:$0xff]
        %v3964 = vld [vmem:[#allocation9 + $0x200] sm:$0xff]
        %v3965 = vld [vmem:[#allocation9 + $0x208] sm:$0xff]
        %v3966 = vld [vmem:[#allocation9 + $0x210] sm:$0xff]
        %v3967 = vld [vmem:[#allocation9 + $0x218] sm:$0xff]
        %v3968 = vld [vmem:[#allocation9 + $0x220] sm:$0xff]
        %v3969 = vld [vmem:[#allocation9 + $0x228] sm:$0xff]
        %v3970 = vld [vmem:[#allocation9 + $0x230] sm:$0xff]
        %v3971 = vld [vmem:[#allocation9 + $0x238] sm:$0xff]
        %v3972 = vld [vmem:[#allocation9 + $0x240] sm:$0xff]
        %v3973 = vld [vmem:[#allocation9 + $0x248] sm:$0xff]
        %v3974 = vld [vmem:[#allocation9 + $0x250] sm:$0xff]
        %v3975 = vld [vmem:[#allocation9 + $0x258] sm:$0xff]
        %v3976 = vld [vmem:[#allocation9 + $0x260] sm:$0xff]
        %v3977 = vld [vmem:[#allocation9 + $0x268] sm:$0xff]
        %v3978 = vld [vmem:[#allocation9 + $0x270] sm:$0xff]
        %v3979 = vld [vmem:[#allocation9 + $0x278] sm:$0xff]
        %v3980 = vld [vmem:[#allocation9 + $0x280] sm:$0xff]
        %v3981 = vld [vmem:[#allocation9 + $0x288] sm:$0xff]
        %v3982 = vld [vmem:[#allocation9 + $0x290] sm:$0xff]
        %v3983 = vld [vmem:[#allocation9 + $0x298] sm:$0xff]
        %v3984 = vld [vmem:[#allocation9 + $0x2a0] sm:$0xff]
        %v3985 = vld [vmem:[#allocation9 + $0x2a8] sm:$0xff]
        %v3986 = vld [vmem:[#allocation9 + $0x2b0] sm:$0xff]
        %v3987 = vld [vmem:[#allocation9 + $0x2b8] sm:$0xff]
        %v3988 = vld [vmem:[#allocation9 + $0x2c0] sm:$0xff]
        %v3989 = vld [vmem:[#allocation9 + $0x2c8] sm:$0xff]
        %v3990 = vld [vmem:[#allocation9 + $0x2d0] sm:$0xff]
        %v3991 = vld [vmem:[#allocation9 + $0x2d8] sm:$0xff]
        %v3992 = vld [vmem:[#allocation9 + $0x2e0] sm:$0xff]
        %v3993 = vld [vmem:[#allocation9 + $0x2e8] sm:$0xff]
        %v3994 = vld [vmem:[#allocation9 + $0x2f0] sm:$0xff]
        %v3995 = vld [vmem:[#allocation9 + $0x2f8] sm:$0xff]
        %v3996 = vld [vmem:[#allocation10] sm:$0x3]
        %v3998 = vlaneseq
        %v3999 = vshrl.u32 %v3998, 7
        %v4000 = vsub.s32 0, %v3999
        %v4001 = vrot.slane %v3996, %v4000
        %v4002 = vlaneseq
        %v4003 = vshrl.u32 %v4002, 7
        %v4004 = vsub.s32 1, %v4003
        %v4005 = vrot.slane %v3996, %v4004
        %v4104 = vunpack.c.l.b16 %v3900
        %v4105 = vunpack.c.h.b16 %v3900
        %v4106 = vunpack.c.l.b16 %v3901
        %v4107 = vunpack.c.h.b16 %v3901
        %v4108 = vunpack.c.l.b16 %v3902
        %v4109 = vunpack.c.h.b16 %v3902
        %v4110 = vunpack.c.l.b16 %v3903
        %v4111 = vunpack.c.h.b16 %v3903
        %v4112 = vunpack.c.l.b16 %v3904
        %v4113 = vunpack.c.h.b16 %v3904
        %v4114 = vunpack.c.l.b16 %v3905
        %v4115 = vunpack.c.h.b16 %v3905
        %v4116 = vunpack.c.l.b16 %v3906
        %v4117 = vunpack.c.h.b16 %v3906
        %v4118 = vunpack.c.l.b16 %v3907
        %v4119 = vunpack.c.h.b16 %v3907
        %v4120 = vunpack.c.l.b16 %v3908
        %v4121 = vunpack.c.h.b16 %v3908
        %v4122 = vunpack.c.l.b16 %v3909
        %v4123 = vunpack.c.h.b16 %v3909
        %v4124 = vunpack.c.l.b16 %v3910
        %v4125 = vunpack.c.h.b16 %v3910
        %v4126 = vunpack.c.l.b16 %v3911
        %v4127 = vunpack.c.h.b16 %v3911
        %v4128 = vunpack.c.l.b16 %v3912
        %v4129 = vunpack.c.h.b16 %v3912
        %v4130 = vunpack.c.l.b16 %v3913
        %v4131 = vunpack.c.h.b16 %v3913
        %v4132 = vunpack.c.l.b16 %v3914
        %v4133 = vunpack.c.h.b16 %v3914
        %v4134 = vunpack.c.l.b16 %v3915
        %v4135 = vunpack.c.h.b16 %v3915
        %v4136 = vunpack.c.l.b16 %v3916
        %v4137 = vunpack.c.h.b16 %v3916
        %v4138 = vunpack.c.l.b16 %v3917
        %v4139 = vunpack.c.h.b16 %v3917
        %v4140 = vunpack.c.l.b16 %v3918
        %v4141 = vunpack.c.h.b16 %v3918
        %v4142 = vunpack.c.l.b16 %v3919
        %v4143 = vunpack.c.h.b16 %v3919
        %v4144 = vunpack.c.l.b16 %v3920
        %v4145 = vunpack.c.h.b16 %v3920
        %v4146 = vunpack.c.l.b16 %v3921
        %v4147 = vunpack.c.h.b16 %v3921
        %v4148 = vunpack.c.l.b16 %v3922
        %v4149 = vunpack.c.h.b16 %v3922
        %v4150 = vunpack.c.l.b16 %v3923
        %v4151 = vunpack.c.h.b16 %v3923
        %v4152 = vunpack.c.l.b16 %v3924
        %v4153 = vunpack.c.h.b16 %v3924
        %v4154 = vunpack.c.l.b16 %v3925
        %v4155 = vunpack.c.h.b16 %v3925
        %v4156 = vunpack.c.l.b16 %v3926
        %v4157 = vunpack.c.h.b16 %v3926
        %v4158 = vunpack.c.l.b16 %v3927
        %v4159 = vunpack.c.h.b16 %v3927
        %v4160 = vunpack.c.l.b16 %v3928
        %v4161 = vunpack.c.h.b16 %v3928
        %v4162 = vunpack.c.l.b16 %v3929
        %v4163 = vunpack.c.h.b16 %v3929
        %v4164 = vunpack.c.l.b16 %v3930
        %v4165 = vunpack.c.h.b16 %v3930
        %v4166 = vunpack.c.l.b16 %v3931
        %v4167 = vunpack.c.h.b16 %v3931
        %v4168 = vunpack.c.l.b16 %v3932
        %v4169 = vunpack.c.h.b16 %v3932
        %v4170 = vunpack.c.l.b16 %v3933
        %v4171 = vunpack.c.h.b16 %v3933
        %v4172 = vunpack.c.l.b16 %v3934
        %v4173 = vunpack.c.h.b16 %v3934
        %v4174 = vunpack.c.l.b16 %v3935
        %v4175 = vunpack.c.h.b16 %v3935
        %v4176 = vunpack.c.l.b16 %v3936
        %v4177 = vunpack.c.h.b16 %v3936
        %v4178 = vunpack.c.l.b16 %v3937
        %v4179 = vunpack.c.h.b16 %v3937
        %v4180 = vunpack.c.l.b16 %v3938
        %v4181 = vunpack.c.h.b16 %v3938
        %v4182 = vunpack.c.l.b16 %v3939
        %v4183 = vunpack.c.h.b16 %v3939
        %v4184 = vunpack.c.l.b16 %v3940
        %v4185 = vunpack.c.h.b16 %v3940
        %v4186 = vunpack.c.l.b16 %v3941
        %v4187 = vunpack.c.h.b16 %v3941
        %v4188 = vunpack.c.l.b16 %v3942
        %v4189 = vunpack.c.h.b16 %v3942
        %v4190 = vunpack.c.l.b16 %v3943
        %v4191 = vunpack.c.h.b16 %v3943
        %v4192 = vunpack.c.l.b16 %v3944
        %v4193 = vunpack.c.h.b16 %v3944
        %v4194 = vunpack.c.l.b16 %v3945
        %v4195 = vunpack.c.h.b16 %v3945
        %v4196 = vunpack.c.l.b16 %v3946
        %v4197 = vunpack.c.h.b16 %v3946
        %v4198 = vunpack.c.l.b16 %v3947
        %v4199 = vunpack.c.h.b16 %v3947
        %v4200 = vunpack.c.l.b16 %v3948
        %v4201 = vunpack.c.h.b16 %v3948
        %v4202 = vunpack.c.l.b16 %v3949
        %v4203 = vunpack.c.h.b16 %v3949
        %v4204 = vunpack.c.l.b16 %v3950
        %v4205 = vunpack.c.h.b16 %v3950
        %v4206 = vunpack.c.l.b16 %v3951
        %v4207 = vunpack.c.h.b16 %v3951
        %v4208 = vunpack.c.l.b16 %v3952
        %v4209 = vunpack.c.h.b16 %v3952
        %v4210 = vunpack.c.l.b16 %v3953
        %v4211 = vunpack.c.h.b16 %v3953
        %v4212 = vunpack.c.l.b16 %v3954
        %v4213 = vunpack.c.h.b16 %v3954
        %v4214 = vunpack.c.l.b16 %v3955
        %v4215 = vunpack.c.h.b16 %v3955
        %v4216 = vunpack.c.l.b16 %v3956
        %v4217 = vunpack.c.h.b16 %v3956
        %v4218 = vunpack.c.l.b16 %v3957
        %v4219 = vunpack.c.h.b16 %v3957
        %v4220 = vunpack.c.l.b16 %v3958
        %v4221 = vunpack.c.h.b16 %v3958
        %v4222 = vunpack.c.l.b16 %v3959
        %v4223 = vunpack.c.h.b16 %v3959
        %v4224 = vunpack.c.l.b16 %v3960
        %v4225 = vunpack.c.h.b16 %v3960
        %v4226 = vunpack.c.l.b16 %v3961
        %v4227 = vunpack.c.h.b16 %v3961
        %v4228 = vunpack.c.l.b16 %v3962
        %v4229 = vunpack.c.h.b16 %v3962
        %v4230 = vunpack.c.l.b16 %v3963
        %v4231 = vunpack.c.h.b16 %v3963
        %v4232 = vunpack.c.l.b16 %v3964
        %v4233 = vunpack.c.h.b16 %v3964
        %v4234 = vunpack.c.l.b16 %v3965
        %v4235 = vunpack.c.h.b16 %v3965
        %v4236 = vunpack.c.l.b16 %v3966
        %v4237 = vunpack.c.h.b16 %v3966
        %v4238 = vunpack.c.l.b16 %v3967
        %v4239 = vunpack.c.h.b16 %v3967
        %v4240 = vunpack.c.l.b16 %v3968
        %v4241 = vunpack.c.h.b16 %v3968
        %v4242 = vunpack.c.l.b16 %v3969
        %v4243 = vunpack.c.h.b16 %v3969
        %v4244 = vunpack.c.l.b16 %v3970
        %v4245 = vunpack.c.h.b16 %v3970
        %v4246 = vunpack.c.l.b16 %v3971
        %v4247 = vunpack.c.h.b16 %v3971
        %v4248 = vunpack.c.l.b16 %v3972
        %v4249 = vunpack.c.h.b16 %v3972
        %v4250 = vunpack.c.l.b16 %v3973
        %v4251 = vunpack.c.h.b16 %v3973
        %v4252 = vunpack.c.l.b16 %v3974
        %v4253 = vunpack.c.h.b16 %v3974
        %v4254 = vunpack.c.l.b16 %v3975
        %v4255 = vunpack.c.h.b16 %v3975
        %v4256 = vunpack.c.l.b16 %v3976
        %v4257 = vunpack.c.h.b16 %v3976
        %v4258 = vunpack.c.l.b16 %v3977
        %v4259 = vunpack.c.h.b16 %v3977
        %v4260 = vunpack.c.l.b16 %v3978
        %v4261 = vunpack.c.h.b16 %v3978
        %v4262 = vunpack.c.l.b16 %v3979
        %v4263 = vunpack.c.h.b16 %v3979
        %v4264 = vunpack.c.l.b16 %v3980
        %v4265 = vunpack.c.h.b16 %v3980
        %v4266 = vunpack.c.l.b16 %v3981
        %v4267 = vunpack.c.h.b16 %v3981
        %v4268 = vunpack.c.l.b16 %v3982
        %v4269 = vunpack.c.h.b16 %v3982
        %v4270 = vunpack.c.l.b16 %v3983
        %v4271 = vunpack.c.h.b16 %v3983
        %v4272 = vunpack.c.l.b16 %v3984
        %v4273 = vunpack.c.h.b16 %v3984
        %v4274 = vunpack.c.l.b16 %v3985
        %v4275 = vunpack.c.h.b16 %v3985
        %v4276 = vunpack.c.l.b16 %v3986
        %v4277 = vunpack.c.h.b16 %v3986
        %v4278 = vunpack.c.l.b16 %v3987
        %v4279 = vunpack.c.h.b16 %v3987
        %v4280 = vunpack.c.l.b16 %v3988
        %v4281 = vunpack.c.h.b16 %v3988
        %v4282 = vunpack.c.l.b16 %v3989
        %v4283 = vunpack.c.h.b16 %v3989
        %v4284 = vunpack.c.l.b16 %v3990
        %v4285 = vunpack.c.h.b16 %v3990
        %v4286 = vunpack.c.l.b16 %v3991
        %v4287 = vunpack.c.h.b16 %v3991
        %v4288 = vunpack.c.l.b16 %v3992
        %v4289 = vunpack.c.h.b16 %v3992
        %v4290 = vunpack.c.l.b16 %v3993
        %v4291 = vunpack.c.h.b16 %v3993
        %v4292 = vunpack.c.l.b16 %v3994
        %v4293 = vunpack.c.h.b16 %v3994
        %v4294 = vunpack.c.l.b16 %v3995
        %v4295 = vunpack.c.h.b16 %v3995
        %v4296 = vpack.c.b16 %v4106, %v4104
        %v4297 = vpack.c.b16 %v4107, %v4105
        %v4298 = vpack.c.b16 %v4110, %v4108
        %v4299 = vpack.c.b16 %v4111, %v4109
        %v4300 = vpack.c.b16 %v4114, %v4112
        %v4301 = vpack.c.b16 %v4115, %v4113
        %v4302 = vpack.c.b16 %v4118, %v4116
        %v4303 = vpack.c.b16 %v4119, %v4117
        %v4304 = vpack.c.b16 %v4122, %v4120
        %v4305 = vpack.c.b16 %v4123, %v4121
        %v4306 = vpack.c.b16 %v4126, %v4124
        %v4307 = vpack.c.b16 %v4127, %v4125
        %v4308 = vpack.c.b16 %v4130, %v4128
        %v4309 = vpack.c.b16 %v4131, %v4129
        %v4310 = vpack.c.b16 %v4134, %v4132
        %v4311 = vpack.c.b16 %v4135, %v4133
        %v4312 = vpack.c.b16 %v4138, %v4136
        %v4313 = vpack.c.b16 %v4139, %v4137
        %v4314 = vpack.c.b16 %v4142, %v4140
        %v4315 = vpack.c.b16 %v4143, %v4141
        %v4316 = vpack.c.b16 %v4146, %v4144
        %v4317 = vpack.c.b16 %v4147, %v4145
        %v4318 = vpack.c.b16 %v4150, %v4148
        %v4319 = vpack.c.b16 %v4151, %v4149
        %v4320 = vpack.c.b16 %v4154, %v4152
        %v4321 = vpack.c.b16 %v4155, %v4153
        %v4322 = vpack.c.b16 %v4158, %v4156
        %v4323 = vpack.c.b16 %v4159, %v4157
        %v4324 = vpack.c.b16 %v4162, %v4160
        %v4325 = vpack.c.b16 %v4163, %v4161
        %v4326 = vpack.c.b16 %v4166, %v4164
        %v4327 = vpack.c.b16 %v4167, %v4165
        %v4328 = vpack.c.b16 %v4170, %v4168
        %v4329 = vpack.c.b16 %v4171, %v4169
        %v4330 = vpack.c.b16 %v4174, %v4172
        %v4331 = vpack.c.b16 %v4175, %v4173
        %v4332 = vpack.c.b16 %v4178, %v4176
        %v4333 = vpack.c.b16 %v4179, %v4177
        %v4334 = vpack.c.b16 %v4182, %v4180
        %v4335 = vpack.c.b16 %v4183, %v4181
        %v4336 = vpack.c.b16 %v4186, %v4184
        %v4337 = vpack.c.b16 %v4187, %v4185
        %v4338 = vpack.c.b16 %v4190, %v4188
        %v4339 = vpack.c.b16 %v4191, %v4189
        %v4340 = vpack.c.b16 %v4194, %v4192
        %v4341 = vpack.c.b16 %v4195, %v4193
        %v4342 = vpack.c.b16 %v4198, %v4196
        %v4343 = vpack.c.b16 %v4199, %v4197
        %v4344 = vpack.c.b16 %v4202, %v4200
        %v4345 = vpack.c.b16 %v4203, %v4201
        %v4346 = vpack.c.b16 %v4206, %v4204
        %v4347 = vpack.c.b16 %v4207, %v4205
        %v4348 = vpack.c.b16 %v4210, %v4208
        %v4349 = vpack.c.b16 %v4211, %v4209
        %v4350 = vpack.c.b16 %v4214, %v4212
        %v4351 = vpack.c.b16 %v4215, %v4213
        %v4352 = vpack.c.b16 %v4218, %v4216
        %v4353 = vpack.c.b16 %v4219, %v4217
        %v4354 = vpack.c.b16 %v4222, %v4220
        %v4355 = vpack.c.b16 %v4223, %v4221
        %v4356 = vpack.c.b16 %v4226, %v4224
        %v4357 = vpack.c.b16 %v4227, %v4225
        %v4358 = vpack.c.b16 %v4230, %v4228
        %v4359 = vpack.c.b16 %v4231, %v4229
        %v4360 = vpack.c.b16 %v4234, %v4232
        %v4361 = vpack.c.b16 %v4235, %v4233
        %v4362 = vpack.c.b16 %v4238, %v4236
        %v4363 = vpack.c.b16 %v4239, %v4237
        %v4364 = vpack.c.b16 %v4242, %v4240
        %v4365 = vpack.c.b16 %v4243, %v4241
        %v4366 = vpack.c.b16 %v4246, %v4244
        %v4367 = vpack.c.b16 %v4247, %v4245
        %v4368 = vpack.c.b16 %v4250, %v4248
        %v4369 = vpack.c.b16 %v4251, %v4249
        %v4370 = vpack.c.b16 %v4254, %v4252
        %v4371 = vpack.c.b16 %v4255, %v4253
        %v4372 = vpack.c.b16 %v4258, %v4256
        %v4373 = vpack.c.b16 %v4259, %v4257
        %v4374 = vpack.c.b16 %v4262, %v4260
        %v4375 = vpack.c.b16 %v4263, %v4261
        %v4376 = vpack.c.b16 %v4266, %v4264
        %v4377 = vpack.c.b16 %v4267, %v4265
        %v4378 = vpack.c.b16 %v4270, %v4268
        %v4379 = vpack.c.b16 %v4271, %v4269
        %v4380 = vpack.c.b16 %v4274, %v4272
        %v4381 = vpack.c.b16 %v4275, %v4273
        %v4382 = vpack.c.b16 %v4278, %v4276
        %v4383 = vpack.c.b16 %v4279, %v4277
        %v4384 = vpack.c.b16 %v4282, %v4280
        %v4385 = vpack.c.b16 %v4283, %v4281
        %v4386 = vpack.c.b16 %v4286, %v4284
        %v4387 = vpack.c.b16 %v4287, %v4285
        %v4388 = vpack.c.b16 %v4290, %v4288
        %v4389 = vpack.c.b16 %v4291, %v4289
        %v4390 = vpack.c.b16 %v4294, %v4292
        %v4391 = vpack.c.b16 %v4295, %v4293
        %4488 = vmatprep.subr.bf16.mxu0 %v4297
        %4489 = vmatpush1.bf16.msra.mxu0 %v4296
        %4490 = vmatprep.subr.bf16.mxu0 %v4299
        %4491 = vmatpush1.bf16.msra.mxu0 %v4298
        %4492 = vmatprep.subr.bf16.mxu0 %v4301
        %4493 = vmatpush1.bf16.msra.mxu0 %v4300
        %4494 = vmatprep.subr.bf16.mxu0 %v4303
        %4495 = vmatpush1.bf16.msra.mxu0 %v4302
        %4496 = vmatprep.subr.bf16.mxu0 %v4305
        %4497 = vmatpush1.bf16.msra.mxu0 %v4304
        %4498 = vmatprep.subr.bf16.mxu0 %v4307
        %4499 = vmatpush1.bf16.msra.mxu0 %v4306
        %4500 = vmatprep.subr.bf16.mxu0 %v4309
        %4501 = vmatpush1.bf16.msra.mxu0 %v4308
        %4502 = vmatprep.subr.bf16.mxu0 %v4311
        %4503 = vmatpush1.bf16.msra.mxu0 %v4310
        %4504 = vmatprep.subr.bf16.mxu0 %v4313
        %4505 = vmatpush1.bf16.msra.mxu0 %v4312
        %4506 = vmatprep.subr.bf16.mxu0 %v4315
        %4507 = vmatpush1.bf16.msra.mxu0 %v4314
        %4508 = vmatprep.subr.bf16.mxu0 %v4317
        %4509 = vmatpush1.bf16.msra.mxu0 %v4316
        %4510 = vmatprep.subr.bf16.mxu0 %v4319
        %4511 = vmatpush1.bf16.msra.mxu0 %v4318
        %4512 = vmatprep.subr.bf16.mxu0 %v4321
        %4513 = vmatpush1.bf16.msra.mxu0 %v4320
        %4514 = vmatprep.subr.bf16.mxu0 %v4323
        %4515 = vmatpush1.bf16.msra.mxu0 %v4322
        %4516 = vmatprep.subr.bf16.mxu0 %v4325
        %4517 = vmatpush1.bf16.msra.mxu0 %v4324
        %4518 = vmatprep.subr.bf16.mxu0 %v4327
        %4519 = vmatpush1.bf16.msra.mxu0 %v4326
        %4520 = vmatprep.mubr.bf16.mxu0 %v3889
        %4521 = vmatmul.mubr.bf16.gmra.mrb[0].mxu0 %v3888
        %v4522 = vpop.f32.mrb[0].mxu0
        %v4523 = vadd.f32 %v4001, %v4522
        %v4524 = vpop.f32.mrb[0].mxu0
        %v4525 = vadd.f32 %v4005, %v4524
        %v4526 = vpop.f32.mrb[0].mxu0
        %v4527 = vadd.f32 %v4001, %v4526
        %v4528 = vpop.f32.mrb[0].mxu0
        %v4529 = vadd.f32 %v4005, %v4528
        %4530 = vmatprep.mubr.bf16.mxu0 %v3895
        %4531 = vmatmul.mubr.bf16.gmra.mrb[0].mxu0 %v3894
        %v4532 = vpop.f32.mrb[0].mxu0
        %v4533 = vadd.f32 %v4001, %v4532
        %v4534 = vpop.f32.mrb[0].mxu0
        %v4535 = vadd.f32 %v4005, %v4534
        %v4536 = vpop.f32.mrb[0].mxu0
        %v4537 = vadd.f32 %v4001, %v4536
        %v4538 = vpop.f32.mrb[0].mxu0
        %v4539 = vadd.f32 %v4005, %v4538
        %4540 = vdwg.mxu0
        %4541 = vmatprep.subr.bf16.mxu0 %v4329
        %4542 = vmatpush1.bf16.msra.mxu0 %v4328
        %4543 = vmatprep.subr.bf16.mxu0 %v4331
        %4544 = vmatpush1.bf16.msra.mxu0 %v4330
        %4545 = vmatprep.subr.bf16.mxu0 %v4333
        %4546 = vmatpush1.bf16.msra.mxu0 %v4332
        %4547 = vmatprep.subr.bf16.mxu0 %v4335
        %4548 = vmatpush1.bf16.msra.mxu0 %v4334
        %4549 = vmatprep.subr.bf16.mxu0 %v4337
        %4550 = vmatpush1.bf16.msra.mxu0 %v4336
        %4551 = vmatprep.subr.bf16.mxu0 %v4339
        %4552 = vmatpush1.bf16.msra.mxu0 %v4338
        %4553 = vmatprep.subr.bf16.mxu0 %v4341
        %4554 = vmatpush1.bf16.msra.mxu0 %v4340
        %4555 = vmatprep.subr.bf16.mxu0 %v4343
        %4556 = vmatpush1.bf16.msra.mxu0 %v4342
        %4557 = vmatprep.subr.bf16.mxu0 %v4345
        %4558 = vmatpush1.bf16.msra.mxu0 %v4344
        %4559 = vmatprep.subr.bf16.mxu0 %v4347
        %4560 = vmatpush1.bf16.msra.mxu0 %v4346
        %4561 = vmatprep.subr.bf16.mxu0 %v4349
        %4562 = vmatpush1.bf16.msra.mxu0 %v4348
        %4563 = vmatprep.subr.bf16.mxu0 %v4351
        %4564 = vmatpush1.bf16.msra.mxu0 %v4350
        %4565 = vmatprep.subr.bf16.mxu0 %v4353
        %4566 = vmatpush1.bf16.msra.mxu0 %v4352
        %4567 = vmatprep.subr.bf16.mxu0 %v4355
        %4568 = vmatpush1.bf16.msra.mxu0 %v4354
        %4569 = vmatprep.subr.bf16.mxu0 %v4357
        %4570 = vmatpush1.bf16.msra.mxu0 %v4356
        %4571 = vmatprep.subr.bf16.mxu0 %v4359
        %4572 = vmatpush1.bf16.msra.mxu0 %v4358
        %4573 = vmatprep.mubr.bf16.mxu0 %v3891
        %4574 = vmatmul.mubr.bf16.gmra.mrb[0].mxu0 %v3890
        %v4575 = vpop.f32.mrb[0].mxu0
        %v4576 = vadd.f32 %v4523, %v4575
        %v4577 = vpop.f32.mrb[0].mxu0
        %v4578 = vadd.f32 %v4525, %v4577
        %v4579 = vpop.f32.mrb[0].mxu0
        %v4580 = vadd.f32 %v4527, %v4579
        %v4581 = vpop.f32.mrb[0].mxu0
        %v4582 = vadd.f32 %v4529, %v4581
        %4583 = vmatprep.mubr.bf16.mxu0 %v3897
        %4584 = vmatmul.mubr.bf16.gmra.mrb[0].mxu0 %v3896
        %v4585 = vpop.f32.mrb[0].mxu0
        %v4586 = vadd.f32 %v4533, %v4585
        %v4587 = vpop.f32.mrb[0].mxu0
        %v4588 = vadd.f32 %v4535, %v4587
        %v4589 = vpop.f32.mrb[0].mxu0
        %v4590 = vadd.f32 %v4537, %v4589
        %v4591 = vpop.f32.mrb[0].mxu0
        %v4592 = vadd.f32 %v4539, %v4591
        %4593 = vdwg.mxu0
        %4594 = vmatprep.subr.bf16.mxu0 %v4361
        %4595 = vmatpush1.bf16.msra.mxu0 %v4360
        %4596 = vmatprep.subr.bf16.mxu0 %v4363
        %4597 = vmatpush1.bf16.msra.mxu0 %v4362
        %4598 = vmatprep.subr.bf16.mxu0 %v4365
        %4599 = vmatpush1.bf16.msra.mxu0 %v4364
        %4600 = vmatprep.subr.bf16.mxu0 %v4367
        %4601 = vmatpush1.bf16.msra.mxu0 %v4366
        %4602 = vmatprep.subr.bf16.mxu0 %v4369
        %4603 = vmatpush1.bf16.msra.mxu0 %v4368
        %4604 = vmatprep.subr.bf16.mxu0 %v4371
        %4605 = vmatpush1.bf16.msra.mxu0 %v4370
        %4606 = vmatprep.subr.bf16.mxu0 %v4373
        %4607 = vmatpush1.bf16.msra.mxu0 %v4372
        %4608 = vmatprep.subr.bf16.mxu0 %v4375
        %4609 = vmatpush1.bf16.msra.mxu0 %v4374
        %4610 = vmatprep.subr.bf16.mxu0 %v4377
        %4611 = vmatpush1.bf16.msra.mxu0 %v4376
        %4612 = vmatprep.subr.bf16.mxu0 %v4379
        %4613 = vmatpush1.bf16.msra.mxu0 %v4378
        %4614 = vmatprep.subr.bf16.mxu0 %v4381
        %4615 = vmatpush1.bf16.msra.mxu0 %v4380
        %4616 = vmatprep.subr.bf16.mxu0 %v4383
        %4617 = vmatpush1.bf16.msra.mxu0 %v4382
        %4618 = vmatprep.subr.bf16.mxu0 %v4385
        %4619 = vmatpush1.bf16.msra.mxu0 %v4384
        %4620 = vmatprep.subr.bf16.mxu0 %v4387
        %4621 = vmatpush1.bf16.msra.mxu0 %v4386
        %4622 = vmatprep.subr.bf16.mxu0 %v4389
        %4623 = vmatpush1.bf16.msra.mxu0 %v4388
        %4624 = vmatprep.subr.bf16.mxu0 %v4391
        %4625 = vmatpush1.bf16.msra.mxu0 %v4390
        %4626 = vmatprep.mubr.bf16.mxu0 %v3893
        %4627 = vmatmul.mubr.bf16.gmra.mrb[0].mxu0 %v3892
        %v4628 = vpop.f32.mrb[0].mxu0
        %v4629 = vadd.f32 %v4576, %v4628
        %v4630 = vpop.f32.mrb[0].mxu0
        %v4631 = vadd.f32 %v4578, %v4630
        %v4632 = vpop.f32.mrb[0].mxu0
        %v4633 = vadd.f32 %v4580, %v4632
        %v4634 = vpop.f32.mrb[0].mxu0
        %v4635 = vadd.f32 %v4582, %v4634
        %4636 = vmatprep.mubr.bf16.mxu0 %v3899
        %4637 = vmatmul.mubr.bf16.gmra.mrb[0].mxu0 %v3898
        %v4638 = vpop.f32.mrb[0].mxu0
        %v4639 = vadd.f32 %v4586, %v4638
        %v4640 = vpop.f32.mrb[0].mxu0
        %v4641 = vadd.f32 %v4588, %v4640
        %v4642 = vpop.f32.mrb[0].mxu0
        %v4643 = vadd.f32 %v4590, %v4642
        %v4644 = vpop.f32.mrb[0].mxu0
        %v4645 = vadd.f32 %v4592, %v4644
        %4646 = vdwg.mxu0
        %v4647 = vmax.f32 %v4629, 0.0
        %v4648 = vmax.f32 %v4631, 0.0
        %v4649 = vmax.f32 %v4633, 0.0
        %v4650 = vmax.f32 %v4635, 0.0
        %v4651 = vmax.f32 %v4639, 0.0
        %v4652 = vmax.f32 %v4641, 0.0
        %v4653 = vmax.f32 %v4643, 0.0
        %v4654 = vmax.f32 %v4645, 0.0
        %v4655 = vpack.c.bf16 %v4649, %v4647
        %v4656 = vpack.c.bf16 %v4650, %v4648
        %v4657 = vpack.c.bf16 %v4653, %v4651
        %v4658 = vpack.c.bf16 %v4654, %v4652
        %v4659 = vld [vmem:[#allocation12] sm:$0xf]
        %v4660 = vld [vmem:[#allocation12 + $0x4] sm:$0xf]
        %v4663 = vunpack.c.l.b16 %v4659
        %v4664 = vunpack.c.l.b16 %v4660
        %v4665 = vpack.c.b16 %v4664, %v4663
        %vm4666 = vcmask 261120
        %v4668 = vsel %vm4666, %v4665, 0
        %4670 = vmatprep.subr.bf16.mxu0 %v4656
        %4671 = vmatpush1.bf16.msra.mxu0 %v4655
        %4672 = vmatprep.subr.bf16.mxu0 %v4658
        %4673 = vmatpush1.bf16.msra.mxu0 %v4657
        %4674 = vmatprep.subr.bf16.mxu0 0
        %4675 = vmatpush1.bf16.msra.mxu0 0
        %4676 = vmatprep.subr.bf16.mxu0 0
        %4677 = vmatpush1.bf16.msra.mxu0 0
        %4678 = vmatprep.subr.bf16.mxu0 0
        %4679 = vmatpush1.bf16.msra.mxu0 0
        %4680 = vmatprep.subr.bf16.mxu0 0
        %4681 = vmatpush1.bf16.msra.mxu0 0
        %4682 = vmatprep.subr.bf16.mxu0 0
        %4683 = vmatpush1.bf16.msra.mxu0 0
        %4684 = vmatprep.subr.bf16.mxu0 0
        %4685 = vmatpush1.bf16.msra.mxu0 0
        %4686 = vmatprep.subr.bf16.mxu0 0
        %4687 = vmatpush1.bf16.msra.mxu0 0
        %4688 = vmatprep.subr.bf16.mxu0 0
        %4689 = vmatpush1.bf16.msra.mxu0 0
        %4690 = vmatprep.subr.bf16.mxu0 0
        %4691 = vmatpush1.bf16.msra.mxu0 0
        %4692 = vmatprep.subr.bf16.mxu0 0
        %4693 = vmatpush1.bf16.msra.mxu0 0
        %4694 = vmatprep.subr.bf16.mxu0 0
        %4695 = vmatpush1.bf16.msra.mxu0 0
        %4696 = vmatprep.subr.bf16.mxu0 0
        %4697 = vmatpush1.bf16.msra.mxu0 0
        %4698 = vmatprep.subr.bf16.mxu0 0
        %4699 = vmatpush1.bf16.msra.mxu0 0
        %4700 = vmatprep.subr.bf16.mxu0 0
        %4701 = vmatpush1.bf16.msra.mxu0 0
        %4702 = vmatprep.mubr.bf16.mxu0 0
        %4703 = vmatmul.mubr.bf16.gmra.mrb[0].mxu0 %v4668
        %v4704 = vpop.f32.mrb[0].mxu0
        %v4705 = vadd.f32 0.0, %v4704
        %v4706 = vpop.f32.mrb[0].mxu0
        %v4707 = vadd.f32 0.0, %v4706
        %v4708 = vpop.f32.mrb[0].mxu0
        %v4709 = vadd.f32 0.0, %v4708
        %v4710 = vpop.f32.mrb[0].mxu0
        %v4711 = vadd.f32 0.0, %v4710
        %4712 = vdwg.mxu0
        %s4713 = scalar_lea.vmem [#allocation12], 8
        %v4714 = vld [vmem:[%s4713] sm:$0xf]
        %v4715 = vld [vmem:[%s4713 + $0x4] sm:$0xf]
        %v4718 = vunpack.c.l.b16 %v4714
        %v4719 = vunpack.c.l.b16 %v4715
        %v4720 = vpack.c.b16 %v4719, %v4718
        %v4722 = vsel %vm4666, %v4720, 0
        %4724 = vmatprep.subr.bf16.mxu0 %v4656
        %4725 = vmatpush1.bf16.msra.mxu0 %v4655
        %4726 = vmatprep.subr.bf16.mxu0 %v4658
        %4727 = vmatpush1.bf16.msra.mxu0 %v4657
        %4728 = vmatprep.subr.bf16.mxu0 0
        %4729 = vmatpush1.bf16.msra.mxu0 0
        %4730 = vmatprep.subr.bf16.mxu0 0
        %4731 = vmatpush1.bf16.msra.mxu0 0
        %4732 = vmatprep.subr.bf16.mxu0 0
        %4733 = vmatpush1.bf16.msra.mxu0 0
        %4734 = vmatprep.subr.bf16.mxu0 0
        %4735 = vmatpush1.bf16.msra.mxu0 0
        %4736 = vmatprep.subr.bf16.mxu0 0
        %4737 = vmatpush1.bf16.msra.mxu0 0
        %4738 = vmatprep.subr.bf16.mxu0 0
        %4739 = vmatpush1.bf16.msra.mxu0 0
        %4740 = vmatprep.subr.bf16.mxu0 0
        %4741 = vmatpush1.bf16.msra.mxu0 0
        %4742 = vmatprep.subr.bf16.mxu0 0
        %4743 = vmatpush1.bf16.msra.mxu0 0
        %4744 = vmatprep.subr.bf16.mxu0 0
        %4745 = vmatpush1.bf16.msra.mxu0 0
        %4746 = vmatprep.subr.bf16.mxu0 0
        %4747 = vmatpush1.bf16.msra.mxu0 0
        %4748 = vmatprep.subr.bf16.mxu0 0
        %4749 = vmatpush1.bf16.msra.mxu0 0
        %4750 = vmatprep.subr.bf16.mxu0 0
        %4751 = vmatpush1.bf16.msra.mxu0 0
        %4752 = vmatprep.subr.bf16.mxu0 0
        %4753 = vmatpush1.bf16.msra.mxu0 0
        %4754 = vmatprep.subr.bf16.mxu0 0
        %4755 = vmatpush1.bf16.msra.mxu0 0
        %4756 = vmatprep.mubr.bf16.mxu0 0
        %4757 = vmatmul.mubr.bf16.gmra.mrb[0].mxu0 %v4722
        %v4758 = vpop.f32.mrb[0].mxu0
        %v4759 = vadd.f32 0.0, %v4758
        %v4760 = vpop.f32.mrb[0].mxu0
        %v4761 = vadd.f32 0.0, %v4760
        %v4762 = vpop.f32.mrb[0].mxu0
        %v4763 = vadd.f32 0.0, %v4762
        %v4764 = vpop.f32.mrb[0].mxu0
        %v4765 = vadd.f32 0.0, %v4764
        %4766 = vdwg.mxu0
        %v4767 = vmax.f32 %v4705, %v4759
        %v4768 = vmax.f32 %v4707, %v4761
        %v4769 = vmax.f32 %v4709, %v4763
        %v4770 = vmax.f32 %v4711, %v4765
        %v4771 = vmax.f32 %v4767, %v4768
        %v4772 = vmax.f32 %v4769, %v4770
        %v4773 = vpack.c.bf16 %v4772, %v4771
        %v4774 = vld [vmem:[#allocation13] sm:$0xf]
        %v4775 = vld [vmem:[#allocation13 + $0x4] sm:$0xf]
        %v4776 = vld [vmem:[#allocation13 + $0x8] sm:$0xf]
        %v4777 = vld [vmem:[#allocation13 + $0xc] sm:$0xf]
        %v4778 = vld [vmem:[#allocation13 + $0x10] sm:$0xf]
        %v4779 = vld [vmem:[#allocation13 + $0x14] sm:$0xf]
        %v4780 = vld [vmem:[#allocation13 + $0x18] sm:$0xf]
        %v4781 = vld [vmem:[#allocation13 + $0x1c] sm:$0xf]
        %v4782 = vld [vmem:[#allocation13 + $0x20] sm:$0xf]
        %v4783 = vld [vmem:[#allocation13 + $0x24] sm:$0xf]
        %v4784 = vld [vmem:[#allocation13 + $0x28] sm:$0xf]
        %v4785 = vld [vmem:[#allocation13 + $0x2c] sm:$0xf]
        %v4786 = vld [vmem:[#allocation13 + $0x30] sm:$0xf]
        %v4787 = vld [vmem:[#allocation13 + $0x34] sm:$0xf]
        %v4788 = vld [vmem:[#allocation13 + $0x38] sm:$0xf]
        %v4789 = vld [vmem:[#allocation13 + $0x3c] sm:$0xf]
        %v4790 = vld [vmem:[#allocation15] sm:$0x1]
        %v4792 = vlaneseq
        %v4793 = vshrl.u32 %v4792, 7
        %v4794 = vsub.s32 0, %v4793
        %v4795 = vrot.slane %v4790, %v4794
        %v4813 = vunpack.c.l.b16 %v4774
        %v4814 = vunpack.c.l.b16 %v4775
        %v4815 = vunpack.c.l.b16 %v4776
        %v4816 = vunpack.c.l.b16 %v4777
        %v4817 = vunpack.c.l.b16 %v4778
        %v4818 = vunpack.c.l.b16 %v4779
        %v4819 = vunpack.c.l.b16 %v4780
        %v4820 = vunpack.c.l.b16 %v4781
        %v4821 = vunpack.c.l.b16 %v4782
        %v4822 = vunpack.c.l.b16 %v4783
        %v4823 = vunpack.c.l.b16 %v4784
        %v4824 = vunpack.c.l.b16 %v4785
        %v4825 = vunpack.c.l.b16 %v4786
        %v4826 = vunpack.c.l.b16 %v4787
        %v4827 = vunpack.c.l.b16 %v4788
        %v4828 = vunpack.c.l.b16 %v4789
        %v4829 = vpack.c.b16 %v4814, %v4813
        %v4830 = vpack.c.b16 %v4816, %v4815
        %v4831 = vpack.c.b16 %v4818, %v4817
        %v4832 = vpack.c.b16 %v4820, %v4819
        %v4833 = vpack.c.b16 %v4822, %v4821
        %v4834 = vpack.c.b16 %v4824, %v4823
        %v4835 = vpack.c.b16 %v4826, %v4825
        %v4836 = vpack.c.b16 %v4828, %v4827
        %4845 = vmatprep.subr.bf16.mxu0 0
        %4846 = vmatpush1.bf16.msra.mxu0 %v4829
        %4847 = vmatprep.subr.bf16.mxu0 0
        %4848 = vmatpush1.bf16.msra.mxu0 %v4830
        %4849 = vmatprep.subr.bf16.mxu0 0
        %4850 = vmatpush1.bf16.msra.mxu0 %v4831
        %4851 = vmatprep.subr.bf16.mxu0 0
        %4852 = vmatpush1.bf16.msra.mxu0 %v4832
        %4853 = vmatprep.subr.bf16.mxu0 0
        %4854 = vmatpush1.bf16.msra.mxu0 %v4833
        %4855 = vmatprep.subr.bf16.mxu0 0
        %4856 = vmatpush1.bf16.msra.mxu0 %v4834
        %4857 = vmatprep.subr.bf16.mxu0 0
        %4858 = vmatpush1.bf16.msra.mxu0 %v4835
        %4859 = vmatprep.subr.bf16.mxu0 0
        %4860 = vmatpush1.bf16.msra.mxu0 %v4836
        %4861 = vmatprep.subr.bf16.mxu0 0
        %4862 = vmatpush1.bf16.msra.mxu0 0
        %4863 = vmatprep.subr.bf16.mxu0 0
        %4864 = vmatpush1.bf16.msra.mxu0 0
        %4865 = vmatprep.subr.bf16.mxu0 0
        %4866 = vmatpush1.bf16.msra.mxu0 0
        %4867 = vmatprep.subr.bf16.mxu0 0
        %4868 = vmatpush1.bf16.msra.mxu0 0
        %4869 = vmatprep.subr.bf16.mxu0 0
        %4870 = vmatpush1.bf16.msra.mxu0 0
        %4871 = vmatprep.subr.bf16.mxu0 0
        %4872 = vmatpush1.bf16.msra.mxu0 0
        %4873 = vmatprep.subr.bf16.mxu0 0
        %4874 = vmatpush1.bf16.msra.mxu0 0
        %4875 = vmatprep.subr.bf16.mxu0 0
        %4876 = vmatpush1.bf16.msra.mxu0 0
        %4877 = vmatprep.mubr.bf16.mxu0 0
        %4878 = vmatmul.mubr.bf16.gmra.mrb[0].mxu0 %v4773
        %v4879 = vpop.f32.mrb[0].mxu0
        %v4880 = vadd.f32 %v4795, %v4879
        %v4881 = vpop.f32.mrb[0].mxu0
        %v4882 = vpop.f32.mrb[0].mxu0
        %v4883 = vadd.f32 %v4795, %v4882
        %v4884 = vpop.f32.mrb[0].mxu0
        %4885 = vdwg.mxu0
        %4886 = vst [vmem:[%s513] sm:$0xff] %v4880
        %4887 = vst [vmem:[%s513 + $0x8] sm:$0xff] %v4883
        %s4888 = smul.u32 2, %s27
        %p4889 = scmp.lt.s32.totalorder %s4888, 3
        %s4890 = scalar_select %p4889, %s4888, 3
        %s4891 = smul.addr %s4890, 8
        %s4892 = scalar_lea.vmem %s11, %s4891
        // Predicated region
        $region101: #{sed_forward.1} parent=63 // pred_check
          %p4893 = pneg %p281
        $region102: #{sed_forward.1} parent=63 // pred_check_branch
          %4895 = sbr.rel (%p4893) target = $region104
        $region103: #{sed_forward.1} parent=63 // pred_region
          %s4896 = smul.u32 2, %s27
        $region104: #{sed_forward.1} parent=63 // pred_fallthru
          _
      $region64: #{sed_forward.1} parent=5 // pred_fallthru
        _
      %p4897 = scmp.le.s32.totalorder 2, %s22
      // Predicated region
      $region105: #{sed_forward.1} parent=5 // pred_check
        %p4898 = pneg %p4897
      $region106: #{sed_forward.1} parent=5 // pred_check_branch
        %4900 = sbr.rel (%p4898) target = $region108
      $region107: #{sed_forward.1} parent=5 // pred_region
        %s4901 = ssub.s32 %s22, 2
        // Predicated region
        $region109: #{sed_forward.1} parent=107 // pred_check
          %p4902 = pneg %p287
        $region110: #{sed_forward.1} parent=107 // pred_check_branch
          %4904 = sbr.rel (%p4902) target = $region112
        $region111: #{sed_forward.1} parent=107 // pred_region
          %s4905 = smul.u32 2, %s28
          %p4906 = scmp.lt.s32.totalorder %s4905, 3
          %s4907 = scalar_select %p4906, %s4905, 3
          %s4908 = smul.addr %s4907, 8
          %s4909 = scalar_lea.vmem %s11, %s4908
        $region112: #{sed_forward.1} parent=107 // pred_fallthru
          _
      $region108: #{sed_forward.1} parent=5 // pred_fallthru
        _
    $region6: #{sed_forward.1} parent=1 // loop_footer
      %s26 = sadd.s32 1, %s22
    $region7: #{sed_forward.1} parent=1 // loop_footer_branch
      %21 = sbr.rel target = $region3
    $region8: #{sed_forward.1} parent=1 // loop_exit
      _
    %4910 = vsyncpa [#allocation3], 1
    %s4911 = scalar_lea.sflag [#allocation3], 1
    %4912 = vsyncpa %s4911, 1
    %4913 = vsyncpa [#allocation5], 1
    %4914 = vsyncpa [#allocation8], 1
    %4915 = vsyncpa [#allocation11], 1
    %4916 = vsyncpa [#allocation14], 1

</llo_original>
